<compile_context>
chip_gen: v7x
topology: tpu7x:2x2x1
jax: 0.10.0
libtpu: 0.0.40
codegen_flags: <defaults>
</compile_context>

<pallas_src>
import functools

import jax
import jax.numpy as jnp
from jax.experimental import pallas as pl
from jax.experimental.pallas import tpu as pltpu

AVG_EPS = 1e-6          # BertAVG(eps=1e-06)
COS_EPS = 1e-8          # torch.cosine_similarity default eps


def _round_up(x, m):
    return (x + m - 1) // m * m


def _vmem_capacity_bytes():
    """Physical VMEM per TensorCore (64 MiB on v7x, 128 MiB on v5e/v6e)."""
    try:
        info = pltpu.get_tpu_info()
        cap = getattr(info, "vmem_capacity_bytes", None)
        if cap:
            return int(cap)
    except Exception:
        pass
    return 64 * 1024 * 1024     # conservative fallback (v7x per-TC)


def _per_dialogue_vmem_bytes(L, H, w_bytes):
    """Rough per-dialogue, per-grid-step VMEM footprint (lane-padded)."""
    lp = _round_up(L, 128)
    hp = _round_up(H, 128)
    in_h = 2 * L * hp * 2               # bf16 hidden states, double-buffered
    in_cols = 2 * L * 128 * 4           # (L, 8) f32 slab lane-pads to 128
    in_rows = 2 * 8 * lp * 4
    out_w = 2 * L * lp * w_bytes        # attention output, double-buffered
    out_avg = 2 * 8 * hp * 4
    temps = 3 * L * lp * 4              # g / w / fw f32 live L*L values
    return in_h + in_cols + in_rows + out_w + out_avg + temps


# ----------------------------------------------------------------------------
# Pallas kernel: per-dialogue attention / masked-average core (Bn per step).
# ----------------------------------------------------------------------------
def _dial2vec_core_kernel(h_ref, cols_ref, rows_ref, w_ref, avg_ref,
                          *, max_turn_view_range):
    h = h_ref[...]                       # (Bn, L, H) bf16 (MXU operands)
    cols = cols_ref[...]                 # (Bn, L, 8) f32: col0=a_mask, col1=turn
    rows = rows_ref[...]                 # (Bn, 8, L) f32: [a,a,b,b,am,turn,0,0]

    a_m_col = cols[:, :, 0:1]            # (Bn, L, 1)
    turn_col = cols[:, :, 1:2]           # (Bn, L, 1)
    a_m_row = rows[:, 0:1, :]            # (Bn, 1, L)
    b_m_row = rows[:, 2:3, :]            # (Bn, 1, L)
    am_row = rows[:, 4:5, :]             # (Bn, 1, L)
    turn_row = rows[:, 5:6, :]           # (Bn, 1, L)

    # g[l,k] = <h_l, h_k>; bf16 x bf16 with f32 accumulation (fast MXU path).
    g = jnp.einsum('bld,bkd->blk', h, h, preferred_element_type=jnp.float32)

    # w = q_self @ r_self^T = (a_m (x) b_m) * g  (binary masks).  Stored as the
    # 'attention' output (bf16 by default: halves the largest HBM write).
    w = g * (a_m_col * b_m_row)          # (Bn, L, L) f32
    w_ref[...] = w.astype(w_ref.dtype)

    # Fused view-range filter: no separate 0/1 mask temporary, no cast*mul.
    fw = jnp.where(jnp.abs(turn_col - turn_row) <= max_turn_view_range, w, 0.0)

    # r_cross reduction: v[k] = sum_l a_m[l]*fw[l,k] = sum_l fw[l,k]
    # (a_m is already a binary factor of fw) -> cheap sublane-axis reduction.
    v_row = jnp.sum(fw, axis=1, keepdims=True)                 # (Bn, 1, L)
    # q_cross reduction: u[l] = sum_k b_m[k]*fw[l,k].  Needs ROW (lane) layout
    # for the single 8-row average matmul below, so keep it as one tiny
    # (1,L)x(L,L) matvec on the (otherwise idle-ish) MXU instead of a
    # lane<->sublane transpose of a column reduction.
    u_row = jnp.einsum('bok,blk->bol', b_m_row, fw,
                       preferred_element_type=jnp.float32)     # (Bn, 1, L)

    # Stacked "left weight" matrix M (Bn, 8, L):
    #   rows = [a_m, u*a_m, b_m, v*b_m, am, 0, 0, 0]
    sub = jax.lax.broadcasted_iota(jnp.int32, (8, 1), 0)       # (8, 1)
    factor = jnp.where(sub == 1, u_row,
             jnp.where(sub == 3, v_row,
             jnp.where(sub >= 5, 0.0, 1.0)))                   # (Bn, 8, L)
    m_rows = rows * factor

    # All five masked-sum numerators in ONE (8,L)x(L,H) matmul (bf16 operands,
    # f32 accumulation):
    #   row0 -> q_self, row1 -> q_cross, row2 -> r_self, row3 -> r_cross,
    #   row4 -> self, rows 5..7 padding.
    numer = jnp.einsum('bsl,bld->bsd', m_rows.astype(jnp.bfloat16), h,
                       preferred_element_type=jnp.float32)     # (Bn, 8, H)

    s_a = jnp.sum(a_m_row, axis=-1, keepdims=True)             # (Bn, 1, 1)
    s_b = jnp.sum(b_m_row, axis=-1, keepdims=True)
    s_all = jnp.sum(am_row, axis=-1, keepdims=True)
    denom = jnp.where((sub == 0) | (sub == 3), s_a,
            jnp.where((sub == 1) | (sub == 2), s_b,
            jnp.where(sub == 4, s_all, 1.0)))                  # (Bn, 8, 1)

    avg_ref[...] = numer / (denom + AVG_EPS)


def dial2vec_core(hidden_states, attention_mask, role_ids, turn_ids,
                  *, max_turn_view_range, attention_dtype=jnp.bfloat16,
                  max_block_n=16):
    """Run the Pallas core over N dialogues, Bn dialogues per grid step.

    hidden_states: (N, L, H); attention_mask / role_ids / turn_ids: (N, L).
    Returns: attention w (N, L, L) and the 5 masked averages, each (N, H) f32.
    """
    N, L, H = hidden_states.shape
    am = attention_mask.astype(jnp.float32)
    role = role_ids.astype(jnp.float32)
    turn = turn_ids.astype(jnp.float32)
    a_m = am * (role == 0.0).astype(jnp.float32)   # a_attention_mask
    b_m = am * (role == 1.0).astype(jnp.float32)   # b_attention_mask
    zeros = jnp.zeros_like(am)

    # Packed side inputs: one column-layout and one row-layout slab per
    # dialogue (avoids any in-kernel lane<->sublane transpose).  The (L, 8)
    # slab lane-pads to 128 in VMEM but is negligible next to h and w.
    cols = jnp.stack([a_m, turn, zeros, zeros, zeros, zeros, zeros, zeros],
                     axis=-1)                                   # (N, L, 8)
    rows = jnp.stack([a_m, a_m, b_m, b_m, am, turn, zeros, zeros],
                     axis=1)                                    # (N, 8, L)

    # Matmul operands ship as bf16 (halves the dominant h DMA); all mask math
    # inside the kernel stays f32.
    h_bf16 = hidden_states.astype(jnp.bfloat16)

    # Generation-aware block sizing from a VMEM budget, keeping >= 2 grid
    # steps so the 'parallel' dialogue axis can split across v7x's two TCs.
    # TODO(synk): for very large L on v7x, add a second 'arbitrary' grid axis
    # tiling the query rows of the L*L intermediates (accumulate v / numer in
    # scratch with pl.when init/finalize) instead of only shrinking Bn.
    vmem_cap = _vmem_capacity_bytes()
    w_bytes = jnp.dtype(attention_dtype).itemsize
    per_dlg = _per_dialogue_vmem_bytes(L, H, w_bytes)
    budget = int(0.6 * vmem_cap)
    bn_cap = int(max(1, min(budget // max(per_dlg, 1), max_block_n)))
    n_steps = pl.cdiv(N, bn_cap)
    if N >= 2:
        n_steps = max(n_steps, 2)
    bn = pl.cdiv(N, n_steps)
    n_pad = n_steps * bn

    if n_pad != N:
        pad = ((0, n_pad - N), (0, 0), (0, 0))
        h_bf16 = jnp.pad(h_bf16, pad)
        cols = jnp.pad(cols, pad)
        rows = jnp.pad(rows, pad)

    kernel = functools.partial(_dial2vec_core_kernel,
                               max_turn_view_range=float(max_turn_view_range))

    grid_spec = pltpu.PrefetchScalarGridSpec(
        num_scalar_prefetch=0,
        grid=(n_steps,),
        in_specs=[pl.BlockSpec((bn, L, H), lambda i: (i, 0, 0)),
                  pl.BlockSpec((bn, L, 8), lambda i: (i, 0, 0)),
                  pl.BlockSpec((bn, 8, L), lambda i: (i, 0, 0))],
        out_specs=[pl.BlockSpec((bn, L, L), lambda i: (i, 0, 0)),
                   pl.BlockSpec((bn, 8, H), lambda i: (i, 0, 0))],
    )

    vmem_limit = int(min(vmem_cap * 0.85, 100 * 1024 * 1024))
    w, avg = pl.pallas_call(
        kernel,
        out_shape=(jax.ShapeDtypeStruct((n_pad, L, L), attention_dtype),
                   jax.ShapeDtypeStruct((n_pad, 8, H), jnp.float32)),
        grid_spec=grid_spec,
        compiler_params=pltpu.CompilerParams(
            dimension_semantics=("parallel",),   # lets v7x split over 2 TCs
            vmem_limit_bytes=vmem_limit),
    )(h_bf16, cols, rows)

    w = w[:N]
    avg = avg[:N]
    # rows 0..4: q_self_avg, q_cross_avg, r_self_avg, r_cross_avg, self_avg
    return (w, avg[:, 0, :], avg[:, 1, :], avg[:, 2, :], avg[:, 3, :],
            avg[:, 4, :])


# ----------------------------------------------------------------------------
# Glue: synthetic encoder, cosine similarity, loss (plain JAX).
# ----------------------------------------------------------------------------
def init_params(key, vocab_size, max_pos, n_types, hidden_size):
    k1, k2, k3, k4, k5 = jax.random.split(key, 5)
    scale = 0.02
    return {
        "word_emb": scale * jax.random.normal(k1, (vocab_size, hidden_size), jnp.float32),
        "pos_emb": scale * jax.random.normal(k2, (max_pos, hidden_size), jnp.float32),
        "type_emb": scale * jax.random.normal(k3, (n_types, hidden_size), jnp.float32),
        "pool_w": scale * jax.random.normal(k4, (hidden_size, hidden_size), jnp.float32),
        "pool_b": scale * jax.random.normal(k5, (hidden_size,), jnp.float32),
    }


def synthetic_encoder(params, input_ids, token_type_ids, position_ids):
    # TODO(synk): the full BERT/Plato backbone has no compact Pallas equivalent
    # here; substituted with a deterministic embedding-sum encoder + tanh pooler.
    emb = (params["word_emb"][input_ids]
           + params["pos_emb"][position_ids]
           + params["type_emb"][token_type_ids])
    self_output = jnp.tanh(emb)                                    # (N, L, H)
    pooled = jnp.tanh(self_output[:, 0, :] @ params["pool_w"]
                      + params["pool_b"])                          # (N, H)
    return self_output, pooled


def cosine_similarity(x, y, eps=COS_EPS):
    num = jnp.sum(x * y, axis=-1)
    den = jnp.maximum(jnp.linalg.norm(x, axis=-1) * jnp.linalg.norm(y, axis=-1),
                      eps)
    return num / den


def calc_loss(pred, labels):
    return -jnp.mean(jax.nn.log_softmax(pred, axis=-1) * labels)


def dial2vec_forward(params, data, *, sample_nums, hidden_size,
                     max_turn_view_range, temperature,
                     strategy="mean_by_role"):
    (input_ids, attention_mask, token_type_ids,
     role_ids, turn_ids, position_ids, labels) = data

    B, S, L = input_ids.shape            # S == sample_nums
    N = B * S
    flat = lambda x: x.reshape(N, L)
    input_ids = flat(input_ids)
    attention_mask = flat(attention_mask)
    token_type_ids = flat(token_type_ids)
    role_ids = flat(role_ids)
    turn_ids = flat(turn_ids)
    position_ids = flat(position_ids)

    self_output, pooled_output = synthetic_encoder(
        params, input_ids, token_type_ids, position_ids)

    # ---- Pallas hot path ----
    w, q_self_avg, q_cross_avg, r_self_avg, r_cross_avg, self_avg = dial2vec_core(
        self_output, attention_mask, role_ids, turn_ids,
        max_turn_view_range=max_turn_view_range)

    reshape = lambda x: x.reshape(-1, sample_nums, hidden_size)
    q_self_avg = reshape(q_self_avg)
    q_cross_avg = reshape(q_cross_avg)
    r_self_avg = reshape(r_self_avg)
    r_cross_avg = reshape(r_cross_avg)
    self_avg = reshape(self_avg)
    pooled_output = reshape(pooled_output)   # computed-but-unused, as in torch

    output = self_avg[:, 0, :]
    q_output = q_self_avg[:, 0, :]
    r_output = r_self_avg[:, 0, :]

    logit_q = cosine_similarity(q_self_avg, q_cross_avg) / temperature  # (B, S)
    logit_r = cosine_similarity(r_self_avg, r_cross_avg) / temperature  # (B, S)

    loss = calc_loss(logit_r, labels) + calc_loss(logit_q, labels)

    final_feature = output if strategy == "mean" else q_output + r_output
    return {
        "loss": loss,
        "final_feature": final_feature,
        "q_feature": q_output,
        "r_feature": r_output,
        "attention": w,
    }


# ----------------------------------------------------------------------------
# Pure-JAX reference of the core (literal torch formulation) for a sanity check.
# ----------------------------------------------------------------------------
def _reference_core(hidden_states, attention_mask, role_ids, turn_ids,
                    max_turn_view_range):
    h = hidden_states.astype(jnp.float32)
    am = attention_mask.astype(jnp.float32)
    a_m = am * (role_ids == 0).astype(jnp.float32)
    b_m = am * (role_ids == 1).astype(jnp.float32)
    q_self = h * a_m[:, :, None]
    r_self = h * b_m[:, :, None]
    s_out = h * am[:, :, None]
    w = jnp.einsum('bld,bkd->blk', q_self, r_self)
    turn = turn_ids.astype(jnp.int32)
    vrm = (jnp.abs(turn[:, :, None] - turn[:, None, :])
           <= max_turn_view_range).astype(jnp.float32)
    fw = w * vrm
    q_cross = jnp.einsum('blk,bld->bkd', fw, q_self)   # fw^T @ q_self
    r_cross = jnp.einsum('blk,bkd->bld', fw, r_self)   # fw  @ r_self

    def avg(x, m):
        return (jnp.sum(x * m[:, :, None], axis=1)
                / (jnp.sum(m, axis=1, keepdims=True) + AVG_EPS))

    return (w, avg(q_self, a_m), avg(q_cross, b_m), avg(r_self, b_m),
            avg(r_cross, a_m), avg(s_out, am))


# ----------------------------------------------------------------------------
# Main
# ----------------------------------------------------------------------------
if __name__ == "__main__":
    B = 2                 # batch
    SAMPLE_NUMS = 10      # self.sample_nums
    L = 16                # max_seq_length
    H = 32                # hidden_size
    VOCAB = 64
    MAX_TURN_VIEW_RANGE = 1
    TEMPERATURE = 1.0

    key = jax.random.PRNGKey(0)
    kp, k1, k2, k3, k4 = jax.random.split(key, 5)

    params = init_params(kp, VOCAB, L, 2, H)

    input_ids = jax.random.randint(k1, (B, SAMPLE_NUMS, L), 0, VOCAB, jnp.int32)
    # attention mask: first `valid` tokens are 1
    valid = jax.random.randint(k2, (B, SAMPLE_NUMS, 1), L // 2, L + 1, jnp.int32)
    attention_mask = (jnp.arange(L)[None, None, :] < valid).astype(jnp.int32)
    token_type_ids = jnp.zeros((B, SAMPLE_NUMS, L), jnp.int32)
    role_ids = jax.random.randint(k3, (B, SAMPLE_NUMS, L), 0, 2, jnp.int32)
    turn_ids = jnp.cumsum(
        jax.random.randint(k4, (B, SAMPLE_NUMS, L), 0, 2, jnp.int32), axis=-1)
    position_ids = jnp.broadcast_to(jnp.arange(L, dtype=jnp.int32)[None, None, :],
                                    (B, SAMPLE_NUMS, L))
    labels = jnp.zeros((B, SAMPLE_NUMS), jnp.float32).at[:, 0].set(1.0)

    data = (input_ids, attention_mask, token_type_ids,
            role_ids, turn_ids, position_ids, labels)

    out = dial2vec_forward(params, data,
                           sample_nums=SAMPLE_NUMS, hidden_size=H,
                           max_turn_view_range=MAX_TURN_VIEW_RANGE,
                           temperature=TEMPERATURE)
    jax.block_until_ready(out)

    assert out["loss"].shape == ()
    assert out["final_feature"].shape == (B, H)
    assert out["q_feature"].shape == (B, H)
    assert out["r_feature"].shape == (B, H)
    assert out["attention"].shape == (B * SAMPLE_NUMS, L, L)

    # ---- sanity check: Pallas core vs. explicit f32 reference (bf16 MXU ->
    #      loose tolerance) ----
    flatten = lambda x: x.reshape(B * SAMPLE_NUMS, L)
    self_out, _ = synthetic_encoder(params, flatten(input_ids),
                                    flatten(token_type_ids),
                                    flatten(position_ids))
    core = dial2vec_core(self_out, flatten(attention_mask), flatten(role_ids),
                         flatten(turn_ids),
                         max_turn_view_range=MAX_TURN_VIEW_RANGE)
    ref = _reference_core(self_out, flatten(attention_mask), flatten(role_ids),
                          flatten(turn_ids), MAX_TURN_VIEW_RANGE)
    for name, got, want in zip(
            ("w", "q_self", "q_cross", "r_self", "r_cross", "self"), core, ref):
        got = jnp.asarray(got, jnp.float32)
        assert bool(jnp.allclose(got, want, rtol=3e-2, atol=3e-3)), \
            f"Pallas core mismatch on {name}"

    print("KERNEL_OK")
</pallas_src>

<mosaic_0001>
module attributes {stable_mosaic.version = 11 : i64} {
  func.func @_dial2vec_core_kernel(%arg0: i32, %arg1: memref<10x16x32xbf16, #tpu.memory_space<vmem>>, %arg2: memref<10x16x8xf32, #tpu.memory_space<vmem>>, %arg3: memref<10x8x16xf32, #tpu.memory_space<vmem>>, %arg4: memref<10x16x16xbf16, #tpu.memory_space<vmem>>, %arg5: memref<10x8x32xf32, #tpu.memory_space<vmem>>) attributes {dimension_semantics = [#tpu.dimension_semantics<parallel>], iteration_bounds = array<i64: 2>, scalar_prefetch = 0 : i64, scratch_operands = 0 : i64, tpu.core_type = #tpu.core_type<tc>, window_params = [{transform_indices = @transform_0, window_bounds = array<i64: 10, 16, 32>}, {transform_indices = @transform_1, window_bounds = array<i64: 10, 16, 8>}, {transform_indices = @transform_2, window_bounds = array<i64: 10, 8, 16>}, {transform_indices = @transform_3, window_bounds = array<i64: 10, 16, 16>}, {transform_indices = @transform_4, window_bounds = array<i64: 10, 8, 32>}]} {
    %c0 = arith.constant 0 : index
    %c0_0 = arith.constant 0 : index
    %c0_1 = arith.constant 0 : index
    %0 = vector.load %arg1[%c0, %c0_0, %c0_1] : memref<10x16x32xbf16, #tpu.memory_space<vmem>>, vector<10x16x32xbf16>
    %c0_2 = arith.constant 0 : index
    %c0_3 = arith.constant 0 : index
    %c0_4 = arith.constant 0 : index
    %1 = vector.load %arg2[%c0_2, %c0_3, %c0_4] : memref<10x16x8xf32, #tpu.memory_space<vmem>>, vector<10x16x8xf32>
    %c0_5 = arith.constant 0 : index
    %c0_6 = arith.constant 0 : index
    %c0_7 = arith.constant 0 : index
    %2 = vector.load %arg3[%c0_5, %c0_6, %c0_7] : memref<10x8x16xf32, #tpu.memory_space<vmem>>, vector<10x8x16xf32>
    %3 = vector.extract_strided_slice %1 {offsets = [0, 0, 0], sizes = [10, 16, 1], strides = [1, 1, 1]} : vector<10x16x8xf32> to vector<10x16x1xf32>
    %4 = vector.extract_strided_slice %1 {offsets = [0, 0, 1], sizes = [10, 16, 1], strides = [1, 1, 1]} : vector<10x16x8xf32> to vector<10x16x1xf32>
    %5 = vector.extract_strided_slice %2 {offsets = [0, 0, 0], sizes = [10, 1, 16], strides = [1, 1, 1]} : vector<10x8x16xf32> to vector<10x1x16xf32>
    %6 = vector.extract_strided_slice %2 {offsets = [0, 2, 0], sizes = [10, 1, 16], strides = [1, 1, 1]} : vector<10x8x16xf32> to vector<10x1x16xf32>
    %7 = vector.extract_strided_slice %2 {offsets = [0, 4, 0], sizes = [10, 1, 16], strides = [1, 1, 1]} : vector<10x8x16xf32> to vector<10x1x16xf32>
    %8 = vector.extract_strided_slice %2 {offsets = [0, 5, 0], sizes = [10, 1, 16], strides = [1, 1, 1]} : vector<10x8x16xf32> to vector<10x1x16xf32>
    "tpu.trace_start"() <{level = 10 : i32, message = "bld,bkd->blk"}> : () -> ()
    %cst = arith.constant dense<0.000000e+00> : vector<10x16x16xf32>
    %9 = tpu.matmul %0, %0, %cst {dimension_numbers = #tpu.dot_dimension_numbers<[2], [2], [1], [1], [0, 0, 0, 1, 1, 1], [0], [0]>} : vector<10x16x32xbf16>, vector<10x16x32xbf16>, vector<10x16x16xf32> -> vector<10x16x16xf32>
    "tpu.trace_stop"() : () -> ()
    %10 = vector.broadcast %3 : vector<10x16x1xf32> to vector<10x16x16xf32>
    %11 = vector.broadcast %6 : vector<10x1x16xf32> to vector<10x16x16xf32>
    %12 = arith.mulf %10, %11 : vector<10x16x16xf32>
    %13 = arith.mulf %9, %12 : vector<10x16x16xf32>
    %14 = arith.truncf %13 : vector<10x16x16xf32> to vector<10x16x16xbf16>
    %c0_8 = arith.constant 0 : index
    %c0_9 = arith.constant 0 : index
    %c0_10 = arith.constant 0 : index
    %15 = vector.load %arg4[%c0_8, %c0_9, %c0_10] : memref<10x16x16xbf16, #tpu.memory_space<vmem>>, vector<10x16x16xbf16>
    tpu.vector_store %arg4[%c0_8, %c0_9, %c0_10], %14 {strides = array<i32>} : memref<10x16x16xbf16, #tpu.memory_space<vmem>>, vector<10x16x16xbf16>,
    %16 = vector.broadcast %4 : vector<10x16x1xf32> to vector<10x16x16xf32>
    %17 = vector.broadcast %8 : vector<10x1x16xf32> to vector<10x16x16xf32>
    %18 = arith.subf %16, %17 : vector<10x16x16xf32>
    %19 = math.absf %18 : vector<10x16x16xf32>
    %cst_11 = arith.constant 1.000000e+00 : f32
    %20 = vector.broadcast %cst_11 : f32 to vector<10x16x16xf32>
    %21 = arith.cmpf ole, %19, %20 : vector<10x16x16xf32>
    %cst_12 = arith.constant 0.000000e+00 : f32
    %22 = vector.broadcast %cst_12 : f32 to vector<10x16x16xf32>
    %23 = arith.select %21, %13, %22 : vector<10x16x16xi1>, vector<10x16x16xf32>
    %cst_13 = arith.constant dense<0.000000e+00> : vector<10x16xf32>
    %24 = vector.multi_reduction <add>, %23, %cst_13 [1] : vector<10x16x16xf32> to vector<10x16xf32>
    %25 = vector.shape_cast %24 : vector<10x16xf32> to vector<10x1x16xf32>
    "tpu.trace_start"() <{level = 10 : i32, message = "bok,blk->bol"}> : () -> ()
    %cst_14 = arith.constant dense<0.000000e+00> : vector<10x1x16xf32>
    %26 = tpu.matmul %6, %23, %cst_14 {dimension_numbers = #tpu.dot_dimension_numbers<[2], [2], [1], [1], [0, 0, 0, 1, 1, 1], [0], [0]>} : vector<10x1x16xf32>, vector<10x16x16xf32>, vector<10x1x16xf32> -> vector<10x1x16xf32>
    "tpu.trace_stop"() : () -> ()
    %27 = tpu.iota {dimensions = array<i32: 0>} : vector<8x1xi32>
    %c1_i32 = arith.constant 1 : i32
    %28 = vector.broadcast %c1_i32 : i32 to vector<8x1xi32>
    %29 = arith.cmpi eq, %27, %28 : vector<8x1xi32>
    %c3_i32 = arith.constant 3 : i32
    %30 = vector.broadcast %c3_i32 : i32 to vector<8x1xi32>
    %31 = arith.cmpi eq, %27, %30 : vector<8x1xi32>
    %c5_i32 = arith.constant 5 : i32
    %32 = vector.broadcast %c5_i32 : i32 to vector<8x1xi32>
    %33 = arith.cmpi sge, %27, %32 : vector<8x1xi32>
    %cst_15 = arith.constant 0.000000e+00 : f32
    %cst_16 = arith.constant 1.000000e+00 : f32
    %34 = vector.broadcast %cst_15 : f32 to vector<8x1xf32>
    %35 = vector.broadcast %cst_16 : f32 to vector<8x1xf32>
    %36 = arith.select %33, %34, %35 : vector<8x1xi1>, vector<8x1xf32>
    %37 = vector.shape_cast %31 : vector<8x1xi1> to vector<1x8x1xi1>
    %38 = vector.broadcast %37 : vector<1x8x1xi1> to vector<10x8x16xi1>
    %39 = vector.shape_cast %25 : vector<10x1x16xf32> to vector<10x1x16xf32>
    %40 = vector.broadcast %39 : vector<10x1x16xf32> to vector<10x8x16xf32>
    %41 = vector.shape_cast %36 : vector<8x1xf32> to vector<1x8x1xf32>
    %42 = vector.broadcast %41 : vector<1x8x1xf32> to vector<10x8x16xf32>
    %43 = arith.select %38, %40, %42 : vector<10x8x16xi1>, vector<10x8x16xf32>
    %44 = vector.shape_cast %29 : vector<8x1xi1> to vector<1x8x1xi1>
    %45 = vector.broadcast %44 : vector<1x8x1xi1> to vector<10x8x16xi1>
    %46 = vector.shape_cast %26 : vector<10x1x16xf32> to vector<10x1x16xf32>
    %47 = vector.broadcast %46 : vector<10x1x16xf32> to vector<10x8x16xf32>
    %48 = arith.select %45, %47, %43 : vector<10x8x16xi1>, vector<10x8x16xf32>
    %49 = arith.mulf %2, %48 : vector<10x8x16xf32>
    %50 = arith.truncf %49 : vector<10x8x16xf32> to vector<10x8x16xbf16>
    "tpu.trace_start"() <{level = 10 : i32, message = "bsl,bld->bsd"}> : () -> ()
    %cst_17 = arith.constant dense<0.000000e+00> : vector<10x8x32xf32>
    %51 = tpu.matmul %50, %0, %cst_17 {dimension_numbers = #tpu.dot_dimension_numbers<[2], [1], [1], [2], [0, 0, 0, 1, 1, 2], [0], [0]>} : vector<10x8x16xbf16>, vector<10x16x32xbf16>, vector<10x8x32xf32> -> vector<10x8x32xf32>
    "tpu.trace_stop"() : () -> ()
    %cst_18 = arith.constant dense<0.000000e+00> : vector<10x1xf32>
    %52 = vector.multi_reduction <add>, %5, %cst_18 [2] : vector<10x1x16xf32> to vector<10x1xf32>
    %53 = vector.shape_cast %52 : vector<10x1xf32> to vector<10x1x1xf32>
    %cst_19 = arith.constant dense<0.000000e+00> : vector<10x1xf32>
    %54 = vector.multi_reduction <add>, %6, %cst_19 [2] : vector<10x1x16xf32> to vector<10x1xf32>
    %55 = vector.shape_cast %54 : vector<10x1xf32> to vector<10x1x1xf32>
    %cst_20 = arith.constant dense<0.000000e+00> : vector<10x1xf32>
    %56 = vector.multi_reduction <add>, %7, %cst_20 [2] : vector<10x1x16xf32> to vector<10x1xf32>
    %57 = vector.shape_cast %56 : vector<10x1xf32> to vector<10x1x1xf32>
    %c0_i32 = arith.constant 0 : i32
    %58 = vector.broadcast %c0_i32 : i32 to vector<8x1xi32>
    %59 = arith.cmpi eq, %27, %58 : vector<8x1xi32>
    %c3_i32_21 = arith.constant 3 : i32
    %60 = vector.broadcast %c3_i32_21 : i32 to vector<8x1xi32>
    %61 = arith.cmpi eq, %27, %60 : vector<8x1xi32>
    %62 = arith.ori %59, %61 : vector<8x1xi1>
    %c1_i32_22 = arith.constant 1 : i32
    %63 = vector.broadcast %c1_i32_22 : i32 to vector<8x1xi32>
    %64 = arith.cmpi eq, %27, %63 : vector<8x1xi32>
    %c2_i32 = arith.constant 2 : i32
    %65 = vector.broadcast %c2_i32 : i32 to vector<8x1xi32>
    %66 = arith.cmpi eq, %27, %65 : vector<8x1xi32>
    %67 = arith.ori %64, %66 : vector<8x1xi1>
    %c4_i32 = arith.constant 4 : i32
    %68 = vector.broadcast %c4_i32 : i32 to vector<8x1xi32>
    %69 = arith.cmpi eq, %27, %68 : vector<8x1xi32>
    %cst_23 = arith.constant 1.000000e+00 : f32
    %70 = vector.shape_cast %69 : vector<8x1xi1> to vector<1x8x1xi1>
    %71 = vector.broadcast %70 : vector<1x8x1xi1> to vector<10x8x1xi1>
    %72 = vector.shape_cast %57 : vector<10x1x1xf32> to vector<10x1x1xf32>
    %73 = vector.broadcast %72 : vector<10x1x1xf32> to vector<10x8x1xf32>
    %74 = vector.broadcast %cst_23 : f32 to vector<10x8x1xf32>
    %75 = arith.select %71, %73, %74 : vector<10x8x1xi1>, vector<10x8x1xf32>
    %76 = vector.shape_cast %67 : vector<8x1xi1> to vector<1x8x1xi1>
    %77 = vector.broadcast %76 : vector<1x8x1xi1> to vector<10x8x1xi1>
    %78 = vector.shape_cast %55 : vector<10x1x1xf32> to vector<10x1x1xf32>
    %79 = vector.broadcast %78 : vector<10x1x1xf32> to vector<10x8x1xf32>
    %80 = arith.select %77, %79, %75 : vector<10x8x1xi1>, vector<10x8x1xf32>
    %81 = vector.shape_cast %62 : vector<8x1xi1> to vector<1x8x1xi1>
    %82 = vector.broadcast %81 : vector<1x8x1xi1> to vector<10x8x1xi1>
    %83 = vector.shape_cast %53 : vector<10x1x1xf32> to vector<10x1x1xf32>
    %84 = vector.broadcast %83 : vector<10x1x1xf32> to vector<10x8x1xf32>
    %85 = arith.select %82, %84, %80 : vector<10x8x1xi1>, vector<10x8x1xf32>
    %cst_24 = arith.constant 9.99999997E-7 : f32
    %86 = vector.broadcast %cst_24 : f32 to vector<10x8x1xf32>
    %87 = arith.addf %85, %86 : vector<10x8x1xf32>
    %88 = vector.broadcast %87 : vector<10x8x1xf32> to vector<10x8x32xf32>
    %89 = arith.divf %51, %88 : vector<10x8x32xf32>
    %c0_25 = arith.constant 0 : index
    %c0_26 = arith.constant 0 : index
    %c0_27 = arith.constant 0 : index
    %90 = vector.load %arg5[%c0_25, %c0_26, %c0_27] : memref<10x8x32xf32, #tpu.memory_space<vmem>>, vector<10x8x32xf32>
    tpu.vector_store %arg5[%c0_25, %c0_26, %c0_27], %89 {strides = array<i32>} : memref<10x8x32xf32, #tpu.memory_space<vmem>>, vector<10x8x32xf32>,
    return
  }
  func.func @transform_0(%arg0: i32) -> (i32, i32, i32) {
    %c0_i32 = arith.constant 0 : i32
    %c0_i32_0 = arith.constant 0 : i32
    %c0_i32_1 = arith.constant 0 : i32
    return %arg0, %c0_i32, %c0_i32_0 : i32, i32, i32
  }
  func.func @transform_1(%arg0: i32) -> (i32, i32, i32) {
    %c0_i32 = arith.constant 0 : i32
    %c0_i32_0 = arith.constant 0 : i32
    %c0_i32_1 = arith.constant 0 : i32
    return %arg0, %c0_i32, %c0_i32_0 : i32, i32, i32
  }
  func.func @transform_2(%arg0: i32) -> (i32, i32, i32) {
    %c0_i32 = arith.constant 0 : i32
    %c0_i32_0 = arith.constant 0 : i32
    %c0_i32_1 = arith.constant 0 : i32
    return %arg0, %c0_i32, %c0_i32_0 : i32, i32, i32
  }
  func.func @transform_3(%arg0: i32) -> (i32, i32, i32) {
    %c0_i32 = arith.constant 0 : i32
    %c0_i32_0 = arith.constant 0 : i32
    %c0_i32_1 = arith.constant 0 : i32
    return %arg0, %c0_i32, %c0_i32_0 : i32, i32, i32
  }
  func.func @transform_4(%arg0: i32) -> (i32, i32, i32) {
    %c0_i32 = arith.constant 0 : i32
    %c0_i32_0 = arith.constant 0 : i32
    %c0_i32_1 = arith.constant 0 : i32
    return %arg0, %c0_i32, %c0_i32_0 : i32, i32, i32
  }
}

</mosaic_0001>

<llo_original>
// kernel: tpu_custom_call.1
$region0: #{tpu_custom_call.1}
  #allocation0 [shape = 'u32[]', space=smem, size = 0x4, offset = 0x4, fixed_abs, tag = 'smem constant byte address 0x4 - core index']
  #allocation1 [shape = 'u32[144,128]{1,0:T(1,128)}', space=vmem, size = 0x12000, scoped, tag = 'internal scratch']
  %s0 = inlined_call_operand.vmem [shape: bf16[20,16,32], index: 0, kind: input, shape index: {}]
  %s1 = inlined_call_operand.vmem [shape: f32[20,16,8], index: 1, kind: input, shape index: {}]
  %s2 = inlined_call_operand.vmem [shape: f32[20,8,16], index: 2, kind: input, shape index: {}]
  %s3 = inlined_call_operand.vmem [shape: bf16[20,16,16], index: 3, kind: output, shape index: {0}]
  %s4 = inlined_call_operand.hbm [shape: f32[20,8,32], index: 4, kind: output, shape index: {1}]
  %5 = xla_tuple %s3, %s4
  %s6 = sld [smem:[#allocation0]]
  $region53: #{tpu_custom_call.1} parent=0
    _
  %s8 = ssub.s32 1, %s6
  %s9 = scalar_select 0, %s8, %s6
  $region1: #{tpu_custom_call.1} parent=0
    #allocation2 [shape = 'u8[81920]{0}', space=vmem, size = 0x14000, scoped, tag = 'output window, operand 1']
    #allocation3 [shape = 's32[2]{0}', space=sflag, size = 0x8, scoped, tag = 'scoped memory for tpu_custom_call.1']
    %10 = vsyncpa [#allocation3], 0
    %s11 = scalar_lea.sflag [#allocation3], 1
    %12 = vsyncpa %s11, 0
    loop: start=0, step=1, limit=4
    $region2: #{tpu_custom_call.1} parent=1 // loop_pre_header
      _
    $region3: #{tpu_custom_call.1} parent=1 // loop_header
      %s14 = sphi 0, %s18
      %p15 = scmp.ge.s32.totalorder %s14, 4
      %s24 = sphi 0, %s26
      %s27 = sphi 0, %s24
      %s28 = sphi 0, %s27
      %s44 = sphi 0, %s28
      %s50 = sphi 0, %s52
      %s53 = sphi 0, %s50
      %s54 = sphi 0, %s53
      %s70 = sphi 0, %s54
      %s76 = sphi 0, %s78
      %s79 = sphi 0, %s76
      %s80 = sphi 0, %s79
      %s96 = sphi 0, %s80
      %s102 = sphi 0, %s104
      %s105 = sphi 0, %s102
      %s106 = sphi 0, %s105
      %s122 = sphi 0, %s106
      %s128 = sphi 0, %s130
      %s131 = sphi 0, %s128
      %s132 = sphi 0, %s131
      %s148 = sphi 0, %s132
    $region4: #{tpu_custom_call.1} parent=1 // loop_header_branch
      %17 = sbr.rel (%p15) target = $region8
    $region5: #{tpu_custom_call.1} parent=1 // loop_body
      %s19 = ssub.s32 %s14, 1
      %s20 = ssub.s32 %s14, 2
      %s21 = sadd.s32 %s14, 1
      %s22 = ssub.s32 %s14, %s21
      %p23 = scmp.eq.s32.totalorder %s22, 0
      %s25 = sadd.s32 %s24, 1
      %s26 = scalar_select %p23, %s24, %s25
      %p29 = pneg %p23
      %p30 = scmp.eq.s32.totalorder %s14, 1
      %p31 = por %p29, %p30
      %p32 = scmp.ne.s32.totalorder %s24, %s27
      %p33 = scmp.eq.s32.totalorder %s14, 0
      %p34 = por %p32, %p33
      %p35 = scmp.ne.s32.totalorder %s24, %s27
      %p36 = scmp.eq.s32.totalorder %s19, 1
      %p37 = por %p35, %p36
      %p38 = scmp.ne.s32.totalorder %s27, %s28
      %p39 = scmp.eq.s32.totalorder %s19, 0
      %p40 = por %p38, %p39
      %p41 = scmp.ne.s32.totalorder %s27, %s28
      %p42 = scmp.eq.s32.totalorder %s20, 1
      %p43 = por %p41, %p42
      %p45 = scmp.ne.s32.totalorder %s28, %s44
      %p46 = scmp.eq.s32.totalorder %s20, 0
      %p47 = por %p45, %p46
      %s48 = ssub.s32 %s14, %s21
      %p49 = scmp.eq.s32.totalorder %s48, 0
      %s51 = sadd.s32 %s50, 1
      %s52 = scalar_select %p49, %s50, %s51
      %p55 = pneg %p49
      %p56 = scmp.eq.s32.totalorder %s14, 1
      %p57 = por %p55, %p56
      %p58 = scmp.ne.s32.totalorder %s50, %s53
      %p59 = scmp.eq.s32.totalorder %s14, 0
      %p60 = por %p58, %p59
      %p61 = scmp.ne.s32.totalorder %s50, %s53
      %p62 = scmp.eq.s32.totalorder %s19, 1
      %p63 = por %p61, %p62
      %p64 = scmp.ne.s32.totalorder %s53, %s54
      %p65 = scmp.eq.s32.totalorder %s19, 0
      %p66 = por %p64, %p65
      %p67 = scmp.ne.s32.totalorder %s53, %s54
      %p68 = scmp.eq.s32.totalorder %s20, 1
      %p69 = por %p67, %p68
      %p71 = scmp.ne.s32.totalorder %s54, %s70
      %p72 = scmp.eq.s32.totalorder %s20, 0
      %p73 = por %p71, %p72
      %s74 = ssub.s32 %s14, %s21
      %p75 = scmp.eq.s32.totalorder %s74, 0
      %s77 = sadd.s32 %s76, 1
      %s78 = scalar_select %p75, %s76, %s77
      %p81 = pneg %p75
      %p82 = scmp.eq.s32.totalorder %s14, 1
      %p83 = por %p81, %p82
      %p84 = scmp.ne.s32.totalorder %s76, %s79
      %p85 = scmp.eq.s32.totalorder %s14, 0
      %p86 = por %p84, %p85
      %p87 = scmp.ne.s32.totalorder %s76, %s79
      %p88 = scmp.eq.s32.totalorder %s19, 1
      %p89 = por %p87, %p88
      %p90 = scmp.ne.s32.totalorder %s79, %s80
      %p91 = scmp.eq.s32.totalorder %s19, 0
      %p92 = por %p90, %p91
      %p93 = scmp.ne.s32.totalorder %s79, %s80
      %p94 = scmp.eq.s32.totalorder %s20, 1
      %p95 = por %p93, %p94
      %p97 = scmp.ne.s32.totalorder %s80, %s96
      %p98 = scmp.eq.s32.totalorder %s20, 0
      %p99 = por %p97, %p98
      %s100 = ssub.s32 %s14, %s21
      %p101 = scmp.eq.s32.totalorder %s100, 0
      %s103 = sadd.s32 %s102, 1
      %s104 = scalar_select %p101, %s102, %s103
      %p107 = pneg %p101
      %p108 = scmp.eq.s32.totalorder %s14, 1
      %p109 = por %p107, %p108
      %p110 = scmp.ne.s32.totalorder %s102, %s105
      %p111 = scmp.eq.s32.totalorder %s14, 0
      %p112 = por %p110, %p111
      %p113 = scmp.ne.s32.totalorder %s102, %s105
      %p114 = scmp.eq.s32.totalorder %s19, 1
      %p115 = por %p113, %p114
      %p116 = scmp.ne.s32.totalorder %s105, %s106
      %p117 = scmp.eq.s32.totalorder %s19, 0
      %p118 = por %p116, %p117
      %p119 = scmp.ne.s32.totalorder %s105, %s106
      %p120 = scmp.eq.s32.totalorder %s20, 1
      %p121 = por %p119, %p120
      %p123 = scmp.ne.s32.totalorder %s106, %s122
      %p124 = scmp.eq.s32.totalorder %s20, 0
      %p125 = por %p123, %p124
      %s126 = ssub.s32 %s14, %s21
      %p127 = scmp.eq.s32.totalorder %s126, 0
      %s129 = sadd.s32 %s128, 1
      %s130 = scalar_select %p127, %s128, %s129
      %p133 = pneg %p127
      %p134 = scmp.eq.s32.totalorder %s14, 1
      %p135 = por %p133, %p134
      %p136 = scmp.ne.s32.totalorder %s128, %s131
      %p137 = scmp.eq.s32.totalorder %s14, 0
      %p138 = por %p136, %p137
      %p139 = scmp.ne.s32.totalorder %s128, %s131
      %p140 = scmp.eq.s32.totalorder %s19, 1
      %p141 = por %p139, %p140
      %p142 = scmp.ne.s32.totalorder %s131, %s132
      %p143 = scmp.eq.s32.totalorder %s19, 0
      %p144 = por %p142, %p143
      %p145 = scmp.ne.s32.totalorder %s131, %s132
      %p146 = scmp.eq.s32.totalorder %s20, 1
      %p147 = por %p145, %p146
      %p149 = scmp.ne.s32.totalorder %s132, %s148
      %p150 = scmp.eq.s32.totalorder %s20, 0
      %p151 = por %p149, %p150
      %p152 = scmp.le.s32.totalorder 1, %s14
      %p153 = scmp.lt.s32.totalorder %s14, 3
      %p154 = pnand %p152, %p153
      %p155 = pneg %p154
      // Predicated region
      $region9: #{tpu_custom_call.1} parent=5 // pred_check
        _
      $region10: #{tpu_custom_call.1} parent=5 // pred_check_branch
        %157 = sbr.rel (%p154) target = $region12
      $region11: #{tpu_custom_call.1} parent=5 // pred_region
        %s158 = ssub.s32 %s14, 1
      $region12: #{tpu_custom_call.1} parent=5 // pred_fallthru
        _
      %p159 = scmp.lt.s32.totalorder %s14, 2
      // Predicated region
      $region13: #{tpu_custom_call.1} parent=5 // pred_check
        %p160 = pneg %p159
      $region14: #{tpu_custom_call.1} parent=5 // pred_check_branch
        %162 = sbr.rel (%p160) target = $region16
      $region15: #{tpu_custom_call.1} parent=5 // pred_region
        // Predicated region
        $region17: #{tpu_custom_call.1} parent=15 // pred_check
          %p163 = pneg %p34
        $region18: #{tpu_custom_call.1} parent=15 // pred_check_branch
          %165 = sbr.rel (%p163) target = $region20
        $region19: #{tpu_custom_call.1} parent=15 // pred_region
          %s166 = smul.u32 10, %s14
          %p167 = scmp.lt.s32.totalorder %s166, 19
          %s168 = scalar_select %p167, %s166, 19
          %s169 = smul.addr %s168, 2
          %s170 = smul.addr %s169, 4
          %s171 = scalar_lea.vmem %s0, %s170
          %s172 = smul.u32 10, %s14
        $region20: #{tpu_custom_call.1} parent=15 // pred_fallthru
          _
        // Predicated region
        $region21: #{tpu_custom_call.1} parent=15 // pred_check
          %p173 = pneg %p60
        $region22: #{tpu_custom_call.1} parent=15 // pred_check_branch
          %175 = sbr.rel (%p173) target = $region24
        $region23: #{tpu_custom_call.1} parent=15 // pred_region
          %s176 = smul.u32 10, %s14
          %p177 = scmp.lt.s32.totalorder %s176, 19
          %s178 = scalar_select %p177, %s176, 19
          %s179 = smul.addr %s178, 2
          %s180 = smul.addr %s179, 8
          %s181 = scalar_lea.vmem %s1, %s180
          %s182 = smul.u32 10, %s14
        $region24: #{tpu_custom_call.1} parent=15 // pred_fallthru
          _
        // Predicated region
        $region25: #{tpu_custom_call.1} parent=15 // pred_check
          %p183 = pneg %p86
        $region26: #{tpu_custom_call.1} parent=15 // pred_check_branch
          %185 = sbr.rel (%p183) target = $region28
        $region27: #{tpu_custom_call.1} parent=15 // pred_region
          %s186 = smul.u32 10, %s14
          %p187 = scmp.lt.s32.totalorder %s186, 19
          %s188 = scalar_select %p187, %s186, 19
          %s189 = smul.addr %s188, 8
          %s190 = scalar_lea.vmem %s2, %s189
          %s191 = smul.u32 10, %s14
        $region28: #{tpu_custom_call.1} parent=15 // pred_fallthru
          _
      $region16: #{tpu_custom_call.1} parent=5 // pred_fallthru
        _
      %p192 = scmp.le.s32.totalorder 1, %s14
      %p193 = scmp.lt.s32.totalorder %s14, 3
      %p194 = pnand %p192, %p193
      %p195 = pneg %p194
      // Predicated region
      $region29: #{tpu_custom_call.1} parent=5 // pred_check
        _
      $region30: #{tpu_custom_call.1} parent=5 // pred_check_branch
        %197 = sbr.rel (%p194) target = $region32
      $region31: #{tpu_custom_call.1} parent=5 // pred_region
        %s198 = ssub.s32 %s14, 1
        %s199 = smul.u32 10, %s19
        %p200 = scmp.lt.s32.totalorder %s199, 19
        %s201 = scalar_select %p200, %s199, 19
        %s202 = smul.addr %s201, 2
        %s203 = smul.addr %s202, 4
        %s204 = scalar_lea.vmem %s0, %s203
        %p205 = pneg %p40
        %p206 = pneg %p37
        %s207 = smul.u32 10, %s19
        %p208 = scmp.lt.s32.totalorder %s207, 19
        %s209 = scalar_select %p208, %s207, 19
        %s210 = smul.addr %s209, 2
        %s211 = smul.addr %s210, 8
        %s212 = scalar_lea.vmem %s1, %s211
        %p213 = pneg %p66
        %p214 = pneg %p63
        %s215 = smul.u32 10, %s19
        %p216 = scmp.lt.s32.totalorder %s215, 19
        %s217 = scalar_select %p216, %s215, 19
        %s218 = smul.addr %s217, 8
        %s219 = scalar_lea.vmem %s2, %s218
        %p220 = pneg %p92
        %p221 = pneg %p89
        %p222 = pneg %p118
        %p223 = pneg %p115
        %s224 = smul.u32 10, %s19
        %p225 = scmp.lt.s32.totalorder %s224, 19
        %s226 = scalar_select %p225, %s224, 19
        %s227 = smul.addr %s226, 2
        %s228 = smul.addr %s227, 4
        %s229 = scalar_lea.vmem %s3, %s228
        %p230 = pneg %p144
        %p231 = pneg %p141
        %s232 = sand.u32 %s131, 1
        %s233 = scalar_lea.sflag [#allocation3], %s232
        %s234 = sand.u32 %s131, 1
        %s235 = smul.addr %s234, 80
        %s236 = scalar_lea.vmem [#allocation2], %s235
        %s237 = smul.u32 10, %s19
        %p238 = scmp.lt.s32.totalorder %s237, 19
        %s239 = scalar_select %p238, %s237, 19
        %s240 = smul.addr %s239, 2
        %s241 = smul.addr %s240, 4
        %s242 = scalar_lea.vmem %s0, %s241
        %s243 = smul.u32 10, %s19
        %s244 = smul.u32 10, %s19
        %p245 = scmp.lt.s32.totalorder %s244, 19
        %s246 = scalar_select %p245, %s244, 19
        %s247 = smul.addr %s246, 2
        %s248 = smul.addr %s247, 8
        %s249 = scalar_lea.vmem %s1, %s248
        %s250 = smul.u32 10, %s19
        %s251 = smul.u32 10, %s19
        %p252 = scmp.lt.s32.totalorder %s251, 19
        %s253 = scalar_select %p252, %s251, 19
        %s254 = smul.addr %s253, 8
        %s255 = scalar_lea.vmem %s2, %s254
        %s256 = smul.u32 10, %s19
        %s257 = smul.u32 10, %s19
        %p258 = scmp.lt.s32.totalorder %s257, 19
        %s259 = scalar_select %p258, %s257, 19
        %s260 = smul.addr %s259, 2
        %s261 = smul.addr %s260, 4
        %s262 = scalar_lea.vmem %s3, %s261
        %s263 = smul.u32 10, %s19
        %s264 = smul.u32 10, %s19
        %v266 = vld [vmem:[%s242] sm:$0xf]
        %v267 = vld [vmem:[%s242 + $0x4] sm:$0xf]
        %v268 = vld [vmem:[%s242 + $0x8] sm:$0xf]
        %v269 = vld [vmem:[%s242 + $0xc] sm:$0xf]
        %v270 = vld [vmem:[%s242 + $0x10] sm:$0xf]
        %v271 = vld [vmem:[%s242 + $0x14] sm:$0xf]
        %v272 = vld [vmem:[%s242 + $0x18] sm:$0xf]
        %v273 = vld [vmem:[%s242 + $0x1c] sm:$0xf]
        %v274 = vld [vmem:[%s242 + $0x20] sm:$0xf]
        %v275 = vld [vmem:[%s242 + $0x24] sm:$0xf]
        %v276 = vld [vmem:[%s242 + $0x28] sm:$0xf]
        %v277 = vld [vmem:[%s242 + $0x2c] sm:$0xf]
        %v278 = vld [vmem:[%s242 + $0x30] sm:$0xf]
        %v279 = vld [vmem:[%s242 + $0x34] sm:$0xf]
        %v280 = vld [vmem:[%s242 + $0x38] sm:$0xf]
        %v281 = vld [vmem:[%s242 + $0x3c] sm:$0xf]
        %v282 = vld [vmem:[%s242 + $0x40] sm:$0xf]
        %v283 = vld [vmem:[%s242 + $0x44] sm:$0xf]
        %v284 = vld [vmem:[%s242 + $0x48] sm:$0xf]
        %v285 = vld [vmem:[%s242 + $0x4c] sm:$0xf]
        %v286 = vld [vmem:[%s249] sm:$0xff]
        %v287 = vld [vmem:[%s249 + $0x8] sm:$0xff]
        %v288 = vld [vmem:[%s249 + $0x10] sm:$0xff]
        %v289 = vld [vmem:[%s249 + $0x18] sm:$0xff]
        %v290 = vld [vmem:[%s249 + $0x20] sm:$0xff]
        %v291 = vld [vmem:[%s249 + $0x28] sm:$0xff]
        %v292 = vld [vmem:[%s249 + $0x30] sm:$0xff]
        %v293 = vld [vmem:[%s249 + $0x38] sm:$0xff]
        %v294 = vld [vmem:[%s249 + $0x40] sm:$0xff]
        %v295 = vld [vmem:[%s249 + $0x48] sm:$0xff]
        %v296 = vld [vmem:[%s249 + $0x50] sm:$0xff]
        %v297 = vld [vmem:[%s249 + $0x58] sm:$0xff]
        %v298 = vld [vmem:[%s249 + $0x60] sm:$0xff]
        %v299 = vld [vmem:[%s249 + $0x68] sm:$0xff]
        %v300 = vld [vmem:[%s249 + $0x70] sm:$0xff]
        %v301 = vld [vmem:[%s249 + $0x78] sm:$0xff]
        %v302 = vld [vmem:[%s249 + $0x80] sm:$0xff]
        %v303 = vld [vmem:[%s249 + $0x88] sm:$0xff]
        %v304 = vld [vmem:[%s249 + $0x90] sm:$0xff]
        %v305 = vld [vmem:[%s249 + $0x98] sm:$0xff]
        %v306 = vld [vmem:[%s255] sm:$0xff]
        %v307 = vld [vmem:[%s255 + $0x8] sm:$0xff]
        %v308 = vld [vmem:[%s255 + $0x10] sm:$0xff]
        %v309 = vld [vmem:[%s255 + $0x18] sm:$0xff]
        %v310 = vld [vmem:[%s255 + $0x20] sm:$0xff]
        %v311 = vld [vmem:[%s255 + $0x28] sm:$0xff]
        %v312 = vld [vmem:[%s255 + $0x30] sm:$0xff]
        %v313 = vld [vmem:[%s255 + $0x38] sm:$0xff]
        %v314 = vld [vmem:[%s255 + $0x40] sm:$0xff]
        %v315 = vld [vmem:[%s255 + $0x48] sm:$0xff]
        %v318 = vunpack.c.l.b16 %v266
        %v319 = vunpack.c.l.b16 %v267
        %v320 = vpack.c.b16 %v319, %v318
        %vm321 = vcmask 261120
        %v323 = vsel %vm321, %v320, 0
        %325 = vmatprep.subr.bf16.mxu0 0
        %326 = vmatpush1.bf16.xpose.msra.mxu0 %v323
        %327 = vmatprep.subr.bf16.mxu0 0
        %328 = vmatpush1.bf16.xpose.msra.mxu0 0
        %329 = vmatprep.subr.bf16.mxu0 0
        %330 = vmatpush1.bf16.xpose.msra.mxu0 0
        %331 = vmatprep.subr.bf16.mxu0 0
        %332 = vmatpush1.bf16.xpose.msra.mxu0 0
        %333 = vmatprep.subr.bf16.mxu0 0
        %334 = vmatpush1.bf16.xpose.msra.mxu0 0
        %335 = vmatprep.subr.bf16.mxu0 0
        %336 = vmatpush1.bf16.xpose.msra.mxu0 0
        %337 = vmatprep.subr.bf16.mxu0 0
        %338 = vmatpush1.bf16.xpose.msra.mxu0 0
        %339 = vmatprep.subr.bf16.mxu0 0
        %340 = vmatpush1.bf16.xpose.msra.mxu0 0
        %341 = vmatprep.subr.bf16.mxu0 0
        %342 = vmatpush1.bf16.xpose.msra.mxu0 0
        %343 = vmatprep.subr.bf16.mxu0 0
        %344 = vmatpush1.bf16.xpose.msra.mxu0 0
        %345 = vmatprep.subr.bf16.mxu0 0
        %346 = vmatpush1.bf16.xpose.msra.mxu0 0
        %347 = vmatprep.subr.bf16.mxu0 0
        %348 = vmatpush1.bf16.xpose.msra.mxu0 0
        %349 = vmatprep.subr.bf16.mxu0 0
        %350 = vmatpush1.bf16.xpose.msra.mxu0 0
        %351 = vmatprep.subr.bf16.mxu0 0
        %352 = vmatpush1.bf16.xpose.msra.mxu0 0
        %353 = vmatprep.subr.bf16.mxu0 0
        %354 = vmatpush1.bf16.xpose.msra.mxu0 0
        %355 = vmatprep.subr.bf16.mxu0 0
        %356 = vmatpush1.bf16.xpose.msra.mxu0 0
        %357 = vmatprep.mubr.bf16.mxu0 0
        %358 = vmatmul.mubr.bf16.gmra.mrb[0].mxu0 %v323
        %v359 = vpop.f32.mrb[0].mxu0
        %v360 = vadd.f32 0.0, %v359
        %v361 = vpop.f32.mrb[0].mxu0
        %v362 = vpop.f32.mrb[0].mxu0
        %v363 = vadd.f32 0.0, %v362
        %v364 = vpop.f32.mrb[0].mxu0
        %365 = vdwg.mxu0
        %v368 = vunpack.c.l.b16 %v268
        %v369 = vunpack.c.l.b16 %v269
        %v370 = vpack.c.b16 %v369, %v368
        %v372 = vsel %vm321, %v370, 0
        %374 = vmatprep.subr.bf16.mxu0 0
        %375 = vmatpush1.bf16.xpose.msra.mxu0 %v372
        %376 = vmatprep.subr.bf16.mxu0 0
        %377 = vmatpush1.bf16.xpose.msra.mxu0 0
        %378 = vmatprep.subr.bf16.mxu0 0
        %379 = vmatpush1.bf16.xpose.msra.mxu0 0
        %380 = vmatprep.subr.bf16.mxu0 0
        %381 = vmatpush1.bf16.xpose.msra.mxu0 0
        %382 = vmatprep.subr.bf16.mxu0 0
        %383 = vmatpush1.bf16.xpose.msra.mxu0 0
        %384 = vmatprep.subr.bf16.mxu0 0
        %385 = vmatpush1.bf16.xpose.msra.mxu0 0
        %386 = vmatprep.subr.bf16.mxu0 0
        %387 = vmatpush1.bf16.xpose.msra.mxu0 0
        %388 = vmatprep.subr.bf16.mxu0 0
        %389 = vmatpush1.bf16.xpose.msra.mxu0 0
        %390 = vmatprep.subr.bf16.mxu0 0
        %391 = vmatpush1.bf16.xpose.msra.mxu0 0
        %392 = vmatprep.subr.bf16.mxu0 0
        %393 = vmatpush1.bf16.xpose.msra.mxu0 0
        %394 = vmatprep.subr.bf16.mxu0 0
        %395 = vmatpush1.bf16.xpose.msra.mxu0 0
        %396 = vmatprep.subr.bf16.mxu0 0
        %397 = vmatpush1.bf16.xpose.msra.mxu0 0
        %398 = vmatprep.subr.bf16.mxu0 0
        %399 = vmatpush1.bf16.xpose.msra.mxu0 0
        %400 = vmatprep.subr.bf16.mxu0 0
        %401 = vmatpush1.bf16.xpose.msra.mxu0 0
        %402 = vmatprep.subr.bf16.mxu0 0
        %403 = vmatpush1.bf16.xpose.msra.mxu0 0
        %404 = vmatprep.subr.bf16.mxu0 0
        %405 = vmatpush1.bf16.xpose.msra.mxu0 0
        %406 = vmatprep.mubr.bf16.mxu0 0
        %407 = vmatmul.mubr.bf16.gmra.mrb[0].mxu0 %v372
        %v408 = vpop.f32.mrb[0].mxu0
        %v409 = vadd.f32 0.0, %v408
        %v410 = vpop.f32.mrb[0].mxu0
        %v411 = vpop.f32.mrb[0].mxu0
        %v412 = vadd.f32 0.0, %v411
        %v413 = vpop.f32.mrb[0].mxu0
        %414 = vdwg.mxu0
        %v417 = vunpack.c.l.b16 %v270
        %v418 = vunpack.c.l.b16 %v271
        %v419 = vpack.c.b16 %v418, %v417
        %v421 = vsel %vm321, %v419, 0
        %423 = vmatprep.subr.bf16.mxu0 0
        %424 = vmatpush1.bf16.xpose.msra.mxu0 %v421
        %425 = vmatprep.subr.bf16.mxu0 0
        %426 = vmatpush1.bf16.xpose.msra.mxu0 0
        %427 = vmatprep.subr.bf16.mxu0 0
        %428 = vmatpush1.bf16.xpose.msra.mxu0 0
        %429 = vmatprep.subr.bf16.mxu0 0
        %430 = vmatpush1.bf16.xpose.msra.mxu0 0
        %431 = vmatprep.subr.bf16.mxu0 0
        %432 = vmatpush1.bf16.xpose.msra.mxu0 0
        %433 = vmatprep.subr.bf16.mxu0 0
        %434 = vmatpush1.bf16.xpose.msra.mxu0 0
        %435 = vmatprep.subr.bf16.mxu0 0
        %436 = vmatpush1.bf16.xpose.msra.mxu0 0
        %437 = vmatprep.subr.bf16.mxu0 0
        %438 = vmatpush1.bf16.xpose.msra.mxu0 0
        %439 = vmatprep.subr.bf16.mxu0 0
        %440 = vmatpush1.bf16.xpose.msra.mxu0 0
        %441 = vmatprep.subr.bf16.mxu0 0
        %442 = vmatpush1.bf16.xpose.msra.mxu0 0
        %443 = vmatprep.subr.bf16.mxu0 0
        %444 = vmatpush1.bf16.xpose.msra.mxu0 0
        %445 = vmatprep.subr.bf16.mxu0 0
        %446 = vmatpush1.bf16.xpose.msra.mxu0 0
        %447 = vmatprep.subr.bf16.mxu0 0
        %448 = vmatpush1.bf16.xpose.msra.mxu0 0
        %449 = vmatprep.subr.bf16.mxu0 0
        %450 = vmatpush1.bf16.xpose.msra.mxu0 0
        %451 = vmatprep.subr.bf16.mxu0 0
        %452 = vmatpush1.bf16.xpose.msra.mxu0 0
        %453 = vmatprep.subr.bf16.mxu0 0
        %454 = vmatpush1.bf16.xpose.msra.mxu0 0
        %455 = vmatprep.mubr.bf16.mxu0 0
        %456 = vmatmul.mubr.bf16.gmra.mrb[0].mxu0 %v421
        %v457 = vpop.f32.mrb[0].mxu0
        %v458 = vadd.f32 0.0, %v457
        %v459 = vpop.f32.mrb[0].mxu0
        %v460 = vpop.f32.mrb[0].mxu0
        %v461 = vadd.f32 0.0, %v460
        %v462 = vpop.f32.mrb[0].mxu0
        %463 = vdwg.mxu0
        %v466 = vunpack.c.l.b16 %v272
        %v467 = vunpack.c.l.b16 %v273
        %v468 = vpack.c.b16 %v467, %v466
        %v470 = vsel %vm321, %v468, 0
        %472 = vmatprep.subr.bf16.mxu0 0
        %473 = vmatpush1.bf16.xpose.msra.mxu0 %v470
        %474 = vmatprep.subr.bf16.mxu0 0
        %475 = vmatpush1.bf16.xpose.msra.mxu0 0
        %476 = vmatprep.subr.bf16.mxu0 0
        %477 = vmatpush1.bf16.xpose.msra.mxu0 0
        %478 = vmatprep.subr.bf16.mxu0 0
        %479 = vmatpush1.bf16.xpose.msra.mxu0 0
        %480 = vmatprep.subr.bf16.mxu0 0
        %481 = vmatpush1.bf16.xpose.msra.mxu0 0
        %482 = vmatprep.subr.bf16.mxu0 0
        %483 = vmatpush1.bf16.xpose.msra.mxu0 0
        %484 = vmatprep.subr.bf16.mxu0 0
        %485 = vmatpush1.bf16.xpose.msra.mxu0 0
        %486 = vmatprep.subr.bf16.mxu0 0
        %487 = vmatpush1.bf16.xpose.msra.mxu0 0
        %488 = vmatprep.subr.bf16.mxu0 0
        %489 = vmatpush1.bf16.xpose.msra.mxu0 0
        %490 = vmatprep.subr.bf16.mxu0 0
        %491 = vmatpush1.bf16.xpose.msra.mxu0 0
        %492 = vmatprep.subr.bf16.mxu0 0
        %493 = vmatpush1.bf16.xpose.msra.mxu0 0
        %494 = vmatprep.subr.bf16.mxu0 0
        %495 = vmatpush1.bf16.xpose.msra.mxu0 0
        %496 = vmatprep.subr.bf16.mxu0 0
        %497 = vmatpush1.bf16.xpose.msra.mxu0 0
        %498 = vmatprep.subr.bf16.mxu0 0
        %499 = vmatpush1.bf16.xpose.msra.mxu0 0
        %500 = vmatprep.subr.bf16.mxu0 0
        %501 = vmatpush1.bf16.xpose.msra.mxu0 0
        %502 = vmatprep.subr.bf16.mxu0 0
        %503 = vmatpush1.bf16.xpose.msra.mxu0 0
        %504 = vmatprep.mubr.bf16.mxu0 0
        %505 = vmatmul.mubr.bf16.gmra.mrb[0].mxu0 %v470
        %v506 = vpop.f32.mrb[0].mxu0
        %v507 = vadd.f32 0.0, %v506
        %v508 = vpop.f32.mrb[0].mxu0
        %v509 = vpop.f32.mrb[0].mxu0
        %v510 = vadd.f32 0.0, %v509
        %v511 = vpop.f32.mrb[0].mxu0
        %512 = vdwg.mxu0
        %v515 = vunpack.c.l.b16 %v274
        %v516 = vunpack.c.l.b16 %v275
        %v517 = vpack.c.b16 %v516, %v515
        %v519 = vsel %vm321, %v517, 0
        %521 = vmatprep.subr.bf16.mxu0 0
        %522 = vmatpush1.bf16.xpose.msra.mxu0 %v519
        %523 = vmatprep.subr.bf16.mxu0 0
        %524 = vmatpush1.bf16.xpose.msra.mxu0 0
        %525 = vmatprep.subr.bf16.mxu0 0
        %526 = vmatpush1.bf16.xpose.msra.mxu0 0
        %527 = vmatprep.subr.bf16.mxu0 0
        %528 = vmatpush1.bf16.xpose.msra.mxu0 0
        %529 = vmatprep.subr.bf16.mxu0 0
        %530 = vmatpush1.bf16.xpose.msra.mxu0 0
        %531 = vmatprep.subr.bf16.mxu0 0
        %532 = vmatpush1.bf16.xpose.msra.mxu0 0
        %533 = vmatprep.subr.bf16.mxu0 0
        %534 = vmatpush1.bf16.xpose.msra.mxu0 0
        %535 = vmatprep.subr.bf16.mxu0 0
        %536 = vmatpush1.bf16.xpose.msra.mxu0 0
        %537 = vmatprep.subr.bf16.mxu0 0
        %538 = vmatpush1.bf16.xpose.msra.mxu0 0
        %539 = vmatprep.subr.bf16.mxu0 0
        %540 = vmatpush1.bf16.xpose.msra.mxu0 0
        %541 = vmatprep.subr.bf16.mxu0 0
        %542 = vmatpush1.bf16.xpose.msra.mxu0 0
        %543 = vmatprep.subr.bf16.mxu0 0
        %544 = vmatpush1.bf16.xpose.msra.mxu0 0
        %545 = vmatprep.subr.bf16.mxu0 0
        %546 = vmatpush1.bf16.xpose.msra.mxu0 0
        %547 = vmatprep.subr.bf16.mxu0 0
        %548 = vmatpush1.bf16.xpose.msra.mxu0 0
        %549 = vmatprep.subr.bf16.mxu0 0
        %550 = vmatpush1.bf16.xpose.msra.mxu0 0
        %551 = vmatprep.subr.bf16.mxu0 0
        %552 = vmatpush1.bf16.xpose.msra.mxu0 0
        %553 = vmatprep.mubr.bf16.mxu0 0
        %554 = vmatmul.mubr.bf16.gmra.mrb[0].mxu0 %v519
        %v555 = vpop.f32.mrb[0].mxu0
        %v556 = vadd.f32 0.0, %v555
        %v557 = vpop.f32.mrb[0].mxu0
        %v558 = vpop.f32.mrb[0].mxu0
        %v559 = vadd.f32 0.0, %v558
        %v560 = vpop.f32.mrb[0].mxu0
        %561 = vdwg.mxu0
        %v564 = vunpack.c.l.b16 %v276
        %v565 = vunpack.c.l.b16 %v277
        %v566 = vpack.c.b16 %v565, %v564
        %v568 = vsel %vm321, %v566, 0
        %570 = vmatprep.subr.bf16.mxu0 0
        %571 = vmatpush1.bf16.xpose.msra.mxu0 %v568
        %572 = vmatprep.subr.bf16.mxu0 0
        %573 = vmatpush1.bf16.xpose.msra.mxu0 0
        %574 = vmatprep.subr.bf16.mxu0 0
        %575 = vmatpush1.bf16.xpose.msra.mxu0 0
        %576 = vmatprep.subr.bf16.mxu0 0
        %577 = vmatpush1.bf16.xpose.msra.mxu0 0
        %578 = vmatprep.subr.bf16.mxu0 0
        %579 = vmatpush1.bf16.xpose.msra.mxu0 0
        %580 = vmatprep.subr.bf16.mxu0 0
        %581 = vmatpush1.bf16.xpose.msra.mxu0 0
        %582 = vmatprep.subr.bf16.mxu0 0
        %583 = vmatpush1.bf16.xpose.msra.mxu0 0
        %584 = vmatprep.subr.bf16.mxu0 0
        %585 = vmatpush1.bf16.xpose.msra.mxu0 0
        %586 = vmatprep.subr.bf16.mxu0 0
        %587 = vmatpush1.bf16.xpose.msra.mxu0 0
        %588 = vmatprep.subr.bf16.mxu0 0
        %589 = vmatpush1.bf16.xpose.msra.mxu0 0
        %590 = vmatprep.subr.bf16.mxu0 0
        %591 = vmatpush1.bf16.xpose.msra.mxu0 0
        %592 = vmatprep.subr.bf16.mxu0 0
        %593 = vmatpush1.bf16.xpose.msra.mxu0 0
        %594 = vmatprep.subr.bf16.mxu0 0
        %595 = vmatpush1.bf16.xpose.msra.mxu0 0
        %596 = vmatprep.subr.bf16.mxu0 0
        %597 = vmatpush1.bf16.xpose.msra.mxu0 0
        %598 = vmatprep.subr.bf16.mxu0 0
        %599 = vmatpush1.bf16.xpose.msra.mxu0 0
        %600 = vmatprep.subr.bf16.mxu0 0
        %601 = vmatpush1.bf16.xpose.msra.mxu0 0
        %602 = vmatprep.mubr.bf16.mxu0 0
        %603 = vmatmul.mubr.bf16.gmra.mrb[0].mxu0 %v568
        %v604 = vpop.f32.mrb[0].mxu0
        %v605 = vadd.f32 0.0, %v604
        %v606 = vpop.f32.mrb[0].mxu0
        %v607 = vpop.f32.mrb[0].mxu0
        %v608 = vadd.f32 0.0, %v607
        %v609 = vpop.f32.mrb[0].mxu0
        %610 = vdwg.mxu0
        %v613 = vunpack.c.l.b16 %v278
        %v614 = vunpack.c.l.b16 %v279
        %v615 = vpack.c.b16 %v614, %v613
        %v617 = vsel %vm321, %v615, 0
        %619 = vmatprep.subr.bf16.mxu0 0
        %620 = vmatpush1.bf16.xpose.msra.mxu0 %v617
        %621 = vmatprep.subr.bf16.mxu0 0
        %622 = vmatpush1.bf16.xpose.msra.mxu0 0
        %623 = vmatprep.subr.bf16.mxu0 0
        %624 = vmatpush1.bf16.xpose.msra.mxu0 0
        %625 = vmatprep.subr.bf16.mxu0 0
        %626 = vmatpush1.bf16.xpose.msra.mxu0 0
        %627 = vmatprep.subr.bf16.mxu0 0
        %628 = vmatpush1.bf16.xpose.msra.mxu0 0
        %629 = vmatprep.subr.bf16.mxu0 0
        %630 = vmatpush1.bf16.xpose.msra.mxu0 0
        %631 = vmatprep.subr.bf16.mxu0 0
        %632 = vmatpush1.bf16.xpose.msra.mxu0 0
        %633 = vmatprep.subr.bf16.mxu0 0
        %634 = vmatpush1.bf16.xpose.msra.mxu0 0
        %635 = vmatprep.subr.bf16.mxu0 0
        %636 = vmatpush1.bf16.xpose.msra.mxu0 0
        %637 = vmatprep.subr.bf16.mxu0 0
        %638 = vmatpush1.bf16.xpose.msra.mxu0 0
        %639 = vmatprep.subr.bf16.mxu0 0
        %640 = vmatpush1.bf16.xpose.msra.mxu0 0
        %641 = vmatprep.subr.bf16.mxu0 0
        %642 = vmatpush1.bf16.xpose.msra.mxu0 0
        %643 = vmatprep.subr.bf16.mxu0 0
        %644 = vmatpush1.bf16.xpose.msra.mxu0 0
        %645 = vmatprep.subr.bf16.mxu0 0
        %646 = vmatpush1.bf16.xpose.msra.mxu0 0
        %647 = vmatprep.subr.bf16.mxu0 0
        %648 = vmatpush1.bf16.xpose.msra.mxu0 0
        %649 = vmatprep.subr.bf16.mxu0 0
        %650 = vmatpush1.bf16.xpose.msra.mxu0 0
        %651 = vmatprep.mubr.bf16.mxu0 0
        %652 = vmatmul.mubr.bf16.gmra.mrb[0].mxu0 %v617
        %v653 = vpop.f32.mrb[0].mxu0
        %v654 = vadd.f32 0.0, %v653
        %v655 = vpop.f32.mrb[0].mxu0
        %v656 = vpop.f32.mrb[0].mxu0
        %v657 = vadd.f32 0.0, %v656
        %v658 = vpop.f32.mrb[0].mxu0
        %659 = vdwg.mxu0
        %v662 = vunpack.c.l.b16 %v280
        %v663 = vunpack.c.l.b16 %v281
        %v664 = vpack.c.b16 %v663, %v662
        %v666 = vsel %vm321, %v664, 0
        %668 = vmatprep.subr.bf16.mxu0 0
        %669 = vmatpush1.bf16.xpose.msra.mxu0 %v666
        %670 = vmatprep.subr.bf16.mxu0 0
        %671 = vmatpush1.bf16.xpose.msra.mxu0 0
        %672 = vmatprep.subr.bf16.mxu0 0
        %673 = vmatpush1.bf16.xpose.msra.mxu0 0
        %674 = vmatprep.subr.bf16.mxu0 0
        %675 = vmatpush1.bf16.xpose.msra.mxu0 0
        %676 = vmatprep.subr.bf16.mxu0 0
        %677 = vmatpush1.bf16.xpose.msra.mxu0 0
        %678 = vmatprep.subr.bf16.mxu0 0
        %679 = vmatpush1.bf16.xpose.msra.mxu0 0
        %680 = vmatprep.subr.bf16.mxu0 0
        %681 = vmatpush1.bf16.xpose.msra.mxu0 0
        %682 = vmatprep.subr.bf16.mxu0 0
        %683 = vmatpush1.bf16.xpose.msra.mxu0 0
        %684 = vmatprep.subr.bf16.mxu0 0
        %685 = vmatpush1.bf16.xpose.msra.mxu0 0
        %686 = vmatprep.subr.bf16.mxu0 0
        %687 = vmatpush1.bf16.xpose.msra.mxu0 0
        %688 = vmatprep.subr.bf16.mxu0 0
        %689 = vmatpush1.bf16.xpose.msra.mxu0 0
        %690 = vmatprep.subr.bf16.mxu0 0
        %691 = vmatpush1.bf16.xpose.msra.mxu0 0
        %692 = vmatprep.subr.bf16.mxu0 0
        %693 = vmatpush1.bf16.xpose.msra.mxu0 0
        %694 = vmatprep.subr.bf16.mxu0 0
        %695 = vmatpush1.bf16.xpose.msra.mxu0 0
        %696 = vmatprep.subr.bf16.mxu0 0
        %697 = vmatpush1.bf16.xpose.msra.mxu0 0
        %698 = vmatprep.subr.bf16.mxu0 0
        %699 = vmatpush1.bf16.xpose.msra.mxu0 0
        %700 = vmatprep.mubr.bf16.mxu0 0
        %701 = vmatmul.mubr.bf16.gmra.mrb[0].mxu0 %v666
        %v702 = vpop.f32.mrb[0].mxu0
        %v703 = vadd.f32 0.0, %v702
        %v704 = vpop.f32.mrb[0].mxu0
        %v705 = vpop.f32.mrb[0].mxu0
        %v706 = vadd.f32 0.0, %v705
        %v707 = vpop.f32.mrb[0].mxu0
        %708 = vdwg.mxu0
        %v711 = vunpack.c.l.b16 %v282
        %v712 = vunpack.c.l.b16 %v283
        %v713 = vpack.c.b16 %v712, %v711
        %v715 = vsel %vm321, %v713, 0
        %717 = vmatprep.subr.bf16.mxu0 0
        %718 = vmatpush1.bf16.xpose.msra.mxu0 %v715
        %719 = vmatprep.subr.bf16.mxu0 0
        %720 = vmatpush1.bf16.xpose.msra.mxu0 0
        %721 = vmatprep.subr.bf16.mxu0 0
        %722 = vmatpush1.bf16.xpose.msra.mxu0 0
        %723 = vmatprep.subr.bf16.mxu0 0
        %724 = vmatpush1.bf16.xpose.msra.mxu0 0
        %725 = vmatprep.subr.bf16.mxu0 0
        %726 = vmatpush1.bf16.xpose.msra.mxu0 0
        %727 = vmatprep.subr.bf16.mxu0 0
        %728 = vmatpush1.bf16.xpose.msra.mxu0 0
        %729 = vmatprep.subr.bf16.mxu0 0
        %730 = vmatpush1.bf16.xpose.msra.mxu0 0
        %731 = vmatprep.subr.bf16.mxu0 0
        %732 = vmatpush1.bf16.xpose.msra.mxu0 0
        %733 = vmatprep.subr.bf16.mxu0 0
        %734 = vmatpush1.bf16.xpose.msra.mxu0 0
        %735 = vmatprep.subr.bf16.mxu0 0
        %736 = vmatpush1.bf16.xpose.msra.mxu0 0
        %737 = vmatprep.subr.bf16.mxu0 0
        %738 = vmatpush1.bf16.xpose.msra.mxu0 0
        %739 = vmatprep.subr.bf16.mxu0 0
        %740 = vmatpush1.bf16.xpose.msra.mxu0 0
        %741 = vmatprep.subr.bf16.mxu0 0
        %742 = vmatpush1.bf16.xpose.msra.mxu0 0
        %743 = vmatprep.subr.bf16.mxu0 0
        %744 = vmatpush1.bf16.xpose.msra.mxu0 0
        %745 = vmatprep.subr.bf16.mxu0 0
        %746 = vmatpush1.bf16.xpose.msra.mxu0 0
        %747 = vmatprep.subr.bf16.mxu0 0
        %748 = vmatpush1.bf16.xpose.msra.mxu0 0
        %749 = vmatprep.mubr.bf16.mxu0 0
        %750 = vmatmul.mubr.bf16.gmra.mrb[0].mxu0 %v715
        %v751 = vpop.f32.mrb[0].mxu0
        %v752 = vadd.f32 0.0, %v751
        %v753 = vpop.f32.mrb[0].mxu0
        %v754 = vpop.f32.mrb[0].mxu0
        %v755 = vadd.f32 0.0, %v754
        %v756 = vpop.f32.mrb[0].mxu0
        %757 = vdwg.mxu0
        %v760 = vunpack.c.l.b16 %v284
        %v761 = vunpack.c.l.b16 %v285
        %v762 = vpack.c.b16 %v761, %v760
        %v764 = vsel %vm321, %v762, 0
        %766 = vmatprep.subr.bf16.mxu0 0
        %767 = vmatpush1.bf16.xpose.msra.mxu0 %v764
        %768 = vmatprep.subr.bf16.mxu0 0
        %769 = vmatpush1.bf16.xpose.msra.mxu0 0
        %770 = vmatprep.subr.bf16.mxu0 0
        %771 = vmatpush1.bf16.xpose.msra.mxu0 0
        %772 = vmatprep.subr.bf16.mxu0 0
        %773 = vmatpush1.bf16.xpose.msra.mxu0 0
        %774 = vmatprep.subr.bf16.mxu0 0
        %775 = vmatpush1.bf16.xpose.msra.mxu0 0
        %776 = vmatprep.subr.bf16.mxu0 0
        %777 = vmatpush1.bf16.xpose.msra.mxu0 0
        %778 = vmatprep.subr.bf16.mxu0 0
        %779 = vmatpush1.bf16.xpose.msra.mxu0 0
        %780 = vmatprep.subr.bf16.mxu0 0
        %781 = vmatpush1.bf16.xpose.msra.mxu0 0
        %782 = vmatprep.subr.bf16.mxu0 0
        %783 = vmatpush1.bf16.xpose.msra.mxu0 0
        %784 = vmatprep.subr.bf16.mxu0 0
        %785 = vmatpush1.bf16.xpose.msra.mxu0 0
        %786 = vmatprep.subr.bf16.mxu0 0
        %787 = vmatpush1.bf16.xpose.msra.mxu0 0
        %788 = vmatprep.subr.bf16.mxu0 0
        %789 = vmatpush1.bf16.xpose.msra.mxu0 0
        %790 = vmatprep.subr.bf16.mxu0 0
        %791 = vmatpush1.bf16.xpose.msra.mxu0 0
        %792 = vmatprep.subr.bf16.mxu0 0
        %793 = vmatpush1.bf16.xpose.msra.mxu0 0
        %794 = vmatprep.subr.bf16.mxu0 0
        %795 = vmatpush1.bf16.xpose.msra.mxu0 0
        %796 = vmatprep.subr.bf16.mxu0 0
        %797 = vmatpush1.bf16.xpose.msra.mxu0 0
        %798 = vmatprep.mubr.bf16.mxu0 0
        %799 = vmatmul.mubr.bf16.gmra.mrb[0].mxu0 %v764
        %v800 = vpop.f32.mrb[0].mxu0
        %v801 = vadd.f32 0.0, %v800
        %v802 = vpop.f32.mrb[0].mxu0
        %v803 = vpop.f32.mrb[0].mxu0
        %v804 = vadd.f32 0.0, %v803
        %v805 = vpop.f32.mrb[0].mxu0
        %806 = vdwg.mxu0
        %808 = vset.pattern.permute.xlu0 0
        %809 = vperm.xlu0 %808, %v286
        %v810 = vpop.permute.xlu0 %809
        %813 = vset.pattern.permute.xlu0 0
        %814 = vperm.xlu0 %813, %v287
        %v815 = vpop.permute.xlu0 %814
        %818 = vset.pattern.permute.xlu0 0
        %819 = vperm.xlu0 %818, %v288
        %v820 = vpop.permute.xlu0 %819
        %823 = vset.pattern.permute.xlu0 0
        %824 = vperm.xlu0 %823, %v289
        %v825 = vpop.permute.xlu0 %824
        %828 = vset.pattern.permute.xlu0 0
        %829 = vperm.xlu0 %828, %v290
        %v830 = vpop.permute.xlu0 %829
        %833 = vset.pattern.permute.xlu0 0
        %834 = vperm.xlu0 %833, %v291
        %v835 = vpop.permute.xlu0 %834
        %838 = vset.pattern.permute.xlu0 0
        %839 = vperm.xlu0 %838, %v292
        %v840 = vpop.permute.xlu0 %839
        %843 = vset.pattern.permute.xlu0 0
        %844 = vperm.xlu0 %843, %v293
        %v845 = vpop.permute.xlu0 %844
        %848 = vset.pattern.permute.xlu0 0
        %849 = vperm.xlu0 %848, %v294
        %v850 = vpop.permute.xlu0 %849
        %853 = vset.pattern.permute.xlu0 0
        %854 = vperm.xlu0 %853, %v295
        %v855 = vpop.permute.xlu0 %854
        %858 = vset.pattern.permute.xlu0 0
        %859 = vperm.xlu0 %858, %v296
        %v860 = vpop.permute.xlu0 %859
        %863 = vset.pattern.permute.xlu0 0
        %864 = vperm.xlu0 %863, %v297
        %v865 = vpop.permute.xlu0 %864
        %868 = vset.pattern.permute.xlu0 0
        %869 = vperm.xlu0 %868, %v298
        %v870 = vpop.permute.xlu0 %869
        %873 = vset.pattern.permute.xlu0 0
        %874 = vperm.xlu0 %873, %v299
        %v875 = vpop.permute.xlu0 %874
        %878 = vset.pattern.permute.xlu0 0
        %879 = vperm.xlu0 %878, %v300
        %v880 = vpop.permute.xlu0 %879
        %883 = vset.pattern.permute.xlu0 0
        %884 = vperm.xlu0 %883, %v301
        %v885 = vpop.permute.xlu0 %884
        %888 = vset.pattern.permute.xlu0 0
        %889 = vperm.xlu0 %888, %v302
        %v890 = vpop.permute.xlu0 %889
        %893 = vset.pattern.permute.xlu0 0
        %894 = vperm.xlu0 %893, %v303
        %v895 = vpop.permute.xlu0 %894
        %898 = vset.pattern.permute.xlu0 0
        %899 = vperm.xlu0 %898, %v304
        %v900 = vpop.permute.xlu0 %899
        %903 = vset.pattern.permute.xlu0 0
        %904 = vperm.xlu0 %903, %v305
        %v905 = vpop.permute.xlu0 %904
        %v907 = vlaneseq
        %v908 = vshrl.u32 %v907, 7
        %v909 = vsub.s32 2, %v908
        %v910 = vrot.slane %v306, %v909
        %v911 = vlaneseq
        %v912 = vshrl.u32 %v911, 7
        %v913 = vsub.s32 2, %v912
        %v914 = vrot.slane %v307, %v913
        %v915 = vlaneseq
        %v916 = vshrl.u32 %v915, 7
        %v917 = vsub.s32 2, %v916
        %v918 = vrot.slane %v308, %v917
        %v919 = vlaneseq
        %v920 = vshrl.u32 %v919, 7
        %v921 = vsub.s32 2, %v920
        %v922 = vrot.slane %v309, %v921
        %v923 = vlaneseq
        %v924 = vshrl.u32 %v923, 7
        %v925 = vsub.s32 2, %v924
        %v926 = vrot.slane %v310, %v925
        %v927 = vlaneseq
        %v928 = vshrl.u32 %v927, 7
        %v929 = vsub.s32 2, %v928
        %v930 = vrot.slane %v311, %v929
        %v931 = vlaneseq
        %v932 = vshrl.u32 %v931, 7
        %v933 = vsub.s32 2, %v932
        %v934 = vrot.slane %v312, %v933
        %v935 = vlaneseq
        %v936 = vshrl.u32 %v935, 7
        %v937 = vsub.s32 2, %v936
        %v938 = vrot.slane %v313, %v937
        %v939 = vlaneseq
        %v940 = vshrl.u32 %v939, 7
        %v941 = vsub.s32 2, %v940
        %v942 = vrot.slane %v314, %v941
        %v943 = vlaneseq
        %v944 = vshrl.u32 %v943, 7
        %v945 = vsub.s32 2, %v944
        %v946 = vrot.slane %v315, %v945
        %v947 = vmul.f32 %v810, %v910
        %v948 = vmul.f32 %v815, %v910
        %v949 = vmul.f32 %v820, %v914
        %v950 = vmul.f32 %v825, %v914
        %v951 = vmul.f32 %v830, %v918
        %v952 = vmul.f32 %v835, %v918
        %v953 = vmul.f32 %v840, %v922
        %v954 = vmul.f32 %v845, %v922
        %v955 = vmul.f32 %v850, %v926
        %v956 = vmul.f32 %v855, %v926
        %v957 = vmul.f32 %v860, %v930
        %v958 = vmul.f32 %v865, %v930
        %v959 = vmul.f32 %v870, %v934
        %v960 = vmul.f32 %v875, %v934
        %v961 = vmul.f32 %v880, %v938
        %v962 = vmul.f32 %v885, %v938
        %v963 = vmul.f32 %v890, %v942
        %v964 = vmul.f32 %v895, %v942
        %v965 = vmul.f32 %v900, %v946
        %v966 = vmul.f32 %v905, %v946
        %v967 = vmul.f32 %v360, %v947
        %v968 = vmul.f32 %v363, %v948
        %v969 = vmul.f32 %v409, %v949
        %v970 = vmul.f32 %v412, %v950
        %v971 = vmul.f32 %v458, %v951
        %v972 = vmul.f32 %v461, %v952
        %v973 = vmul.f32 %v507, %v953
        %v974 = vmul.f32 %v510, %v954
        %v975 = vmul.f32 %v556, %v955
        %v976 = vmul.f32 %v559, %v956
        %v977 = vmul.f32 %v605, %v957
        %v978 = vmul.f32 %v608, %v958
        %v979 = vmul.f32 %v654, %v959
        %v980 = vmul.f32 %v657, %v960
        %v981 = vmul.f32 %v703, %v961
        %v982 = vmul.f32 %v706, %v962
        %v983 = vmul.f32 %v752, %v963
        %v984 = vmul.f32 %v755, %v964
        %v985 = vmul.f32 %v801, %v965
        %v986 = vmul.f32 %v804, %v966
        %v987 = vpack.c.bf16 %v968, %v967
        %v988 = vpack.c.bf16 %v970, %v969
        %v989 = vpack.c.bf16 %v972, %v971
        %v990 = vpack.c.bf16 %v974, %v973
        %v991 = vpack.c.bf16 %v976, %v975
        %v992 = vpack.c.bf16 %v978, %v977
        %v993 = vpack.c.bf16 %v980, %v979
        %v994 = vpack.c.bf16 %v982, %v981
        %v995 = vpack.c.bf16 %v984, %v983
        %v996 = vpack.c.bf16 %v986, %v985
        %v1007 = vunpack.c.l.b16 %v987
        %v1008 = vunpack.c.h.b16 %v987
        %v1009 = vunpack.c.l.b16 %v988
        %v1010 = vunpack.c.h.b16 %v988
        %v1011 = vunpack.c.l.b16 %v989
        %v1012 = vunpack.c.h.b16 %v989
        %v1013 = vunpack.c.l.b16 %v990
        %v1014 = vunpack.c.h.b16 %v990
        %v1015 = vunpack.c.l.b16 %v991
        %v1016 = vunpack.c.h.b16 %v991
        %v1017 = vunpack.c.l.b16 %v992
        %v1018 = vunpack.c.h.b16 %v992
        %v1019 = vunpack.c.l.b16 %v993
        %v1020 = vunpack.c.h.b16 %v993
        %v1021 = vunpack.c.l.b16 %v994
        %v1022 = vunpack.c.h.b16 %v994
        %v1023 = vunpack.c.l.b16 %v995
        %v1024 = vunpack.c.h.b16 %v995
        %v1025 = vunpack.c.l.b16 %v996
        %v1026 = vunpack.c.h.b16 %v996
        %v1027 = vpack.c.b16 %v1007, %v1007
        %v1028 = vpack.c.b16 %v1008, %v1008
        %v1029 = vpack.c.b16 %v1009, %v1009
        %v1030 = vpack.c.b16 %v1010, %v1010
        %v1031 = vpack.c.b16 %v1011, %v1011
        %v1032 = vpack.c.b16 %v1012, %v1012
        %v1033 = vpack.c.b16 %v1013, %v1013
        %v1034 = vpack.c.b16 %v1014, %v1014
        %v1035 = vpack.c.b16 %v1015, %v1015
        %v1036 = vpack.c.b16 %v1016, %v1016
        %v1037 = vpack.c.b16 %v1017, %v1017
        %v1038 = vpack.c.b16 %v1018, %v1018
        %v1039 = vpack.c.b16 %v1019, %v1019
        %v1040 = vpack.c.b16 %v1020, %v1020
        %v1041 = vpack.c.b16 %v1021, %v1021
        %v1042 = vpack.c.b16 %v1022, %v1022
        %v1043 = vpack.c.b16 %v1023, %v1023
        %v1044 = vpack.c.b16 %v1024, %v1024
        %v1045 = vpack.c.b16 %v1025, %v1025
        %v1046 = vpack.c.b16 %v1026, %v1026
        %vm1067 = vcmask 125952
        %1068 = vst.msk [vmem:[%s262] sm:$0xf] %vm1067, %v1027
        %1069 = vst.msk [vmem:[%s262 + $0x4] sm:$0xf] %vm1067, %v1028
        %1070 = vst.msk [vmem:[%s262 + $0x8] sm:$0xf] %vm1067, %v1029
        %1071 = vst.msk [vmem:[%s262 + $0xc] sm:$0xf] %vm1067, %v1030
        %1072 = vst.msk [vmem:[%s262 + $0x10] sm:$0xf] %vm1067, %v1031
        %1073 = vst.msk [vmem:[%s262 + $0x14] sm:$0xf] %vm1067, %v1032
        %1074 = vst.msk [vmem:[%s262 + $0x18] sm:$0xf] %vm1067, %v1033
        %1075 = vst.msk [vmem:[%s262 + $0x1c] sm:$0xf] %vm1067, %v1034
        %1076 = vst.msk [vmem:[%s262 + $0x20] sm:$0xf] %vm1067, %v1035
        %1077 = vst.msk [vmem:[%s262 + $0x24] sm:$0xf] %vm1067, %v1036
        %1078 = vst.msk [vmem:[%s262 + $0x28] sm:$0xf] %vm1067, %v1037
        %1079 = vst.msk [vmem:[%s262 + $0x2c] sm:$0xf] %vm1067, %v1038
        %1080 = vst.msk [vmem:[%s262 + $0x30] sm:$0xf] %vm1067, %v1039
        %1081 = vst.msk [vmem:[%s262 + $0x34] sm:$0xf] %vm1067, %v1040
        %1082 = vst.msk [vmem:[%s262 + $0x38] sm:$0xf] %vm1067, %v1041
        %1083 = vst.msk [vmem:[%s262 + $0x3c] sm:$0xf] %vm1067, %v1042
        %1084 = vst.msk [vmem:[%s262 + $0x40] sm:$0xf] %vm1067, %v1043
        %1085 = vst.msk [vmem:[%s262 + $0x44] sm:$0xf] %vm1067, %v1044
        %1086 = vst.msk [vmem:[%s262 + $0x48] sm:$0xf] %vm1067, %v1045
        %1087 = vst.msk [vmem:[%s262 + $0x4c] sm:$0xf] %vm1067, %v1046
        %1088 = vset.pattern.permute.xlu0 1
        %1089 = vperm.xlu0 %1088, %v286
        %v1090 = vpop.permute.xlu0 %1089
        %1092 = vset.pattern.permute.xlu0 1
        %1093 = vperm.xlu0 %1092, %v287
        %v1094 = vpop.permute.xlu0 %1093
        %1096 = vset.pattern.permute.xlu0 1
        %1097 = vperm.xlu0 %1096, %v288
        %v1098 = vpop.permute.xlu0 %1097
        %1100 = vset.pattern.permute.xlu0 1
        %1101 = vperm.xlu0 %1100, %v289
        %v1102 = vpop.permute.xlu0 %1101
        %1104 = vset.pattern.permute.xlu0 1
        %1105 = vperm.xlu0 %1104, %v290
        %v1106 = vpop.permute.xlu0 %1105
        %1108 = vset.pattern.permute.xlu0 1
        %1109 = vperm.xlu0 %1108, %v291
        %v1110 = vpop.permute.xlu0 %1109
        %1112 = vset.pattern.permute.xlu0 1
        %1113 = vperm.xlu0 %1112, %v292
        %v1114 = vpop.permute.xlu0 %1113
        %1116 = vset.pattern.permute.xlu0 1
        %1117 = vperm.xlu0 %1116, %v293
        %v1118 = vpop.permute.xlu0 %1117
        %1120 = vset.pattern.permute.xlu0 1
        %1121 = vperm.xlu0 %1120, %v294
        %v1122 = vpop.permute.xlu0 %1121
        %1124 = vset.pattern.permute.xlu0 1
        %1125 = vperm.xlu0 %1124, %v295
        %v1126 = vpop.permute.xlu0 %1125
        %1128 = vset.pattern.permute.xlu0 1
        %1129 = vperm.xlu0 %1128, %v296
        %v1130 = vpop.permute.xlu0 %1129
        %1132 = vset.pattern.permute.xlu0 1
        %1133 = vperm.xlu0 %1132, %v297
        %v1134 = vpop.permute.xlu0 %1133
        %1136 = vset.pattern.permute.xlu0 1
        %1137 = vperm.xlu0 %1136, %v298
        %v1138 = vpop.permute.xlu0 %1137
        %1140 = vset.pattern.permute.xlu0 1
        %1141 = vperm.xlu0 %1140, %v299
        %v1142 = vpop.permute.xlu0 %1141
        %1144 = vset.pattern.permute.xlu0 1
        %1145 = vperm.xlu0 %1144, %v300
        %v1146 = vpop.permute.xlu0 %1145
        %1148 = vset.pattern.permute.xlu0 1
        %1149 = vperm.xlu0 %1148, %v301
        %v1150 = vpop.permute.xlu0 %1149
        %1152 = vset.pattern.permute.xlu0 1
        %1153 = vperm.xlu0 %1152, %v302
        %v1154 = vpop.permute.xlu0 %1153
        %1156 = vset.pattern.permute.xlu0 1
        %1157 = vperm.xlu0 %1156, %v303
        %v1158 = vpop.permute.xlu0 %1157
        %1160 = vset.pattern.permute.xlu0 1
        %1161 = vperm.xlu0 %1160, %v304
        %v1162 = vpop.permute.xlu0 %1161
        %1164 = vset.pattern.permute.xlu0 1
        %1165 = vperm.xlu0 %1164, %v305
        %v1166 = vpop.permute.xlu0 %1165
        %v1168 = vlaneseq
        %v1169 = vshrl.u32 %v1168, 7
        %v1170 = vsub.s32 5, %v1169
        %v1171 = vrot.slane %v306, %v1170
        %v1172 = vlaneseq
        %v1173 = vshrl.u32 %v1172, 7
        %v1174 = vsub.s32 5, %v1173
        %v1175 = vrot.slane %v307, %v1174
        %v1176 = vlaneseq
        %v1177 = vshrl.u32 %v1176, 7
        %v1178 = vsub.s32 5, %v1177
        %v1179 = vrot.slane %v308, %v1178
        %v1180 = vlaneseq
        %v1181 = vshrl.u32 %v1180, 7
        %v1182 = vsub.s32 5, %v1181
        %v1183 = vrot.slane %v309, %v1182
        %v1184 = vlaneseq
        %v1185 = vshrl.u32 %v1184, 7
        %v1186 = vsub.s32 5, %v1185
        %v1187 = vrot.slane %v310, %v1186
        %v1188 = vlaneseq
        %v1189 = vshrl.u32 %v1188, 7
        %v1190 = vsub.s32 5, %v1189
        %v1191 = vrot.slane %v311, %v1190
        %v1192 = vlaneseq
        %v1193 = vshrl.u32 %v1192, 7
        %v1194 = vsub.s32 5, %v1193
        %v1195 = vrot.slane %v312, %v1194
        %v1196 = vlaneseq
        %v1197 = vshrl.u32 %v1196, 7
        %v1198 = vsub.s32 5, %v1197
        %v1199 = vrot.slane %v313, %v1198
        %v1200 = vlaneseq
        %v1201 = vshrl.u32 %v1200, 7
        %v1202 = vsub.s32 5, %v1201
        %v1203 = vrot.slane %v314, %v1202
        %v1204 = vlaneseq
        %v1205 = vshrl.u32 %v1204, 7
        %v1206 = vsub.s32 5, %v1205
        %v1207 = vrot.slane %v315, %v1206
        %v1208 = vsub.f32 %v1090, %v1171
        %v1209 = vsub.f32 %v1094, %v1171
        %v1210 = vsub.f32 %v1098, %v1175
        %v1211 = vsub.f32 %v1102, %v1175
        %v1212 = vsub.f32 %v1106, %v1179
        %v1213 = vsub.f32 %v1110, %v1179
        %v1214 = vsub.f32 %v1114, %v1183
        %v1215 = vsub.f32 %v1118, %v1183
        %v1216 = vsub.f32 %v1122, %v1187
        %v1217 = vsub.f32 %v1126, %v1187
        %v1218 = vsub.f32 %v1130, %v1191
        %v1219 = vsub.f32 %v1134, %v1191
        %v1220 = vsub.f32 %v1138, %v1195
        %v1221 = vsub.f32 %v1142, %v1195
        %v1222 = vsub.f32 %v1146, %v1199
        %v1223 = vsub.f32 %v1150, %v1199
        %v1224 = vsub.f32 %v1154, %v1203
        %v1225 = vsub.f32 %v1158, %v1203
        %v1226 = vsub.f32 %v1162, %v1207
        %v1227 = vsub.f32 %v1166, %v1207
        %v1228 = vand.u32 2147483647, %v1208
        %v1229 = vand.u32 2147483647, %v1209
        %v1230 = vand.u32 2147483647, %v1210
        %v1231 = vand.u32 2147483647, %v1211
        %v1232 = vand.u32 2147483647, %v1212
        %v1233 = vand.u32 2147483647, %v1213
        %v1234 = vand.u32 2147483647, %v1214
        %v1235 = vand.u32 2147483647, %v1215
        %v1236 = vand.u32 2147483647, %v1216
        %v1237 = vand.u32 2147483647, %v1217
        %v1238 = vand.u32 2147483647, %v1218
        %v1239 = vand.u32 2147483647, %v1219
        %v1240 = vand.u32 2147483647, %v1220
        %v1241 = vand.u32 2147483647, %v1221
        %v1242 = vand.u32 2147483647, %v1222
        %v1243 = vand.u32 2147483647, %v1223
        %v1244 = vand.u32 2147483647, %v1224
        %v1245 = vand.u32 2147483647, %v1225
        %v1246 = vand.u32 2147483647, %v1226
        %v1247 = vand.u32 2147483647, %v1227
        %vm1248 = vcmp.le.f32.partialorder %v1228, 1.0
        %vm1249 = vcmp.le.f32.partialorder %v1229, 1.0
        %vm1250 = vcmp.le.f32.partialorder %v1230, 1.0
        %vm1251 = vcmp.le.f32.partialorder %v1231, 1.0
        %vm1252 = vcmp.le.f32.partialorder %v1232, 1.0
        %vm1253 = vcmp.le.f32.partialorder %v1233, 1.0
        %vm1254 = vcmp.le.f32.partialorder %v1234, 1.0
        %vm1255 = vcmp.le.f32.partialorder %v1235, 1.0
        %vm1256 = vcmp.le.f32.partialorder %v1236, 1.0
        %vm1257 = vcmp.le.f32.partialorder %v1237, 1.0
        %vm1258 = vcmp.le.f32.partialorder %v1238, 1.0
        %vm1259 = vcmp.le.f32.partialorder %v1239, 1.0
        %vm1260 = vcmp.le.f32.partialorder %v1240, 1.0
        %vm1261 = vcmp.le.f32.partialorder %v1241, 1.0
        %vm1262 = vcmp.le.f32.partialorder %v1242, 1.0
        %vm1263 = vcmp.le.f32.partialorder %v1243, 1.0
        %vm1264 = vcmp.le.f32.partialorder %v1244, 1.0
        %vm1265 = vcmp.le.f32.partialorder %v1245, 1.0
        %vm1266 = vcmp.le.f32.partialorder %v1246, 1.0
        %vm1267 = vcmp.le.f32.partialorder %v1247, 1.0
        %v1268 = vsel %vm1248, %v967, 0.0
        %v1269 = vsel %vm1249, %v968, 0.0
        %v1270 = vsel %vm1250, %v969, 0.0
        %v1271 = vsel %vm1251, %v970, 0.0
        %v1272 = vsel %vm1252, %v971, 0.0
        %v1273 = vsel %vm1253, %v972, 0.0
        %v1274 = vsel %vm1254, %v973, 0.0
        %v1275 = vsel %vm1255, %v974, 0.0
        %v1276 = vsel %vm1256, %v975, 0.0
        %v1277 = vsel %vm1257, %v976, 0.0
        %v1278 = vsel %vm1258, %v977, 0.0
        %v1279 = vsel %vm1259, %v978, 0.0
        %v1280 = vsel %vm1260, %v979, 0.0
        %v1281 = vsel %vm1261, %v980, 0.0
        %v1282 = vsel %vm1262, %v981, 0.0
        %v1283 = vsel %vm1263, %v982, 0.0
        %v1284 = vsel %vm1264, %v983, 0.0
        %v1285 = vsel %vm1265, %v984, 0.0
        %v1286 = vsel %vm1266, %v985, 0.0
        %v1287 = vsel %vm1267, %v986, 0.0
        %vm1288 = vcmask 130048
        %v1289 = vsel %vm1288, %v1268, 0.0
        %v1290 = vsel %vm1288, %v1269, 0.0
        %v1291 = vadd.f32 %v1289, %v1290
        %v1292 = vrot.slane %v1291, 4
        %v1293 = vadd.f32 %v1291, %v1292
        %v1294 = vrot.slane %v1293, 2
        %v1295 = vadd.f32 %v1293, %v1294
        %v1296 = vrot.slane %v1295, 1
        %v1297 = vadd.f32 %v1295, %v1296
        %v1298 = vsel %vm1288, %v1270, 0.0
        %v1299 = vsel %vm1288, %v1271, 0.0
        %v1300 = vadd.f32 %v1298, %v1299
        %v1301 = vrot.slane %v1300, 4
        %v1302 = vadd.f32 %v1300, %v1301
        %v1303 = vrot.slane %v1302, 2
        %v1304 = vadd.f32 %v1302, %v1303
        %v1305 = vrot.slane %v1304, 1
        %v1306 = vadd.f32 %v1304, %v1305
        %v1307 = vsel %vm1288, %v1272, 0.0
        %v1308 = vsel %vm1288, %v1273, 0.0
        %v1309 = vadd.f32 %v1307, %v1308
        %v1310 = vrot.slane %v1309, 4
        %v1311 = vadd.f32 %v1309, %v1310
        %v1312 = vrot.slane %v1311, 2
        %v1313 = vadd.f32 %v1311, %v1312
        %v1314 = vrot.slane %v1313, 1
        %v1315 = vadd.f32 %v1313, %v1314
        %v1316 = vsel %vm1288, %v1274, 0.0
        %v1317 = vsel %vm1288, %v1275, 0.0
        %v1318 = vadd.f32 %v1316, %v1317
        %v1319 = vrot.slane %v1318, 4
        %v1320 = vadd.f32 %v1318, %v1319
        %v1321 = vrot.slane %v1320, 2
        %v1322 = vadd.f32 %v1320, %v1321
        %v1323 = vrot.slane %v1322, 1
        %v1324 = vadd.f32 %v1322, %v1323
        %v1325 = vsel %vm1288, %v1276, 0.0
        %v1326 = vsel %vm1288, %v1277, 0.0
        %v1327 = vadd.f32 %v1325, %v1326
        %v1328 = vrot.slane %v1327, 4
        %v1329 = vadd.f32 %v1327, %v1328
        %v1330 = vrot.slane %v1329, 2
        %v1331 = vadd.f32 %v1329, %v1330
        %v1332 = vrot.slane %v1331, 1
        %v1333 = vadd.f32 %v1331, %v1332
        %v1334 = vsel %vm1288, %v1278, 0.0
        %v1335 = vsel %vm1288, %v1279, 0.0
        %v1336 = vadd.f32 %v1334, %v1335
        %v1337 = vrot.slane %v1336, 4
        %v1338 = vadd.f32 %v1336, %v1337
        %v1339 = vrot.slane %v1338, 2
        %v1340 = vadd.f32 %v1338, %v1339
        %v1341 = vrot.slane %v1340, 1
        %v1342 = vadd.f32 %v1340, %v1341
        %v1343 = vsel %vm1288, %v1280, 0.0
        %v1344 = vsel %vm1288, %v1281, 0.0
        %v1345 = vadd.f32 %v1343, %v1344
        %v1346 = vrot.slane %v1345, 4
        %v1347 = vadd.f32 %v1345, %v1346
        %v1348 = vrot.slane %v1347, 2
        %v1349 = vadd.f32 %v1347, %v1348
        %v1350 = vrot.slane %v1349, 1
        %v1351 = vadd.f32 %v1349, %v1350
        %v1352 = vsel %vm1288, %v1282, 0.0
        %v1353 = vsel %vm1288, %v1283, 0.0
        %v1354 = vadd.f32 %v1352, %v1353
        %v1355 = vrot.slane %v1354, 4
        %v1356 = vadd.f32 %v1354, %v1355
        %v1357 = vrot.slane %v1356, 2
        %v1358 = vadd.f32 %v1356, %v1357
        %v1359 = vrot.slane %v1358, 1
        %v1360 = vadd.f32 %v1358, %v1359
        %v1361 = vsel %vm1288, %v1284, 0.0
        %v1362 = vsel %vm1288, %v1285, 0.0
        %v1363 = vadd.f32 %v1361, %v1362
        %v1364 = vrot.slane %v1363, 4
        %v1365 = vadd.f32 %v1363, %v1364
        %v1366 = vrot.slane %v1365, 2
        %v1367 = vadd.f32 %v1365, %v1366
        %v1368 = vrot.slane %v1367, 1
        %v1369 = vadd.f32 %v1367, %v1368
        %v1370 = vsel %vm1288, %v1286, 0.0
        %v1371 = vsel %vm1288, %v1287, 0.0
        %v1372 = vadd.f32 %v1370, %v1371
        %v1373 = vrot.slane %v1372, 4
        %v1374 = vadd.f32 %v1372, %v1373
        %v1375 = vrot.slane %v1374, 2
        %v1376 = vadd.f32 %v1374, %v1375
        %v1377 = vrot.slane %v1376, 1
        %v1378 = vadd.f32 %v1376, %v1377
        %v1380 = vrot.slane %v306, 2
        %v1381 = vsel %vm1288, %v1380, 0
        %v1384 = vsel %vm1288, %v1268, 0
        %v1387 = vsel %vm1288, %v1269, 0
        %1389 = vmatprep.subr.mxu0 0.0
        %1390 = vmatpush1.xpose.msra.mxu0 %v1384
        %1391 = vmatprep.subr.mxu0 0.0
        %1392 = vmatpush1.xpose.msra.mxu0 %v1387
        %1393 = vmatprep.subr.mxu0 0.0
        %1394 = vmatpush1.xpose.msra.mxu0 0.0
        %1395 = vmatprep.subr.mxu0 0.0
        %1396 = vmatpush1.xpose.msra.mxu0 0.0
        %1397 = vmatprep.subr.mxu0 0.0
        %1398 = vmatpush1.xpose.msra.mxu0 0.0
        %1399 = vmatprep.subr.mxu0 0.0
        %1400 = vmatpush1.xpose.msra.mxu0 0.0
        %1401 = vmatprep.subr.mxu0 0.0
        %1402 = vmatpush1.xpose.msra.mxu0 0.0
        %1403 = vmatprep.subr.mxu0 0.0
        %1404 = vmatpush1.xpose.msra.mxu0 0.0
        %1405 = vmatprep.subr.mxu0 0.0
        %1406 = vmatpush1.xpose.msra.mxu0 0.0
        %1407 = vmatprep.subr.mxu0 0.0
        %1408 = vmatpush1.xpose.msra.mxu0 0.0
        %1409 = vmatprep.subr.mxu0 0.0
        %1410 = vmatpush1.xpose.msra.mxu0 0.0
        %1411 = vmatprep.subr.mxu0 0.0
        %1412 = vmatpush1.xpose.msra.mxu0 0.0
        %1413 = vmatprep.subr.mxu0 0.0
        %1414 = vmatpush1.xpose.msra.mxu0 0.0
        %1415 = vmatprep.subr.mxu0 0.0
        %1416 = vmatpush1.xpose.msra.mxu0 0.0
        %1417 = vmatprep.subr.mxu0 0.0
        %1418 = vmatpush1.xpose.msra.mxu0 0.0
        %1419 = vmatprep.subr.mxu0 0.0
        %1420 = vmatpush1.xpose.msra.mxu0 0.0
        %1421 = vmatprep.subr.mxu0 0.0
        %1422 = vmatpush1.xpose.msra.mxu0 0.0
        %1423 = vmatprep.subr.mxu0 0.0
        %1424 = vmatpush1.xpose.msra.mxu0 0.0
        %1425 = vmatprep.subr.mxu0 0.0
        %1426 = vmatpush1.xpose.msra.mxu0 0.0
        %1427 = vmatprep.subr.mxu0 0.0
        %1428 = vmatpush1.xpose.msra.mxu0 0.0
        %1429 = vmatprep.subr.mxu0 0.0
        %1430 = vmatpush1.xpose.msra.mxu0 0.0
        %1431 = vmatprep.subr.mxu0 0.0
        %1432 = vmatpush1.xpose.msra.mxu0 0.0
        %1433 = vmatprep.subr.mxu0 0.0
        %1434 = vmatpush1.xpose.msra.mxu0 0.0
        %1435 = vmatprep.subr.mxu0 0.0
        %1436 = vmatpush1.xpose.msra.mxu0 0.0
        %1437 = vmatprep.subr.mxu0 0.0
        %1438 = vmatpush1.xpose.msra.mxu0 0.0
        %1439 = vmatprep.subr.mxu0 0.0
        %1440 = vmatpush1.xpose.msra.mxu0 0.0
        %1441 = vmatprep.subr.mxu0 0.0
        %1442 = vmatpush1.xpose.msra.mxu0 0.0
        %1443 = vmatprep.subr.mxu0 0.0
        %1444 = vmatpush1.xpose.msra.mxu0 0.0
        %1445 = vmatprep.subr.mxu0 0.0
        %1446 = vmatpush1.xpose.msra.mxu0 0.0
        %1447 = vmatprep.subr.mxu0 0.0
        %1448 = vmatpush1.xpose.msra.mxu0 0.0
        %1449 = vmatprep.subr.mxu0 0.0
        %1450 = vmatpush1.xpose.msra.mxu0 0.0
        %1451 = vmatprep.subr.mxu0 0.0
        %1452 = vmatpush1.xpose.msra.mxu0 0.0
        %1453 = vmatprep.mubr.f32.mxu0 0.0
        %1454 = vmatmul.mubr.f32.gmra.mrb[0].mxu0 %v1381
        %v1455 = vpop.f32.mrb[0].mxu0
        %v1456 = vadd.f32 0.0, %v1455
        %v1457 = vpop.f32.mrb[0].mxu0
        %1458 = vdwg.mxu0
        %v1460 = vrot.slane %v307, 2
        %v1461 = vsel %vm1288, %v1460, 0
        %v1464 = vsel %vm1288, %v1270, 0
        %v1467 = vsel %vm1288, %v1271, 0
        %1469 = vmatprep.subr.mxu0 0.0
        %1470 = vmatpush1.xpose.msra.mxu0 %v1464
        %1471 = vmatprep.subr.mxu0 0.0
        %1472 = vmatpush1.xpose.msra.mxu0 %v1467
        %1473 = vmatprep.subr.mxu0 0.0
        %1474 = vmatpush1.xpose.msra.mxu0 0.0
        %1475 = vmatprep.subr.mxu0 0.0
        %1476 = vmatpush1.xpose.msra.mxu0 0.0
        %1477 = vmatprep.subr.mxu0 0.0
        %1478 = vmatpush1.xpose.msra.mxu0 0.0
        %1479 = vmatprep.subr.mxu0 0.0
        %1480 = vmatpush1.xpose.msra.mxu0 0.0
        %1481 = vmatprep.subr.mxu0 0.0
        %1482 = vmatpush1.xpose.msra.mxu0 0.0
        %1483 = vmatprep.subr.mxu0 0.0
        %1484 = vmatpush1.xpose.msra.mxu0 0.0
        %1485 = vmatprep.subr.mxu0 0.0
        %1486 = vmatpush1.xpose.msra.mxu0 0.0
        %1487 = vmatprep.subr.mxu0 0.0
        %1488 = vmatpush1.xpose.msra.mxu0 0.0
        %1489 = vmatprep.subr.mxu0 0.0
        %1490 = vmatpush1.xpose.msra.mxu0 0.0
        %1491 = vmatprep.subr.mxu0 0.0
        %1492 = vmatpush1.xpose.msra.mxu0 0.0
        %1493 = vmatprep.subr.mxu0 0.0
        %1494 = vmatpush1.xpose.msra.mxu0 0.0
        %1495 = vmatprep.subr.mxu0 0.0
        %1496 = vmatpush1.xpose.msra.mxu0 0.0
        %1497 = vmatprep.subr.mxu0 0.0
        %1498 = vmatpush1.xpose.msra.mxu0 0.0
        %1499 = vmatprep.subr.mxu0 0.0
        %1500 = vmatpush1.xpose.msra.mxu0 0.0
        %1501 = vmatprep.subr.mxu0 0.0
        %1502 = vmatpush1.xpose.msra.mxu0 0.0
        %1503 = vmatprep.subr.mxu0 0.0
        %1504 = vmatpush1.xpose.msra.mxu0 0.0
        %1505 = vmatprep.subr.mxu0 0.0
        %1506 = vmatpush1.xpose.msra.mxu0 0.0
        %1507 = vmatprep.subr.mxu0 0.0
        %1508 = vmatpush1.xpose.msra.mxu0 0.0
        %1509 = vmatprep.subr.mxu0 0.0
        %1510 = vmatpush1.xpose.msra.mxu0 0.0
        %1511 = vmatprep.subr.mxu0 0.0
        %1512 = vmatpush1.xpose.msra.mxu0 0.0
        %1513 = vmatprep.subr.mxu0 0.0
        %1514 = vmatpush1.xpose.msra.mxu0 0.0
        %1515 = vmatprep.subr.mxu0 0.0
        %1516 = vmatpush1.xpose.msra.mxu0 0.0
        %1517 = vmatprep.subr.mxu0 0.0
        %1518 = vmatpush1.xpose.msra.mxu0 0.0
        %1519 = vmatprep.subr.mxu0 0.0
        %1520 = vmatpush1.xpose.msra.mxu0 0.0
        %1521 = vmatprep.subr.mxu0 0.0
        %1522 = vmatpush1.xpose.msra.mxu0 0.0
        %1523 = vmatprep.subr.mxu0 0.0
        %1524 = vmatpush1.xpose.msra.mxu0 0.0
        %1525 = vmatprep.subr.mxu0 0.0
        %1526 = vmatpush1.xpose.msra.mxu0 0.0
        %1527 = vmatprep.subr.mxu0 0.0
        %1528 = vmatpush1.xpose.msra.mxu0 0.0
        %1529 = vmatprep.subr.mxu0 0.0
        %1530 = vmatpush1.xpose.msra.mxu0 0.0
        %1531 = vmatprep.subr.mxu0 0.0
        %1532 = vmatpush1.xpose.msra.mxu0 0.0
        %1533 = vmatprep.mubr.f32.mxu0 0.0
        %1534 = vmatmul.mubr.f32.gmra.mrb[0].mxu0 %v1461
        %v1535 = vpop.f32.mrb[0].mxu0
        %v1536 = vadd.f32 0.0, %v1535
        %v1537 = vpop.f32.mrb[0].mxu0
        %1538 = vdwg.mxu0
        %v1540 = vrot.slane %v308, 2
        %v1541 = vsel %vm1288, %v1540, 0
        %v1544 = vsel %vm1288, %v1272, 0
        %v1547 = vsel %vm1288, %v1273, 0
        %1549 = vmatprep.subr.mxu0 0.0
        %1550 = vmatpush1.xpose.msra.mxu0 %v1544
        %1551 = vmatprep.subr.mxu0 0.0
        %1552 = vmatpush1.xpose.msra.mxu0 %v1547
        %1553 = vmatprep.subr.mxu0 0.0
        %1554 = vmatpush1.xpose.msra.mxu0 0.0
        %1555 = vmatprep.subr.mxu0 0.0
        %1556 = vmatpush1.xpose.msra.mxu0 0.0
        %1557 = vmatprep.subr.mxu0 0.0
        %1558 = vmatpush1.xpose.msra.mxu0 0.0
        %1559 = vmatprep.subr.mxu0 0.0
        %1560 = vmatpush1.xpose.msra.mxu0 0.0
        %1561 = vmatprep.subr.mxu0 0.0
        %1562 = vmatpush1.xpose.msra.mxu0 0.0
        %1563 = vmatprep.subr.mxu0 0.0
        %1564 = vmatpush1.xpose.msra.mxu0 0.0
        %1565 = vmatprep.subr.mxu0 0.0
        %1566 = vmatpush1.xpose.msra.mxu0 0.0
        %1567 = vmatprep.subr.mxu0 0.0
        %1568 = vmatpush1.xpose.msra.mxu0 0.0
        %1569 = vmatprep.subr.mxu0 0.0
        %1570 = vmatpush1.xpose.msra.mxu0 0.0
        %1571 = vmatprep.subr.mxu0 0.0
        %1572 = vmatpush1.xpose.msra.mxu0 0.0
        %1573 = vmatprep.subr.mxu0 0.0
        %1574 = vmatpush1.xpose.msra.mxu0 0.0
        %1575 = vmatprep.subr.mxu0 0.0
        %1576 = vmatpush1.xpose.msra.mxu0 0.0
        %1577 = vmatprep.subr.mxu0 0.0
        %1578 = vmatpush1.xpose.msra.mxu0 0.0
        %1579 = vmatprep.subr.mxu0 0.0
        %1580 = vmatpush1.xpose.msra.mxu0 0.0
        %1581 = vmatprep.subr.mxu0 0.0
        %1582 = vmatpush1.xpose.msra.mxu0 0.0
        %1583 = vmatprep.subr.mxu0 0.0
        %1584 = vmatpush1.xpose.msra.mxu0 0.0
        %1585 = vmatprep.subr.mxu0 0.0
        %1586 = vmatpush1.xpose.msra.mxu0 0.0
        %1587 = vmatprep.subr.mxu0 0.0
        %1588 = vmatpush1.xpose.msra.mxu0 0.0
        %1589 = vmatprep.subr.mxu0 0.0
        %1590 = vmatpush1.xpose.msra.mxu0 0.0
        %1591 = vmatprep.subr.mxu0 0.0
        %1592 = vmatpush1.xpose.msra.mxu0 0.0
        %1593 = vmatprep.subr.mxu0 0.0
        %1594 = vmatpush1.xpose.msra.mxu0 0.0
        %1595 = vmatprep.subr.mxu0 0.0
        %1596 = vmatpush1.xpose.msra.mxu0 0.0
        %1597 = vmatprep.subr.mxu0 0.0
        %1598 = vmatpush1.xpose.msra.mxu0 0.0
        %1599 = vmatprep.subr.mxu0 0.0
        %1600 = vmatpush1.xpose.msra.mxu0 0.0
        %1601 = vmatprep.subr.mxu0 0.0
        %1602 = vmatpush1.xpose.msra.mxu0 0.0
        %1603 = vmatprep.subr.mxu0 0.0
        %1604 = vmatpush1.xpose.msra.mxu0 0.0
        %1605 = vmatprep.subr.mxu0 0.0
        %1606 = vmatpush1.xpose.msra.mxu0 0.0
        %1607 = vmatprep.subr.mxu0 0.0
        %1608 = vmatpush1.xpose.msra.mxu0 0.0
        %1609 = vmatprep.subr.mxu0 0.0
        %1610 = vmatpush1.xpose.msra.mxu0 0.0
        %1611 = vmatprep.subr.mxu0 0.0
        %1612 = vmatpush1.xpose.msra.mxu0 0.0
        %1613 = vmatprep.mubr.f32.mxu0 0.0
        %1614 = vmatmul.mubr.f32.gmra.mrb[0].mxu0 %v1541
        %v1615 = vpop.f32.mrb[0].mxu0
        %v1616 = vadd.f32 0.0, %v1615
        %v1617 = vpop.f32.mrb[0].mxu0
        %1618 = vdwg.mxu0
        %v1620 = vrot.slane %v309, 2
        %v1621 = vsel %vm1288, %v1620, 0
        %v1624 = vsel %vm1288, %v1274, 0
        %v1627 = vsel %vm1288, %v1275, 0
        %1629 = vmatprep.subr.mxu0 0.0
        %1630 = vmatpush1.xpose.msra.mxu0 %v1624
        %1631 = vmatprep.subr.mxu0 0.0
        %1632 = vmatpush1.xpose.msra.mxu0 %v1627
        %1633 = vmatprep.subr.mxu0 0.0
        %1634 = vmatpush1.xpose.msra.mxu0 0.0
        %1635 = vmatprep.subr.mxu0 0.0
        %1636 = vmatpush1.xpose.msra.mxu0 0.0
        %1637 = vmatprep.subr.mxu0 0.0
        %1638 = vmatpush1.xpose.msra.mxu0 0.0
        %1639 = vmatprep.subr.mxu0 0.0
        %1640 = vmatpush1.xpose.msra.mxu0 0.0
        %1641 = vmatprep.subr.mxu0 0.0
        %1642 = vmatpush1.xpose.msra.mxu0 0.0
        %1643 = vmatprep.subr.mxu0 0.0
        %1644 = vmatpush1.xpose.msra.mxu0 0.0
        %1645 = vmatprep.subr.mxu0 0.0
        %1646 = vmatpush1.xpose.msra.mxu0 0.0
        %1647 = vmatprep.subr.mxu0 0.0
        %1648 = vmatpush1.xpose.msra.mxu0 0.0
        %1649 = vmatprep.subr.mxu0 0.0
        %1650 = vmatpush1.xpose.msra.mxu0 0.0
        %1651 = vmatprep.subr.mxu0 0.0
        %1652 = vmatpush1.xpose.msra.mxu0 0.0
        %1653 = vmatprep.subr.mxu0 0.0
        %1654 = vmatpush1.xpose.msra.mxu0 0.0
        %1655 = vmatprep.subr.mxu0 0.0
        %1656 = vmatpush1.xpose.msra.mxu0 0.0
        %1657 = vmatprep.subr.mxu0 0.0
        %1658 = vmatpush1.xpose.msra.mxu0 0.0
        %1659 = vmatprep.subr.mxu0 0.0
        %1660 = vmatpush1.xpose.msra.mxu0 0.0
        %1661 = vmatprep.subr.mxu0 0.0
        %1662 = vmatpush1.xpose.msra.mxu0 0.0
        %1663 = vmatprep.subr.mxu0 0.0
        %1664 = vmatpush1.xpose.msra.mxu0 0.0
        %1665 = vmatprep.subr.mxu0 0.0
        %1666 = vmatpush1.xpose.msra.mxu0 0.0
        %1667 = vmatprep.subr.mxu0 0.0
        %1668 = vmatpush1.xpose.msra.mxu0 0.0
        %1669 = vmatprep.subr.mxu0 0.0
        %1670 = vmatpush1.xpose.msra.mxu0 0.0
        %1671 = vmatprep.subr.mxu0 0.0
        %1672 = vmatpush1.xpose.msra.mxu0 0.0
        %1673 = vmatprep.subr.mxu0 0.0
        %1674 = vmatpush1.xpose.msra.mxu0 0.0
        %1675 = vmatprep.subr.mxu0 0.0
        %1676 = vmatpush1.xpose.msra.mxu0 0.0
        %1677 = vmatprep.subr.mxu0 0.0
        %1678 = vmatpush1.xpose.msra.mxu0 0.0
        %1679 = vmatprep.subr.mxu0 0.0
        %1680 = vmatpush1.xpose.msra.mxu0 0.0
        %1681 = vmatprep.subr.mxu0 0.0
        %1682 = vmatpush1.xpose.msra.mxu0 0.0
        %1683 = vmatprep.subr.mxu0 0.0
        %1684 = vmatpush1.xpose.msra.mxu0 0.0
        %1685 = vmatprep.subr.mxu0 0.0
        %1686 = vmatpush1.xpose.msra.mxu0 0.0
        %1687 = vmatprep.subr.mxu0 0.0
        %1688 = vmatpush1.xpose.msra.mxu0 0.0
        %1689 = vmatprep.subr.mxu0 0.0
        %1690 = vmatpush1.xpose.msra.mxu0 0.0
        %1691 = vmatprep.subr.mxu0 0.0
        %1692 = vmatpush1.xpose.msra.mxu0 0.0
        %1693 = vmatprep.mubr.f32.mxu0 0.0
        %1694 = vmatmul.mubr.f32.gmra.mrb[0].mxu0 %v1621
        %v1695 = vpop.f32.mrb[0].mxu0
        %v1696 = vadd.f32 0.0, %v1695
        %v1697 = vpop.f32.mrb[0].mxu0
        %1698 = vdwg.mxu0
        %v1700 = vrot.slane %v310, 2
        %v1701 = vsel %vm1288, %v1700, 0
        %v1704 = vsel %vm1288, %v1276, 0
        %v1707 = vsel %vm1288, %v1277, 0
        %1709 = vmatprep.subr.mxu0 0.0
        %1710 = vmatpush1.xpose.msra.mxu0 %v1704
        %1711 = vmatprep.subr.mxu0 0.0
        %1712 = vmatpush1.xpose.msra.mxu0 %v1707
        %1713 = vmatprep.subr.mxu0 0.0
        %1714 = vmatpush1.xpose.msra.mxu0 0.0
        %1715 = vmatprep.subr.mxu0 0.0
        %1716 = vmatpush1.xpose.msra.mxu0 0.0
        %1717 = vmatprep.subr.mxu0 0.0
        %1718 = vmatpush1.xpose.msra.mxu0 0.0
        %1719 = vmatprep.subr.mxu0 0.0
        %1720 = vmatpush1.xpose.msra.mxu0 0.0
        %1721 = vmatprep.subr.mxu0 0.0
        %1722 = vmatpush1.xpose.msra.mxu0 0.0
        %1723 = vmatprep.subr.mxu0 0.0
        %1724 = vmatpush1.xpose.msra.mxu0 0.0
        %1725 = vmatprep.subr.mxu0 0.0
        %1726 = vmatpush1.xpose.msra.mxu0 0.0
        %1727 = vmatprep.subr.mxu0 0.0
        %1728 = vmatpush1.xpose.msra.mxu0 0.0
        %1729 = vmatprep.subr.mxu0 0.0
        %1730 = vmatpush1.xpose.msra.mxu0 0.0
        %1731 = vmatprep.subr.mxu0 0.0
        %1732 = vmatpush1.xpose.msra.mxu0 0.0
        %1733 = vmatprep.subr.mxu0 0.0
        %1734 = vmatpush1.xpose.msra.mxu0 0.0
        %1735 = vmatprep.subr.mxu0 0.0
        %1736 = vmatpush1.xpose.msra.mxu0 0.0
        %1737 = vmatprep.subr.mxu0 0.0
        %1738 = vmatpush1.xpose.msra.mxu0 0.0
        %1739 = vmatprep.subr.mxu0 0.0
        %1740 = vmatpush1.xpose.msra.mxu0 0.0
        %1741 = vmatprep.subr.mxu0 0.0
        %1742 = vmatpush1.xpose.msra.mxu0 0.0
        %1743 = vmatprep.subr.mxu0 0.0
        %1744 = vmatpush1.xpose.msra.mxu0 0.0
        %1745 = vmatprep.subr.mxu0 0.0
        %1746 = vmatpush1.xpose.msra.mxu0 0.0
        %1747 = vmatprep.subr.mxu0 0.0
        %1748 = vmatpush1.xpose.msra.mxu0 0.0
        %1749 = vmatprep.subr.mxu0 0.0
        %1750 = vmatpush1.xpose.msra.mxu0 0.0
        %1751 = vmatprep.subr.mxu0 0.0
        %1752 = vmatpush1.xpose.msra.mxu0 0.0
        %1753 = vmatprep.subr.mxu0 0.0
        %1754 = vmatpush1.xpose.msra.mxu0 0.0
        %1755 = vmatprep.subr.mxu0 0.0
        %1756 = vmatpush1.xpose.msra.mxu0 0.0
        %1757 = vmatprep.subr.mxu0 0.0
        %1758 = vmatpush1.xpose.msra.mxu0 0.0
        %1759 = vmatprep.subr.mxu0 0.0
        %1760 = vmatpush1.xpose.msra.mxu0 0.0
        %1761 = vmatprep.subr.mxu0 0.0
        %1762 = vmatpush1.xpose.msra.mxu0 0.0
        %1763 = vmatprep.subr.mxu0 0.0
        %1764 = vmatpush1.xpose.msra.mxu0 0.0
        %1765 = vmatprep.subr.mxu0 0.0
        %1766 = vmatpush1.xpose.msra.mxu0 0.0
        %1767 = vmatprep.subr.mxu0 0.0
        %1768 = vmatpush1.xpose.msra.mxu0 0.0
        %1769 = vmatprep.subr.mxu0 0.0
        %1770 = vmatpush1.xpose.msra.mxu0 0.0
        %1771 = vmatprep.subr.mxu0 0.0
        %1772 = vmatpush1.xpose.msra.mxu0 0.0
        %1773 = vmatprep.mubr.f32.mxu0 0.0
        %1774 = vmatmul.mubr.f32.gmra.mrb[0].mxu0 %v1701
        %v1775 = vpop.f32.mrb[0].mxu0
        %v1776 = vadd.f32 0.0, %v1775
        %v1777 = vpop.f32.mrb[0].mxu0
        %1778 = vdwg.mxu0
        %v1780 = vrot.slane %v311, 2
        %v1781 = vsel %vm1288, %v1780, 0
        %v1784 = vsel %vm1288, %v1278, 0
        %v1787 = vsel %vm1288, %v1279, 0
        %1789 = vmatprep.subr.mxu0 0.0
        %1790 = vmatpush1.xpose.msra.mxu0 %v1784
        %1791 = vmatprep.subr.mxu0 0.0
        %1792 = vmatpush1.xpose.msra.mxu0 %v1787
        %1793 = vmatprep.subr.mxu0 0.0
        %1794 = vmatpush1.xpose.msra.mxu0 0.0
        %1795 = vmatprep.subr.mxu0 0.0
        %1796 = vmatpush1.xpose.msra.mxu0 0.0
        %1797 = vmatprep.subr.mxu0 0.0
        %1798 = vmatpush1.xpose.msra.mxu0 0.0
        %1799 = vmatprep.subr.mxu0 0.0
        %1800 = vmatpush1.xpose.msra.mxu0 0.0
        %1801 = vmatprep.subr.mxu0 0.0
        %1802 = vmatpush1.xpose.msra.mxu0 0.0
        %1803 = vmatprep.subr.mxu0 0.0
        %1804 = vmatpush1.xpose.msra.mxu0 0.0
        %1805 = vmatprep.subr.mxu0 0.0
        %1806 = vmatpush1.xpose.msra.mxu0 0.0
        %1807 = vmatprep.subr.mxu0 0.0
        %1808 = vmatpush1.xpose.msra.mxu0 0.0
        %1809 = vmatprep.subr.mxu0 0.0
        %1810 = vmatpush1.xpose.msra.mxu0 0.0
        %1811 = vmatprep.subr.mxu0 0.0
        %1812 = vmatpush1.xpose.msra.mxu0 0.0
        %1813 = vmatprep.subr.mxu0 0.0
        %1814 = vmatpush1.xpose.msra.mxu0 0.0
        %1815 = vmatprep.subr.mxu0 0.0
        %1816 = vmatpush1.xpose.msra.mxu0 0.0
        %1817 = vmatprep.subr.mxu0 0.0
        %1818 = vmatpush1.xpose.msra.mxu0 0.0
        %1819 = vmatprep.subr.mxu0 0.0
        %1820 = vmatpush1.xpose.msra.mxu0 0.0
        %1821 = vmatprep.subr.mxu0 0.0
        %1822 = vmatpush1.xpose.msra.mxu0 0.0
        %1823 = vmatprep.subr.mxu0 0.0
        %1824 = vmatpush1.xpose.msra.mxu0 0.0
        %1825 = vmatprep.subr.mxu0 0.0
        %1826 = vmatpush1.xpose.msra.mxu0 0.0
        %1827 = vmatprep.subr.mxu0 0.0
        %1828 = vmatpush1.xpose.msra.mxu0 0.0
        %1829 = vmatprep.subr.mxu0 0.0
        %1830 = vmatpush1.xpose.msra.mxu0 0.0
        %1831 = vmatprep.subr.mxu0 0.0
        %1832 = vmatpush1.xpose.msra.mxu0 0.0
        %1833 = vmatprep.subr.mxu0 0.0
        %1834 = vmatpush1.xpose.msra.mxu0 0.0
        %1835 = vmatprep.subr.mxu0 0.0
        %1836 = vmatpush1.xpose.msra.mxu0 0.0
        %1837 = vmatprep.subr.mxu0 0.0
        %1838 = vmatpush1.xpose.msra.mxu0 0.0
        %1839 = vmatprep.subr.mxu0 0.0
        %1840 = vmatpush1.xpose.msra.mxu0 0.0
        %1841 = vmatprep.subr.mxu0 0.0
        %1842 = vmatpush1.xpose.msra.mxu0 0.0
        %1843 = vmatprep.subr.mxu0 0.0
        %1844 = vmatpush1.xpose.msra.mxu0 0.0
        %1845 = vmatprep.subr.mxu0 0.0
        %1846 = vmatpush1.xpose.msra.mxu0 0.0
        %1847 = vmatprep.subr.mxu0 0.0
        %1848 = vmatpush1.xpose.msra.mxu0 0.0
        %1849 = vmatprep.subr.mxu0 0.0
        %1850 = vmatpush1.xpose.msra.mxu0 0.0
        %1851 = vmatprep.subr.mxu0 0.0
        %1852 = vmatpush1.xpose.msra.mxu0 0.0
        %1853 = vmatprep.mubr.f32.mxu0 0.0
        %1854 = vmatmul.mubr.f32.gmra.mrb[0].mxu0 %v1781
        %v1855 = vpop.f32.mrb[0].mxu0
        %v1856 = vadd.f32 0.0, %v1855
        %v1857 = vpop.f32.mrb[0].mxu0
        %1858 = vdwg.mxu0
        %v1860 = vrot.slane %v312, 2
        %v1861 = vsel %vm1288, %v1860, 0
        %v1864 = vsel %vm1288, %v1280, 0
        %v1867 = vsel %vm1288, %v1281, 0
        %1869 = vmatprep.subr.mxu0 0.0
        %1870 = vmatpush1.xpose.msra.mxu0 %v1864
        %1871 = vmatprep.subr.mxu0 0.0
        %1872 = vmatpush1.xpose.msra.mxu0 %v1867
        %1873 = vmatprep.subr.mxu0 0.0
        %1874 = vmatpush1.xpose.msra.mxu0 0.0
        %1875 = vmatprep.subr.mxu0 0.0
        %1876 = vmatpush1.xpose.msra.mxu0 0.0
        %1877 = vmatprep.subr.mxu0 0.0
        %1878 = vmatpush1.xpose.msra.mxu0 0.0
        %1879 = vmatprep.subr.mxu0 0.0
        %1880 = vmatpush1.xpose.msra.mxu0 0.0
        %1881 = vmatprep.subr.mxu0 0.0
        %1882 = vmatpush1.xpose.msra.mxu0 0.0
        %1883 = vmatprep.subr.mxu0 0.0
        %1884 = vmatpush1.xpose.msra.mxu0 0.0
        %1885 = vmatprep.subr.mxu0 0.0
        %1886 = vmatpush1.xpose.msra.mxu0 0.0
        %1887 = vmatprep.subr.mxu0 0.0
        %1888 = vmatpush1.xpose.msra.mxu0 0.0
        %1889 = vmatprep.subr.mxu0 0.0
        %1890 = vmatpush1.xpose.msra.mxu0 0.0
        %1891 = vmatprep.subr.mxu0 0.0
        %1892 = vmatpush1.xpose.msra.mxu0 0.0
        %1893 = vmatprep.subr.mxu0 0.0
        %1894 = vmatpush1.xpose.msra.mxu0 0.0
        %1895 = vmatprep.subr.mxu0 0.0
        %1896 = vmatpush1.xpose.msra.mxu0 0.0
        %1897 = vmatprep.subr.mxu0 0.0
        %1898 = vmatpush1.xpose.msra.mxu0 0.0
        %1899 = vmatprep.subr.mxu0 0.0
        %1900 = vmatpush1.xpose.msra.mxu0 0.0
        %1901 = vmatprep.subr.mxu0 0.0
        %1902 = vmatpush1.xpose.msra.mxu0 0.0
        %1903 = vmatprep.subr.mxu0 0.0
        %1904 = vmatpush1.xpose.msra.mxu0 0.0
        %1905 = vmatprep.subr.mxu0 0.0
        %1906 = vmatpush1.xpose.msra.mxu0 0.0
        %1907 = vmatprep.subr.mxu0 0.0
        %1908 = vmatpush1.xpose.msra.mxu0 0.0
        %1909 = vmatprep.subr.mxu0 0.0
        %1910 = vmatpush1.xpose.msra.mxu0 0.0
        %1911 = vmatprep.subr.mxu0 0.0
        %1912 = vmatpush1.xpose.msra.mxu0 0.0
        %1913 = vmatprep.subr.mxu0 0.0
        %1914 = vmatpush1.xpose.msra.mxu0 0.0
        %1915 = vmatprep.subr.mxu0 0.0
        %1916 = vmatpush1.xpose.msra.mxu0 0.0
        %1917 = vmatprep.subr.mxu0 0.0
        %1918 = vmatpush1.xpose.msra.mxu0 0.0
        %1919 = vmatprep.subr.mxu0 0.0
        %1920 = vmatpush1.xpose.msra.mxu0 0.0
        %1921 = vmatprep.subr.mxu0 0.0
        %1922 = vmatpush1.xpose.msra.mxu0 0.0
        %1923 = vmatprep.subr.mxu0 0.0
        %1924 = vmatpush1.xpose.msra.mxu0 0.0
        %1925 = vmatprep.subr.mxu0 0.0
        %1926 = vmatpush1.xpose.msra.mxu0 0.0
        %1927 = vmatprep.subr.mxu0 0.0
        %1928 = vmatpush1.xpose.msra.mxu0 0.0
        %1929 = vmatprep.subr.mxu0 0.0
        %1930 = vmatpush1.xpose.msra.mxu0 0.0
        %1931 = vmatprep.subr.mxu0 0.0
        %1932 = vmatpush1.xpose.msra.mxu0 0.0
        %1933 = vmatprep.mubr.f32.mxu0 0.0
        %1934 = vmatmul.mubr.f32.gmra.mrb[0].mxu0 %v1861
        %v1935 = vpop.f32.mrb[0].mxu0
        %v1936 = vadd.f32 0.0, %v1935
        %v1937 = vpop.f32.mrb[0].mxu0
        %1938 = vdwg.mxu0
        %v1940 = vrot.slane %v313, 2
        %v1941 = vsel %vm1288, %v1940, 0
        %v1944 = vsel %vm1288, %v1282, 0
        %v1947 = vsel %vm1288, %v1283, 0
        %1949 = vmatprep.subr.mxu0 0.0
        %1950 = vmatpush1.xpose.msra.mxu0 %v1944
        %1951 = vmatprep.subr.mxu0 0.0
        %1952 = vmatpush1.xpose.msra.mxu0 %v1947
        %1953 = vmatprep.subr.mxu0 0.0
        %1954 = vmatpush1.xpose.msra.mxu0 0.0
        %1955 = vmatprep.subr.mxu0 0.0
        %1956 = vmatpush1.xpose.msra.mxu0 0.0
        %1957 = vmatprep.subr.mxu0 0.0
        %1958 = vmatpush1.xpose.msra.mxu0 0.0
        %1959 = vmatprep.subr.mxu0 0.0
        %1960 = vmatpush1.xpose.msra.mxu0 0.0
        %1961 = vmatprep.subr.mxu0 0.0
        %1962 = vmatpush1.xpose.msra.mxu0 0.0
        %1963 = vmatprep.subr.mxu0 0.0
        %1964 = vmatpush1.xpose.msra.mxu0 0.0
        %1965 = vmatprep.subr.mxu0 0.0
        %1966 = vmatpush1.xpose.msra.mxu0 0.0
        %1967 = vmatprep.subr.mxu0 0.0
        %1968 = vmatpush1.xpose.msra.mxu0 0.0
        %1969 = vmatprep.subr.mxu0 0.0
        %1970 = vmatpush1.xpose.msra.mxu0 0.0
        %1971 = vmatprep.subr.mxu0 0.0
        %1972 = vmatpush1.xpose.msra.mxu0 0.0
        %1973 = vmatprep.subr.mxu0 0.0
        %1974 = vmatpush1.xpose.msra.mxu0 0.0
        %1975 = vmatprep.subr.mxu0 0.0
        %1976 = vmatpush1.xpose.msra.mxu0 0.0
        %1977 = vmatprep.subr.mxu0 0.0
        %1978 = vmatpush1.xpose.msra.mxu0 0.0
        %1979 = vmatprep.subr.mxu0 0.0
        %1980 = vmatpush1.xpose.msra.mxu0 0.0
        %1981 = vmatprep.subr.mxu0 0.0
        %1982 = vmatpush1.xpose.msra.mxu0 0.0
        %1983 = vmatprep.subr.mxu0 0.0
        %1984 = vmatpush1.xpose.msra.mxu0 0.0
        %1985 = vmatprep.subr.mxu0 0.0
        %1986 = vmatpush1.xpose.msra.mxu0 0.0
        %1987 = vmatprep.subr.mxu0 0.0
        %1988 = vmatpush1.xpose.msra.mxu0 0.0
        %1989 = vmatprep.subr.mxu0 0.0
        %1990 = vmatpush1.xpose.msra.mxu0 0.0
        %1991 = vmatprep.subr.mxu0 0.0
        %1992 = vmatpush1.xpose.msra.mxu0 0.0
        %1993 = vmatprep.subr.mxu0 0.0
        %1994 = vmatpush1.xpose.msra.mxu0 0.0
        %1995 = vmatprep.subr.mxu0 0.0
        %1996 = vmatpush1.xpose.msra.mxu0 0.0
        %1997 = vmatprep.subr.mxu0 0.0
        %1998 = vmatpush1.xpose.msra.mxu0 0.0
        %1999 = vmatprep.subr.mxu0 0.0
        %2000 = vmatpush1.xpose.msra.mxu0 0.0
        %2001 = vmatprep.subr.mxu0 0.0
        %2002 = vmatpush1.xpose.msra.mxu0 0.0
        %2003 = vmatprep.subr.mxu0 0.0
        %2004 = vmatpush1.xpose.msra.mxu0 0.0
        %2005 = vmatprep.subr.mxu0 0.0
        %2006 = vmatpush1.xpose.msra.mxu0 0.0
        %2007 = vmatprep.subr.mxu0 0.0
        %2008 = vmatpush1.xpose.msra.mxu0 0.0
        %2009 = vmatprep.subr.mxu0 0.0
        %2010 = vmatpush1.xpose.msra.mxu0 0.0
        %2011 = vmatprep.subr.mxu0 0.0
        %2012 = vmatpush1.xpose.msra.mxu0 0.0
        %2013 = vmatprep.mubr.f32.mxu0 0.0
        %2014 = vmatmul.mubr.f32.gmra.mrb[0].mxu0 %v1941
        %v2015 = vpop.f32.mrb[0].mxu0
        %v2016 = vadd.f32 0.0, %v2015
        %v2017 = vpop.f32.mrb[0].mxu0
        %2018 = vdwg.mxu0
        %v2020 = vrot.slane %v314, 2
        %v2021 = vsel %vm1288, %v2020, 0
        %v2024 = vsel %vm1288, %v1284, 0
        %v2027 = vsel %vm1288, %v1285, 0
        %2029 = vmatprep.subr.mxu0 0.0
        %2030 = vmatpush1.xpose.msra.mxu0 %v2024
        %2031 = vmatprep.subr.mxu0 0.0
        %2032 = vmatpush1.xpose.msra.mxu0 %v2027
        %2033 = vmatprep.subr.mxu0 0.0
        %2034 = vmatpush1.xpose.msra.mxu0 0.0
        %2035 = vmatprep.subr.mxu0 0.0
        %2036 = vmatpush1.xpose.msra.mxu0 0.0
        %2037 = vmatprep.subr.mxu0 0.0
        %2038 = vmatpush1.xpose.msra.mxu0 0.0
        %2039 = vmatprep.subr.mxu0 0.0
        %2040 = vmatpush1.xpose.msra.mxu0 0.0
        %2041 = vmatprep.subr.mxu0 0.0
        %2042 = vmatpush1.xpose.msra.mxu0 0.0
        %2043 = vmatprep.subr.mxu0 0.0
        %2044 = vmatpush1.xpose.msra.mxu0 0.0
        %2045 = vmatprep.subr.mxu0 0.0
        %2046 = vmatpush1.xpose.msra.mxu0 0.0
        %2047 = vmatprep.subr.mxu0 0.0
        %2048 = vmatpush1.xpose.msra.mxu0 0.0
        %2049 = vmatprep.subr.mxu0 0.0
        %2050 = vmatpush1.xpose.msra.mxu0 0.0
        %2051 = vmatprep.subr.mxu0 0.0
        %2052 = vmatpush1.xpose.msra.mxu0 0.0
        %2053 = vmatprep.subr.mxu0 0.0
        %2054 = vmatpush1.xpose.msra.mxu0 0.0
        %2055 = vmatprep.subr.mxu0 0.0
        %2056 = vmatpush1.xpose.msra.mxu0 0.0
        %2057 = vmatprep.subr.mxu0 0.0
        %2058 = vmatpush1.xpose.msra.mxu0 0.0
        %2059 = vmatprep.subr.mxu0 0.0
        %2060 = vmatpush1.xpose.msra.mxu0 0.0
        %2061 = vmatprep.subr.mxu0 0.0
        %2062 = vmatpush1.xpose.msra.mxu0 0.0
        %2063 = vmatprep.subr.mxu0 0.0
        %2064 = vmatpush1.xpose.msra.mxu0 0.0
        %2065 = vmatprep.subr.mxu0 0.0
        %2066 = vmatpush1.xpose.msra.mxu0 0.0
        %2067 = vmatprep.subr.mxu0 0.0
        %2068 = vmatpush1.xpose.msra.mxu0 0.0
        %2069 = vmatprep.subr.mxu0 0.0
        %2070 = vmatpush1.xpose.msra.mxu0 0.0
        %2071 = vmatprep.subr.mxu0 0.0
        %2072 = vmatpush1.xpose.msra.mxu0 0.0
        %2073 = vmatprep.subr.mxu0 0.0
        %2074 = vmatpush1.xpose.msra.mxu0 0.0
        %2075 = vmatprep.subr.mxu0 0.0
        %2076 = vmatpush1.xpose.msra.mxu0 0.0
        %2077 = vmatprep.subr.mxu0 0.0
        %2078 = vmatpush1.xpose.msra.mxu0 0.0
        %2079 = vmatprep.subr.mxu0 0.0
        %2080 = vmatpush1.xpose.msra.mxu0 0.0
        %2081 = vmatprep.subr.mxu0 0.0
        %2082 = vmatpush1.xpose.msra.mxu0 0.0
        %2083 = vmatprep.subr.mxu0 0.0
        %2084 = vmatpush1.xpose.msra.mxu0 0.0
        %2085 = vmatprep.subr.mxu0 0.0
        %2086 = vmatpush1.xpose.msra.mxu0 0.0
        %2087 = vmatprep.subr.mxu0 0.0
        %2088 = vmatpush1.xpose.msra.mxu0 0.0
        %2089 = vmatprep.subr.mxu0 0.0
        %2090 = vmatpush1.xpose.msra.mxu0 0.0
        %2091 = vmatprep.subr.mxu0 0.0
        %2092 = vmatpush1.xpose.msra.mxu0 0.0
        %2093 = vmatprep.mubr.f32.mxu0 0.0
        %2094 = vmatmul.mubr.f32.gmra.mrb[0].mxu0 %v2021
        %v2095 = vpop.f32.mrb[0].mxu0
        %v2096 = vadd.f32 0.0, %v2095
        %v2097 = vpop.f32.mrb[0].mxu0
        %2098 = vdwg.mxu0
        %v2100 = vrot.slane %v315, 2
        %v2101 = vsel %vm1288, %v2100, 0
        %v2104 = vsel %vm1288, %v1286, 0
        %v2107 = vsel %vm1288, %v1287, 0
        %2109 = vmatprep.subr.mxu0 0.0
        %2110 = vmatpush1.xpose.msra.mxu0 %v2104
        %2111 = vmatprep.subr.mxu0 0.0
        %2112 = vmatpush1.xpose.msra.mxu0 %v2107
        %2113 = vmatprep.subr.mxu0 0.0
        %2114 = vmatpush1.xpose.msra.mxu0 0.0
        %2115 = vmatprep.subr.mxu0 0.0
        %2116 = vmatpush1.xpose.msra.mxu0 0.0
        %2117 = vmatprep.subr.mxu0 0.0
        %2118 = vmatpush1.xpose.msra.mxu0 0.0
        %2119 = vmatprep.subr.mxu0 0.0
        %2120 = vmatpush1.xpose.msra.mxu0 0.0
        %2121 = vmatprep.subr.mxu0 0.0
        %2122 = vmatpush1.xpose.msra.mxu0 0.0
        %2123 = vmatprep.subr.mxu0 0.0
        %2124 = vmatpush1.xpose.msra.mxu0 0.0
        %2125 = vmatprep.subr.mxu0 0.0
        %2126 = vmatpush1.xpose.msra.mxu0 0.0
        %2127 = vmatprep.subr.mxu0 0.0
        %2128 = vmatpush1.xpose.msra.mxu0 0.0
        %2129 = vmatprep.subr.mxu0 0.0
        %2130 = vmatpush1.xpose.msra.mxu0 0.0
        %2131 = vmatprep.subr.mxu0 0.0
        %2132 = vmatpush1.xpose.msra.mxu0 0.0
        %2133 = vmatprep.subr.mxu0 0.0
        %2134 = vmatpush1.xpose.msra.mxu0 0.0
        %2135 = vmatprep.subr.mxu0 0.0
        %2136 = vmatpush1.xpose.msra.mxu0 0.0
        %2137 = vmatprep.subr.mxu0 0.0
        %2138 = vmatpush1.xpose.msra.mxu0 0.0
        %2139 = vmatprep.subr.mxu0 0.0
        %2140 = vmatpush1.xpose.msra.mxu0 0.0
        %2141 = vmatprep.subr.mxu0 0.0
        %2142 = vmatpush1.xpose.msra.mxu0 0.0
        %2143 = vmatprep.subr.mxu0 0.0
        %2144 = vmatpush1.xpose.msra.mxu0 0.0
        %2145 = vmatprep.subr.mxu0 0.0
        %2146 = vmatpush1.xpose.msra.mxu0 0.0
        %2147 = vmatprep.subr.mxu0 0.0
        %2148 = vmatpush1.xpose.msra.mxu0 0.0
        %2149 = vmatprep.subr.mxu0 0.0
        %2150 = vmatpush1.xpose.msra.mxu0 0.0
        %2151 = vmatprep.subr.mxu0 0.0
        %2152 = vmatpush1.xpose.msra.mxu0 0.0
        %2153 = vmatprep.subr.mxu0 0.0
        %2154 = vmatpush1.xpose.msra.mxu0 0.0
        %2155 = vmatprep.subr.mxu0 0.0
        %2156 = vmatpush1.xpose.msra.mxu0 0.0
        %2157 = vmatprep.subr.mxu0 0.0
        %2158 = vmatpush1.xpose.msra.mxu0 0.0
        %2159 = vmatprep.subr.mxu0 0.0
        %2160 = vmatpush1.xpose.msra.mxu0 0.0
        %2161 = vmatprep.subr.mxu0 0.0
        %2162 = vmatpush1.xpose.msra.mxu0 0.0
        %2163 = vmatprep.subr.mxu0 0.0
        %2164 = vmatpush1.xpose.msra.mxu0 0.0
        %2165 = vmatprep.subr.mxu0 0.0
        %2166 = vmatpush1.xpose.msra.mxu0 0.0
        %2167 = vmatprep.subr.mxu0 0.0
        %2168 = vmatpush1.xpose.msra.mxu0 0.0
        %2169 = vmatprep.subr.mxu0 0.0
        %2170 = vmatpush1.xpose.msra.mxu0 0.0
        %2171 = vmatprep.subr.mxu0 0.0
        %2172 = vmatpush1.xpose.msra.mxu0 0.0
        %2173 = vmatprep.mubr.f32.mxu0 0.0
        %2174 = vmatmul.mubr.f32.gmra.mrb[0].mxu0 %v2101
        %v2175 = vpop.f32.mrb[0].mxu0
        %v2176 = vadd.f32 0.0, %v2175
        %v2177 = vpop.f32.mrb[0].mxu0
        %2178 = vdwg.mxu0
        %v2179 = vlaneseq
        %v2180 = vshrl.u32 %v2179, 7
        %vm2181 = vcmp.eq.s32.totalorder %v2180, 1
        %vm2182 = vcmp.eq.s32.totalorder %v2180, 3
        %vm2183 = vcmp.ge.s32.totalorder %v2180, 5
        %v2184 = vsel %vm2183, 0.0, 1.0
        %v2185 = vsel %vm2182, 1, 0
        %vm2186 = vcmp.eq.s32.totalorder %v2185, 1
        %v2187 = vsel %vm2186, %v1297, %v2184
        %v2188 = vsel %vm2186, %v1306, %v2184
        %v2189 = vsel %vm2186, %v1315, %v2184
        %v2190 = vsel %vm2186, %v1324, %v2184
        %v2191 = vsel %vm2186, %v1333, %v2184
        %v2192 = vsel %vm2186, %v1342, %v2184
        %v2193 = vsel %vm2186, %v1351, %v2184
        %v2194 = vsel %vm2186, %v1360, %v2184
        %v2195 = vsel %vm2186, %v1369, %v2184
        %v2196 = vsel %vm2186, %v1378, %v2184
        %v2197 = vsel %vm2181, 1, 0
        %vm2198 = vcmp.eq.s32.totalorder %v2197, 1
        %v2199 = vlaneseq
        %v2200 = vshrl.u32 %v2199, 7
        %v2201 = vsub.s32 0, %v2200
        %v2202 = vrot.slane %v1456, %v2201
        %v2203 = vlaneseq
        %v2204 = vshrl.u32 %v2203, 7
        %v2205 = vsub.s32 0, %v2204
        %v2206 = vrot.slane %v1536, %v2205
        %v2207 = vlaneseq
        %v2208 = vshrl.u32 %v2207, 7
        %v2209 = vsub.s32 0, %v2208
        %v2210 = vrot.slane %v1616, %v2209
        %v2211 = vlaneseq
        %v2212 = vshrl.u32 %v2211, 7
        %v2213 = vsub.s32 0, %v2212
        %v2214 = vrot.slane %v1696, %v2213
        %v2215 = vlaneseq
        %v2216 = vshrl.u32 %v2215, 7
        %v2217 = vsub.s32 0, %v2216
        %v2218 = vrot.slane %v1776, %v2217
        %v2219 = vlaneseq
        %v2220 = vshrl.u32 %v2219, 7
        %v2221 = vsub.s32 0, %v2220
        %v2222 = vrot.slane %v1856, %v2221
        %v2223 = vlaneseq
        %v2224 = vshrl.u32 %v2223, 7
        %v2225 = vsub.s32 0, %v2224
        %v2226 = vrot.slane %v1936, %v2225
        %v2227 = vlaneseq
        %v2228 = vshrl.u32 %v2227, 7
        %v2229 = vsub.s32 0, %v2228
        %v2230 = vrot.slane %v2016, %v2229
        %v2231 = vlaneseq
        %v2232 = vshrl.u32 %v2231, 7
        %v2233 = vsub.s32 0, %v2232
        %v2234 = vrot.slane %v2096, %v2233
        %v2235 = vlaneseq
        %v2236 = vshrl.u32 %v2235, 7
        %v2237 = vsub.s32 0, %v2236
        %v2238 = vrot.slane %v2176, %v2237
        %v2239 = vsel %vm2198, %v2202, %v2187
        %v2240 = vsel %vm2198, %v2206, %v2188
        %v2241 = vsel %vm2198, %v2210, %v2189
        %v2242 = vsel %vm2198, %v2214, %v2190
        %v2243 = vsel %vm2198, %v2218, %v2191
        %v2244 = vsel %vm2198, %v2222, %v2192
        %v2245 = vsel %vm2198, %v2226, %v2193
        %v2246 = vsel %vm2198, %v2230, %v2194
        %v2247 = vsel %vm2198, %v2234, %v2195
        %v2248 = vsel %vm2198, %v2238, %v2196
        %v2249 = vmul.f32 %v306, %v2239
        %v2250 = vmul.f32 %v307, %v2240
        %v2251 = vmul.f32 %v308, %v2241
        %v2252 = vmul.f32 %v309, %v2242
        %v2253 = vmul.f32 %v310, %v2243
        %v2254 = vmul.f32 %v311, %v2244
        %v2255 = vmul.f32 %v312, %v2245
        %v2256 = vmul.f32 %v313, %v2246
        %v2257 = vmul.f32 %v314, %v2247
        %v2258 = vmul.f32 %v315, %v2248
        %v2259 = vpack.c.bf16 %v2249, %v2249
        %v2260 = vpack.c.bf16 %v2250, %v2250
        %v2261 = vpack.c.bf16 %v2251, %v2251
        %v2262 = vpack.c.bf16 %v2252, %v2252
        %v2263 = vpack.c.bf16 %v2253, %v2253
        %v2264 = vpack.c.bf16 %v2254, %v2254
        %v2265 = vpack.c.bf16 %v2255, %v2255
        %v2266 = vpack.c.bf16 %v2256, %v2256
        %v2267 = vpack.c.bf16 %v2257, %v2257
        %v2268 = vpack.c.bf16 %v2258, %v2258
        %v2271 = vsel %vm1288, %v2259, 0
        %2273 = vmatprep.subr.bf16.mxu0 0
        %2274 = vmatpush1.bf16.msra.mxu0 %v320
        %2275 = vmatprep.subr.bf16.mxu0 0
        %2276 = vmatpush1.bf16.msra.mxu0 0
        %2277 = vmatprep.subr.bf16.mxu0 0
        %2278 = vmatpush1.bf16.msra.mxu0 0
        %2279 = vmatprep.subr.bf16.mxu0 0
        %2280 = vmatpush1.bf16.msra.mxu0 0
        %2281 = vmatprep.subr.bf16.mxu0 0
        %2282 = vmatpush1.bf16.msra.mxu0 0
        %2283 = vmatprep.subr.bf16.mxu0 0
        %2284 = vmatpush1.bf16.msra.mxu0 0
        %2285 = vmatprep.subr.bf16.mxu0 0
        %2286 = vmatpush1.bf16.msra.mxu0 0
        %2287 = vmatprep.subr.bf16.mxu0 0
        %2288 = vmatpush1.bf16.msra.mxu0 0
        %2289 = vmatprep.subr.bf16.mxu0 0
        %2290 = vmatpush1.bf16.msra.mxu0 0
        %2291 = vmatprep.subr.bf16.mxu0 0
        %2292 = vmatpush1.bf16.msra.mxu0 0
        %2293 = vmatprep.subr.bf16.mxu0 0
        %2294 = vmatpush1.bf16.msra.mxu0 0
        %2295 = vmatprep.subr.bf16.mxu0 0
        %2296 = vmatpush1.bf16.msra.mxu0 0
        %2297 = vmatprep.subr.bf16.mxu0 0
        %2298 = vmatpush1.bf16.msra.mxu0 0
        %2299 = vmatprep.subr.bf16.mxu0 0
        %2300 = vmatpush1.bf16.msra.mxu0 0
        %2301 = vmatprep.subr.bf16.mxu0 0
        %2302 = vmatpush1.bf16.msra.mxu0 0
        %2303 = vmatprep.subr.bf16.mxu0 0
        %2304 = vmatpush1.bf16.msra.mxu0 0
        %2305 = vmatprep.mubr.bf16.mxu0 0
        %2306 = vmatmul.mubr.bf16.gmra.mrb[0].mxu0 %v2271
        %v2307 = vpop.f32.mrb[0].mxu0
        %v2308 = vadd.f32 0.0, %v2307
        %v2309 = vpop.f32.mrb[0].mxu0
        %v2310 = vpop.f32.mrb[0].mxu0
        %v2311 = vpop.f32.mrb[0].mxu0
        %2312 = vdwg.mxu0
        %v2315 = vsel %vm1288, %v2260, 0
        %2317 = vmatprep.subr.bf16.mxu0 0
        %2318 = vmatpush1.bf16.msra.mxu0 %v370
        %2319 = vmatprep.subr.bf16.mxu0 0
        %2320 = vmatpush1.bf16.msra.mxu0 0
        %2321 = vmatprep.subr.bf16.mxu0 0
        %2322 = vmatpush1.bf16.msra.mxu0 0
        %2323 = vmatprep.subr.bf16.mxu0 0
        %2324 = vmatpush1.bf16.msra.mxu0 0
        %2325 = vmatprep.subr.bf16.mxu0 0
        %2326 = vmatpush1.bf16.msra.mxu0 0
        %2327 = vmatprep.subr.bf16.mxu0 0
        %2328 = vmatpush1.bf16.msra.mxu0 0
        %2329 = vmatprep.subr.bf16.mxu0 0
        %2330 = vmatpush1.bf16.msra.mxu0 0
        %2331 = vmatprep.subr.bf16.mxu0 0
        %2332 = vmatpush1.bf16.msra.mxu0 0
        %2333 = vmatprep.subr.bf16.mxu0 0
        %2334 = vmatpush1.bf16.msra.mxu0 0
        %2335 = vmatprep.subr.bf16.mxu0 0
        %2336 = vmatpush1.bf16.msra.mxu0 0
        %2337 = vmatprep.subr.bf16.mxu0 0
        %2338 = vmatpush1.bf16.msra.mxu0 0
        %2339 = vmatprep.subr.bf16.mxu0 0
        %2340 = vmatpush1.bf16.msra.mxu0 0
        %2341 = vmatprep.subr.bf16.mxu0 0
        %2342 = vmatpush1.bf16.msra.mxu0 0
        %2343 = vmatprep.subr.bf16.mxu0 0
        %2344 = vmatpush1.bf16.msra.mxu0 0
        %2345 = vmatprep.subr.bf16.mxu0 0
        %2346 = vmatpush1.bf16.msra.mxu0 0
        %2347 = vmatprep.subr.bf16.mxu0 0
        %2348 = vmatpush1.bf16.msra.mxu0 0
        %2349 = vmatprep.mubr.bf16.mxu0 0
        %2350 = vmatmul.mubr.bf16.gmra.mrb[0].mxu0 %v2315
        %v2351 = vpop.f32.mrb[0].mxu0
        %v2352 = vadd.f32 0.0, %v2351
        %v2353 = vpop.f32.mrb[0].mxu0
        %v2354 = vpop.f32.mrb[0].mxu0
        %v2355 = vpop.f32.mrb[0].mxu0
        %2356 = vdwg.mxu0
        %v2359 = vsel %vm1288, %v2261, 0
        %2361 = vmatprep.subr.bf16.mxu0 0
        %2362 = vmatpush1.bf16.msra.mxu0 %v419
        %2363 = vmatprep.subr.bf16.mxu0 0
        %2364 = vmatpush1.bf16.msra.mxu0 0
        %2365 = vmatprep.subr.bf16.mxu0 0
        %2366 = vmatpush1.bf16.msra.mxu0 0
        %2367 = vmatprep.subr.bf16.mxu0 0
        %2368 = vmatpush1.bf16.msra.mxu0 0
        %2369 = vmatprep.subr.bf16.mxu0 0
        %2370 = vmatpush1.bf16.msra.mxu0 0
        %2371 = vmatprep.subr.bf16.mxu0 0
        %2372 = vmatpush1.bf16.msra.mxu0 0
        %2373 = vmatprep.subr.bf16.mxu0 0
        %2374 = vmatpush1.bf16.msra.mxu0 0
        %2375 = vmatprep.subr.bf16.mxu0 0
        %2376 = vmatpush1.bf16.msra.mxu0 0
        %2377 = vmatprep.subr.bf16.mxu0 0
        %2378 = vmatpush1.bf16.msra.mxu0 0
        %2379 = vmatprep.subr.bf16.mxu0 0
        %2380 = vmatpush1.bf16.msra.mxu0 0
        %2381 = vmatprep.subr.bf16.mxu0 0
        %2382 = vmatpush1.bf16.msra.mxu0 0
        %2383 = vmatprep.subr.bf16.mxu0 0
        %2384 = vmatpush1.bf16.msra.mxu0 0
        %2385 = vmatprep.subr.bf16.mxu0 0
        %2386 = vmatpush1.bf16.msra.mxu0 0
        %2387 = vmatprep.subr.bf16.mxu0 0
        %2388 = vmatpush1.bf16.msra.mxu0 0
        %2389 = vmatprep.subr.bf16.mxu0 0
        %2390 = vmatpush1.bf16.msra.mxu0 0
        %2391 = vmatprep.subr.bf16.mxu0 0
        %2392 = vmatpush1.bf16.msra.mxu0 0
        %2393 = vmatprep.mubr.bf16.mxu0 0
        %2394 = vmatmul.mubr.bf16.gmra.mrb[0].mxu0 %v2359
        %v2395 = vpop.f32.mrb[0].mxu0
        %v2396 = vadd.f32 0.0, %v2395
        %v2397 = vpop.f32.mrb[0].mxu0
        %v2398 = vpop.f32.mrb[0].mxu0
        %v2399 = vpop.f32.mrb[0].mxu0
        %2400 = vdwg.mxu0
        %v2403 = vsel %vm1288, %v2262, 0
        %2405 = vmatprep.subr.bf16.mxu0 0
        %2406 = vmatpush1.bf16.msra.mxu0 %v468
        %2407 = vmatprep.subr.bf16.mxu0 0
        %2408 = vmatpush1.bf16.msra.mxu0 0
        %2409 = vmatprep.subr.bf16.mxu0 0
        %2410 = vmatpush1.bf16.msra.mxu0 0
        %2411 = vmatprep.subr.bf16.mxu0 0
        %2412 = vmatpush1.bf16.msra.mxu0 0
        %2413 = vmatprep.subr.bf16.mxu0 0
        %2414 = vmatpush1.bf16.msra.mxu0 0
        %2415 = vmatprep.subr.bf16.mxu0 0
        %2416 = vmatpush1.bf16.msra.mxu0 0
        %2417 = vmatprep.subr.bf16.mxu0 0
        %2418 = vmatpush1.bf16.msra.mxu0 0
        %2419 = vmatprep.subr.bf16.mxu0 0
        %2420 = vmatpush1.bf16.msra.mxu0 0
        %2421 = vmatprep.subr.bf16.mxu0 0
        %2422 = vmatpush1.bf16.msra.mxu0 0
        %2423 = vmatprep.subr.bf16.mxu0 0
        %2424 = vmatpush1.bf16.msra.mxu0 0
        %2425 = vmatprep.subr.bf16.mxu0 0
        %2426 = vmatpush1.bf16.msra.mxu0 0
        %2427 = vmatprep.subr.bf16.mxu0 0
        %2428 = vmatpush1.bf16.msra.mxu0 0
        %2429 = vmatprep.subr.bf16.mxu0 0
        %2430 = vmatpush1.bf16.msra.mxu0 0
        %2431 = vmatprep.subr.bf16.mxu0 0
        %2432 = vmatpush1.bf16.msra.mxu0 0
        %2433 = vmatprep.subr.bf16.mxu0 0
        %2434 = vmatpush1.bf16.msra.mxu0 0
        %2435 = vmatprep.subr.bf16.mxu0 0
        %2436 = vmatpush1.bf16.msra.mxu0 0
        %2437 = vmatprep.mubr.bf16.mxu0 0
        %2438 = vmatmul.mubr.bf16.gmra.mrb[0].mxu0 %v2403
        %v2439 = vpop.f32.mrb[0].mxu0
        %v2440 = vadd.f32 0.0, %v2439
        %v2441 = vpop.f32.mrb[0].mxu0
        %v2442 = vpop.f32.mrb[0].mxu0
        %v2443 = vpop.f32.mrb[0].mxu0
        %2444 = vdwg.mxu0
        %v2447 = vsel %vm1288, %v2263, 0
        %2449 = vmatprep.subr.bf16.mxu0 0
        %2450 = vmatpush1.bf16.msra.mxu0 %v517
        %2451 = vmatprep.subr.bf16.mxu0 0
        %2452 = vmatpush1.bf16.msra.mxu0 0
        %2453 = vmatprep.subr.bf16.mxu0 0
        %2454 = vmatpush1.bf16.msra.mxu0 0
        %2455 = vmatprep.subr.bf16.mxu0 0
        %2456 = vmatpush1.bf16.msra.mxu0 0
        %2457 = vmatprep.subr.bf16.mxu0 0
        %2458 = vmatpush1.bf16.msra.mxu0 0
        %2459 = vmatprep.subr.bf16.mxu0 0
        %2460 = vmatpush1.bf16.msra.mxu0 0
        %2461 = vmatprep.subr.bf16.mxu0 0
        %2462 = vmatpush1.bf16.msra.mxu0 0
        %2463 = vmatprep.subr.bf16.mxu0 0
        %2464 = vmatpush1.bf16.msra.mxu0 0
        %2465 = vmatprep.subr.bf16.mxu0 0
        %2466 = vmatpush1.bf16.msra.mxu0 0
        %2467 = vmatprep.subr.bf16.mxu0 0
        %2468 = vmatpush1.bf16.msra.mxu0 0
        %2469 = vmatprep.subr.bf16.mxu0 0
        %2470 = vmatpush1.bf16.msra.mxu0 0
        %2471 = vmatprep.subr.bf16.mxu0 0
        %2472 = vmatpush1.bf16.msra.mxu0 0
        %2473 = vmatprep.subr.bf16.mxu0 0
        %2474 = vmatpush1.bf16.msra.mxu0 0
        %2475 = vmatprep.subr.bf16.mxu0 0
        %2476 = vmatpush1.bf16.msra.mxu0 0
        %2477 = vmatprep.subr.bf16.mxu0 0
        %2478 = vmatpush1.bf16.msra.mxu0 0
        %2479 = vmatprep.subr.bf16.mxu0 0
        %2480 = vmatpush1.bf16.msra.mxu0 0
        %2481 = vmatprep.mubr.bf16.mxu0 0
        %2482 = vmatmul.mubr.bf16.gmra.mrb[0].mxu0 %v2447
        %v2483 = vpop.f32.mrb[0].mxu0
        %v2484 = vadd.f32 0.0, %v2483
        %v2485 = vpop.f32.mrb[0].mxu0
        %v2486 = vpop.f32.mrb[0].mxu0
        %v2487 = vpop.f32.mrb[0].mxu0
        %2488 = vdwg.mxu0
        %v2491 = vsel %vm1288, %v2264, 0
        %2493 = vmatprep.subr.bf16.mxu0 0
        %2494 = vmatpush1.bf16.msra.mxu0 %v566
        %2495 = vmatprep.subr.bf16.mxu0 0
        %2496 = vmatpush1.bf16.msra.mxu0 0
        %2497 = vmatprep.subr.bf16.mxu0 0
        %2498 = vmatpush1.bf16.msra.mxu0 0
        %2499 = vmatprep.subr.bf16.mxu0 0
        %2500 = vmatpush1.bf16.msra.mxu0 0
        %2501 = vmatprep.subr.bf16.mxu0 0
        %2502 = vmatpush1.bf16.msra.mxu0 0
        %2503 = vmatprep.subr.bf16.mxu0 0
        %2504 = vmatpush1.bf16.msra.mxu0 0
        %2505 = vmatprep.subr.bf16.mxu0 0
        %2506 = vmatpush1.bf16.msra.mxu0 0
        %2507 = vmatprep.subr.bf16.mxu0 0
        %2508 = vmatpush1.bf16.msra.mxu0 0
        %2509 = vmatprep.subr.bf16.mxu0 0
        %2510 = vmatpush1.bf16.msra.mxu0 0
        %2511 = vmatprep.subr.bf16.mxu0 0
        %2512 = vmatpush1.bf16.msra.mxu0 0
        %2513 = vmatprep.subr.bf16.mxu0 0
        %2514 = vmatpush1.bf16.msra.mxu0 0
        %2515 = vmatprep.subr.bf16.mxu0 0
        %2516 = vmatpush1.bf16.msra.mxu0 0
        %2517 = vmatprep.subr.bf16.mxu0 0
        %2518 = vmatpush1.bf16.msra.mxu0 0
        %2519 = vmatprep.subr.bf16.mxu0 0
        %2520 = vmatpush1.bf16.msra.mxu0 0
        %2521 = vmatprep.subr.bf16.mxu0 0
        %2522 = vmatpush1.bf16.msra.mxu0 0
        %2523 = vmatprep.subr.bf16.mxu0 0
        %2524 = vmatpush1.bf16.msra.mxu0 0
        %2525 = vmatprep.mubr.bf16.mxu0 0
        %2526 = vmatmul.mubr.bf16.gmra.mrb[0].mxu0 %v2491
        %v2527 = vpop.f32.mrb[0].mxu0
        %v2528 = vadd.f32 0.0, %v2527
        %v2529 = vpop.f32.mrb[0].mxu0
        %v2530 = vpop.f32.mrb[0].mxu0
        %v2531 = vpop.f32.mrb[0].mxu0
        %2532 = vdwg.mxu0
        %v2535 = vsel %vm1288, %v2265, 0
        %2537 = vmatprep.subr.bf16.mxu0 0
        %2538 = vmatpush1.bf16.msra.mxu0 %v615
        %2539 = vmatprep.subr.bf16.mxu0 0
        %2540 = vmatpush1.bf16.msra.mxu0 0
        %2541 = vmatprep.subr.bf16.mxu0 0
        %2542 = vmatpush1.bf16.msra.mxu0 0
        %2543 = vmatprep.subr.bf16.mxu0 0
        %2544 = vmatpush1.bf16.msra.mxu0 0
        %2545 = vmatprep.subr.bf16.mxu0 0
        %2546 = vmatpush1.bf16.msra.mxu0 0
        %2547 = vmatprep.subr.bf16.mxu0 0
        %2548 = vmatpush1.bf16.msra.mxu0 0
        %2549 = vmatprep.subr.bf16.mxu0 0
        %2550 = vmatpush1.bf16.msra.mxu0 0
        %2551 = vmatprep.subr.bf16.mxu0 0
        %2552 = vmatpush1.bf16.msra.mxu0 0
        %2553 = vmatprep.subr.bf16.mxu0 0
        %2554 = vmatpush1.bf16.msra.mxu0 0
        %2555 = vmatprep.subr.bf16.mxu0 0
        %2556 = vmatpush1.bf16.msra.mxu0 0
        %2557 = vmatprep.subr.bf16.mxu0 0
        %2558 = vmatpush1.bf16.msra.mxu0 0
        %2559 = vmatprep.subr.bf16.mxu0 0
        %2560 = vmatpush1.bf16.msra.mxu0 0
        %2561 = vmatprep.subr.bf16.mxu0 0
        %2562 = vmatpush1.bf16.msra.mxu0 0
        %2563 = vmatprep.subr.bf16.mxu0 0
        %2564 = vmatpush1.bf16.msra.mxu0 0
        %2565 = vmatprep.subr.bf16.mxu0 0
        %2566 = vmatpush1.bf16.msra.mxu0 0
        %2567 = vmatprep.subr.bf16.mxu0 0
        %2568 = vmatpush1.bf16.msra.mxu0 0
        %2569 = vmatprep.mubr.bf16.mxu0 0
        %2570 = vmatmul.mubr.bf16.gmra.mrb[0].mxu0 %v2535
        %v2571 = vpop.f32.mrb[0].mxu0
        %v2572 = vadd.f32 0.0, %v2571
        %v2573 = vpop.f32.mrb[0].mxu0
        %v2574 = vpop.f32.mrb[0].mxu0
        %v2575 = vpop.f32.mrb[0].mxu0
        %2576 = vdwg.mxu0
        %v2579 = vsel %vm1288, %v2266, 0
        %2581 = vmatprep.subr.bf16.mxu0 0
        %2582 = vmatpush1.bf16.msra.mxu0 %v664
        %2583 = vmatprep.subr.bf16.mxu0 0
        %2584 = vmatpush1.bf16.msra.mxu0 0
        %2585 = vmatprep.subr.bf16.mxu0 0
        %2586 = vmatpush1.bf16.msra.mxu0 0
        %2587 = vmatprep.subr.bf16.mxu0 0
        %2588 = vmatpush1.bf16.msra.mxu0 0
        %2589 = vmatprep.subr.bf16.mxu0 0
        %2590 = vmatpush1.bf16.msra.mxu0 0
        %2591 = vmatprep.subr.bf16.mxu0 0
        %2592 = vmatpush1.bf16.msra.mxu0 0
        %2593 = vmatprep.subr.bf16.mxu0 0
        %2594 = vmatpush1.bf16.msra.mxu0 0
        %2595 = vmatprep.subr.bf16.mxu0 0
        %2596 = vmatpush1.bf16.msra.mxu0 0
        %2597 = vmatprep.subr.bf16.mxu0 0
        %2598 = vmatpush1.bf16.msra.mxu0 0
        %2599 = vmatprep.subr.bf16.mxu0 0
        %2600 = vmatpush1.bf16.msra.mxu0 0
        %2601 = vmatprep.subr.bf16.mxu0 0
        %2602 = vmatpush1.bf16.msra.mxu0 0
        %2603 = vmatprep.subr.bf16.mxu0 0
        %2604 = vmatpush1.bf16.msra.mxu0 0
        %2605 = vmatprep.subr.bf16.mxu0 0
        %2606 = vmatpush1.bf16.msra.mxu0 0
        %2607 = vmatprep.subr.bf16.mxu0 0
        %2608 = vmatpush1.bf16.msra.mxu0 0
        %2609 = vmatprep.subr.bf16.mxu0 0
        %2610 = vmatpush1.bf16.msra.mxu0 0
        %2611 = vmatprep.subr.bf16.mxu0 0
        %2612 = vmatpush1.bf16.msra.mxu0 0
        %2613 = vmatprep.mubr.bf16.mxu0 0
        %2614 = vmatmul.mubr.bf16.gmra.mrb[0].mxu0 %v2579
        %v2615 = vpop.f32.mrb[0].mxu0
        %v2616 = vadd.f32 0.0, %v2615
        %v2617 = vpop.f32.mrb[0].mxu0
        %v2618 = vpop.f32.mrb[0].mxu0
        %v2619 = vpop.f32.mrb[0].mxu0
        %2620 = vdwg.mxu0
        %v2623 = vsel %vm1288, %v2267, 0
        %2625 = vmatprep.subr.bf16.mxu0 0
        %2626 = vmatpush1.bf16.msra.mxu0 %v713
        %2627 = vmatprep.subr.bf16.mxu0 0
        %2628 = vmatpush1.bf16.msra.mxu0 0
        %2629 = vmatprep.subr.bf16.mxu0 0
        %2630 = vmatpush1.bf16.msra.mxu0 0
        %2631 = vmatprep.subr.bf16.mxu0 0
        %2632 = vmatpush1.bf16.msra.mxu0 0
        %2633 = vmatprep.subr.bf16.mxu0 0
        %2634 = vmatpush1.bf16.msra.mxu0 0
        %2635 = vmatprep.subr.bf16.mxu0 0
        %2636 = vmatpush1.bf16.msra.mxu0 0
        %2637 = vmatprep.subr.bf16.mxu0 0
        %2638 = vmatpush1.bf16.msra.mxu0 0
        %2639 = vmatprep.subr.bf16.mxu0 0
        %2640 = vmatpush1.bf16.msra.mxu0 0
        %2641 = vmatprep.subr.bf16.mxu0 0
        %2642 = vmatpush1.bf16.msra.mxu0 0
        %2643 = vmatprep.subr.bf16.mxu0 0
        %2644 = vmatpush1.bf16.msra.mxu0 0
        %2645 = vmatprep.subr.bf16.mxu0 0
        %2646 = vmatpush1.bf16.msra.mxu0 0
        %2647 = vmatprep.subr.bf16.mxu0 0
        %2648 = vmatpush1.bf16.msra.mxu0 0
        %2649 = vmatprep.subr.bf16.mxu0 0
        %2650 = vmatpush1.bf16.msra.mxu0 0
        %2651 = vmatprep.subr.bf16.mxu0 0
        %2652 = vmatpush1.bf16.msra.mxu0 0
        %2653 = vmatprep.subr.bf16.mxu0 0
        %2654 = vmatpush1.bf16.msra.mxu0 0
        %2655 = vmatprep.subr.bf16.mxu0 0
        %2656 = vmatpush1.bf16.msra.mxu0 0
        %2657 = vmatprep.mubr.bf16.mxu0 0
        %2658 = vmatmul.mubr.bf16.gmra.mrb[0].mxu0 %v2623
        %v2659 = vpop.f32.mrb[0].mxu0
        %v2660 = vadd.f32 0.0, %v2659
        %v2661 = vpop.f32.mrb[0].mxu0
        %v2662 = vpop.f32.mrb[0].mxu0
        %v2663 = vpop.f32.mrb[0].mxu0
        %2664 = vdwg.mxu0
        %v2667 = vsel %vm1288, %v2268, 0
        %2669 = vmatprep.subr.bf16.mxu0 0
        %2670 = vmatpush1.bf16.msra.mxu0 %v762
        %2671 = vmatprep.subr.bf16.mxu0 0
        %2672 = vmatpush1.bf16.msra.mxu0 0
        %2673 = vmatprep.subr.bf16.mxu0 0
        %2674 = vmatpush1.bf16.msra.mxu0 0
        %2675 = vmatprep.subr.bf16.mxu0 0
        %2676 = vmatpush1.bf16.msra.mxu0 0
        %2677 = vmatprep.subr.bf16.mxu0 0
        %2678 = vmatpush1.bf16.msra.mxu0 0
        %2679 = vmatprep.subr.bf16.mxu0 0
        %2680 = vmatpush1.bf16.msra.mxu0 0
        %2681 = vmatprep.subr.bf16.mxu0 0
        %2682 = vmatpush1.bf16.msra.mxu0 0
        %2683 = vmatprep.subr.bf16.mxu0 0
        %2684 = vmatpush1.bf16.msra.mxu0 0
        %2685 = vmatprep.subr.bf16.mxu0 0
        %2686 = vmatpush1.bf16.msra.mxu0 0
        %2687 = vmatprep.subr.bf16.mxu0 0
        %2688 = vmatpush1.bf16.msra.mxu0 0
        %2689 = vmatprep.subr.bf16.mxu0 0
        %2690 = vmatpush1.bf16.msra.mxu0 0
        %2691 = vmatprep.subr.bf16.mxu0 0
        %2692 = vmatpush1.bf16.msra.mxu0 0
        %2693 = vmatprep.subr.bf16.mxu0 0
        %2694 = vmatpush1.bf16.msra.mxu0 0
        %2695 = vmatprep.subr.bf16.mxu0 0
        %2696 = vmatpush1.bf16.msra.mxu0 0
        %2697 = vmatprep.subr.bf16.mxu0 0
        %2698 = vmatpush1.bf16.msra.mxu0 0
        %2699 = vmatprep.subr.bf16.mxu0 0
        %2700 = vmatpush1.bf16.msra.mxu0 0
        %2701 = vmatprep.mubr.bf16.mxu0 0
        %2702 = vmatmul.mubr.bf16.gmra.mrb[0].mxu0 %v2667
        %v2703 = vpop.f32.mrb[0].mxu0
        %v2704 = vadd.f32 0.0, %v2703
        %v2705 = vpop.f32.mrb[0].mxu0
        %v2706 = vpop.f32.mrb[0].mxu0
        %v2707 = vpop.f32.mrb[0].mxu0
        %2708 = vdwg.mxu0
        %vm2709 = vcmask 122880
        %v2710 = vsel %vm2709, %v306, 0.0
        %2711 = vadd.xlane.f32.xlu0 %v2710
        %v2712 = vpop.xlane.xlu0 %2711
        %v2713 = vsel %vm2709, %v307, 0.0
        %2714 = vadd.xlane.f32.xlu0 %v2713
        %v2715 = vpop.xlane.xlu0 %2714
        %v2716 = vsel %vm2709, %v308, 0.0
        %2717 = vadd.xlane.f32.xlu0 %v2716
        %v2718 = vpop.xlane.xlu0 %2717
        %v2719 = vsel %vm2709, %v309, 0.0
        %2720 = vadd.xlane.f32.xlu0 %v2719
        %v2721 = vpop.xlane.xlu0 %2720
        %v2722 = vsel %vm2709, %v310, 0.0
        %2723 = vadd.xlane.f32.xlu0 %v2722
        %v2724 = vpop.xlane.xlu0 %2723
        %v2725 = vsel %vm2709, %v311, 0.0
        %2726 = vadd.xlane.f32.xlu0 %v2725
        %v2727 = vpop.xlane.xlu0 %2726
        %v2728 = vsel %vm2709, %v312, 0.0
        %2729 = vadd.xlane.f32.xlu0 %v2728
        %v2730 = vpop.xlane.xlu0 %2729
        %v2731 = vsel %vm2709, %v313, 0.0
        %2732 = vadd.xlane.f32.xlu0 %v2731
        %v2733 = vpop.xlane.xlu0 %2732
        %v2734 = vsel %vm2709, %v314, 0.0
        %2735 = vadd.xlane.f32.xlu0 %v2734
        %v2736 = vpop.xlane.xlu0 %2735
        %v2737 = vsel %vm2709, %v315, 0.0
        %2738 = vadd.xlane.f32.xlu0 %v2737
        %v2739 = vpop.xlane.xlu0 %2738
        %vm2740 = vcmask 124930
        %v2741 = vsel %vm2740, %v306, 0.0
        %2742 = vadd.xlane.f32.xlu0 %v2741
        %v2743 = vpop.xlane.xlu0 %2742
        %v2744 = vsel %vm2740, %v307, 0.0
        %2745 = vadd.xlane.f32.xlu0 %v2744
        %v2746 = vpop.xlane.xlu0 %2745
        %v2747 = vsel %vm2740, %v308, 0.0
        %2748 = vadd.xlane.f32.xlu0 %v2747
        %v2749 = vpop.xlane.xlu0 %2748
        %v2750 = vsel %vm2740, %v309, 0.0
        %2751 = vadd.xlane.f32.xlu0 %v2750
        %v2752 = vpop.xlane.xlu0 %2751
        %v2753 = vsel %vm2740, %v310, 0.0
        %2754 = vadd.xlane.f32.xlu0 %v2753
        %v2755 = vpop.xlane.xlu0 %2754
        %v2756 = vsel %vm2740, %v311, 0.0
        %2757 = vadd.xlane.f32.xlu0 %v2756
        %v2758 = vpop.xlane.xlu0 %2757
        %v2759 = vsel %vm2740, %v312, 0.0
        %2760 = vadd.xlane.f32.xlu0 %v2759
        %v2761 = vpop.xlane.xlu0 %2760
        %v2762 = vsel %vm2740, %v313, 0.0
        %2763 = vadd.xlane.f32.xlu0 %v2762
        %v2764 = vpop.xlane.xlu0 %2763
        %v2765 = vsel %vm2740, %v314, 0.0
        %2766 = vadd.xlane.f32.xlu0 %v2765
        %v2767 = vpop.xlane.xlu0 %2766
        %v2768 = vsel %vm2740, %v315, 0.0
        %2769 = vadd.xlane.f32.xlu0 %v2768
        %v2770 = vpop.xlane.xlu0 %2769
        %vm2771 = vcmask 126980
        %v2772 = vsel %vm2771, %v306, 0.0
        %2773 = vadd.xlane.f32.xlu0 %v2772
        %v2774 = vpop.xlane.xlu0 %2773
        %v2775 = vsel %vm2771, %v307, 0.0
        %2776 = vadd.xlane.f32.xlu0 %v2775
        %v2777 = vpop.xlane.xlu0 %2776
        %v2778 = vsel %vm2771, %v308, 0.0
        %2779 = vadd.xlane.f32.xlu0 %v2778
        %v2780 = vpop.xlane.xlu0 %2779
        %v2781 = vsel %vm2771, %v309, 0.0
        %2782 = vadd.xlane.f32.xlu0 %v2781
        %v2783 = vpop.xlane.xlu0 %2782
        %v2784 = vsel %vm2771, %v310, 0.0
        %2785 = vadd.xlane.f32.xlu0 %v2784
        %v2786 = vpop.xlane.xlu0 %2785
        %v2787 = vsel %vm2771, %v311, 0.0
        %2788 = vadd.xlane.f32.xlu0 %v2787
        %v2789 = vpop.xlane.xlu0 %2788
        %v2790 = vsel %vm2771, %v312, 0.0
        %2791 = vadd.xlane.f32.xlu0 %v2790
        %v2792 = vpop.xlane.xlu0 %2791
        %v2793 = vsel %vm2771, %v313, 0.0
        %2794 = vadd.xlane.f32.xlu0 %v2793
        %v2795 = vpop.xlane.xlu0 %2794
        %v2796 = vsel %vm2771, %v314, 0.0
        %2797 = vadd.xlane.f32.xlu0 %v2796
        %v2798 = vpop.xlane.xlu0 %2797
        %v2799 = vsel %vm2771, %v315, 0.0
        %2800 = vadd.xlane.f32.xlu0 %v2799
        %v2801 = vpop.xlane.xlu0 %2800
        %vm2802 = vcmp.eq.s32.totalorder %v2180, 0
        %vm2803 = vmor %vm2802, %vm2182
        %vm2804 = vcmp.eq.s32.totalorder %v2180, 2
        %vm2805 = vmor %vm2181, %vm2804
        %vm2806 = vcmp.eq.s32.totalorder %v2180, 4
        %v2807 = vsel %vm2806, 1, 0
        %vm2808 = vcmp.eq.s32.totalorder %v2807, 1
        %v2809 = vlaneseq
        %v2810 = vshrl.u32 %v2809, 7
        %v2811 = vsub.s32 4, %v2810
        %v2812 = vrot.slane %v2774, %v2811
        %v2813 = vlaneseq
        %v2814 = vshrl.u32 %v2813, 7
        %v2815 = vsub.s32 4, %v2814
        %v2816 = vrot.slane %v2777, %v2815
        %v2817 = vlaneseq
        %v2818 = vshrl.u32 %v2817, 7
        %v2819 = vsub.s32 4, %v2818
        %v2820 = vrot.slane %v2780, %v2819
        %v2821 = vlaneseq
        %v2822 = vshrl.u32 %v2821, 7
        %v2823 = vsub.s32 4, %v2822
        %v2824 = vrot.slane %v2783, %v2823
        %v2825 = vlaneseq
        %v2826 = vshrl.u32 %v2825, 7
        %v2827 = vsub.s32 4, %v2826
        %v2828 = vrot.slane %v2786, %v2827
        %v2829 = vlaneseq
        %v2830 = vshrl.u32 %v2829, 7
        %v2831 = vsub.s32 4, %v2830
        %v2832 = vrot.slane %v2789, %v2831
        %v2833 = vlaneseq
        %v2834 = vshrl.u32 %v2833, 7
        %v2835 = vsub.s32 4, %v2834
        %v2836 = vrot.slane %v2792, %v2835
        %v2837 = vlaneseq
        %v2838 = vshrl.u32 %v2837, 7
        %v2839 = vsub.s32 4, %v2838
        %v2840 = vrot.slane %v2795, %v2839
        %v2841 = vlaneseq
        %v2842 = vshrl.u32 %v2841, 7
        %v2843 = vsub.s32 4, %v2842
        %v2844 = vrot.slane %v2798, %v2843
        %v2845 = vlaneseq
        %v2846 = vshrl.u32 %v2845, 7
        %v2847 = vsub.s32 4, %v2846
        %v2848 = vrot.slane %v2801, %v2847
        %v2849 = vsel %vm2808, %v2812, 1.0
        %v2850 = vsel %vm2808, %v2816, 1.0
        %v2851 = vsel %vm2808, %v2820, 1.0
        %v2852 = vsel %vm2808, %v2824, 1.0
        %v2853 = vsel %vm2808, %v2828, 1.0
        %v2854 = vsel %vm2808, %v2832, 1.0
        %v2855 = vsel %vm2808, %v2836, 1.0
        %v2856 = vsel %vm2808, %v2840, 1.0
        %v2857 = vsel %vm2808, %v2844, 1.0
        %v2858 = vsel %vm2808, %v2848, 1.0
        %v2859 = vsel %vm2805, 1, 0
        %vm2860 = vcmp.eq.s32.totalorder %v2859, 1
        %v2861 = vlaneseq
        %v2862 = vshrl.u32 %v2861, 7
        %v2863 = vsub.s32 2, %v2862
        %v2864 = vrot.slane %v2743, %v2863
        %v2865 = vlaneseq
        %v2866 = vshrl.u32 %v2865, 7
        %v2867 = vsub.s32 2, %v2866
        %v2868 = vrot.slane %v2746, %v2867
        %v2869 = vlaneseq
        %v2870 = vshrl.u32 %v2869, 7
        %v2871 = vsub.s32 2, %v2870
        %v2872 = vrot.slane %v2749, %v2871
        %v2873 = vlaneseq
        %v2874 = vshrl.u32 %v2873, 7
        %v2875 = vsub.s32 2, %v2874
        %v2876 = vrot.slane %v2752, %v2875
        %v2877 = vlaneseq
        %v2878 = vshrl.u32 %v2877, 7
        %v2879 = vsub.s32 2, %v2878
        %v2880 = vrot.slane %v2755, %v2879
        %v2881 = vlaneseq
        %v2882 = vshrl.u32 %v2881, 7
        %v2883 = vsub.s32 2, %v2882
        %v2884 = vrot.slane %v2758, %v2883
        %v2885 = vlaneseq
        %v2886 = vshrl.u32 %v2885, 7
        %v2887 = vsub.s32 2, %v2886
        %v2888 = vrot.slane %v2761, %v2887
        %v2889 = vlaneseq
        %v2890 = vshrl.u32 %v2889, 7
        %v2891 = vsub.s32 2, %v2890
        %v2892 = vrot.slane %v2764, %v2891
        %v2893 = vlaneseq
        %v2894 = vshrl.u32 %v2893, 7
        %v2895 = vsub.s32 2, %v2894
        %v2896 = vrot.slane %v2767, %v2895
        %v2897 = vlaneseq
        %v2898 = vshrl.u32 %v2897, 7
        %v2899 = vsub.s32 2, %v2898
        %v2900 = vrot.slane %v2770, %v2899
        %v2901 = vsel %vm2860, %v2864, %v2849
        %v2902 = vsel %vm2860, %v2868, %v2850
        %v2903 = vsel %vm2860, %v2872, %v2851
        %v2904 = vsel %vm2860, %v2876, %v2852
        %v2905 = vsel %vm2860, %v2880, %v2853
        %v2906 = vsel %vm2860, %v2884, %v2854
        %v2907 = vsel %vm2860, %v2888, %v2855
        %v2908 = vsel %vm2860, %v2892, %v2856
        %v2909 = vsel %vm2860, %v2896, %v2857
        %v2910 = vsel %vm2860, %v2900, %v2858
        %v2911 = vsel %vm2803, 1, 0
        %vm2912 = vcmp.eq.s32.totalorder %v2911, 1
        %v2913 = vlaneseq
        %v2914 = vshrl.u32 %v2913, 7
        %v2915 = vsub.s32 0, %v2914
        %v2916 = vrot.slane %v2712, %v2915
        %v2917 = vlaneseq
        %v2918 = vshrl.u32 %v2917, 7
        %v2919 = vsub.s32 0, %v2918
        %v2920 = vrot.slane %v2715, %v2919
        %v2921 = vlaneseq
        %v2922 = vshrl.u32 %v2921, 7
        %v2923 = vsub.s32 0, %v2922
        %v2924 = vrot.slane %v2718, %v2923
        %v2925 = vlaneseq
        %v2926 = vshrl.u32 %v2925, 7
        %v2927 = vsub.s32 0, %v2926
        %v2928 = vrot.slane %v2721, %v2927
        %v2929 = vlaneseq
        %v2930 = vshrl.u32 %v2929, 7
        %v2931 = vsub.s32 0, %v2930
        %v2932 = vrot.slane %v2724, %v2931
        %v2933 = vlaneseq
        %v2934 = vshrl.u32 %v2933, 7
        %v2935 = vsub.s32 0, %v2934
        %v2936 = vrot.slane %v2727, %v2935
        %v2937 = vlaneseq
        %v2938 = vshrl.u32 %v2937, 7
        %v2939 = vsub.s32 0, %v2938
        %v2940 = vrot.slane %v2730, %v2939
        %v2941 = vlaneseq
        %v2942 = vshrl.u32 %v2941, 7
        %v2943 = vsub.s32 0, %v2942
        %v2944 = vrot.slane %v2733, %v2943
        %v2945 = vlaneseq
        %v2946 = vshrl.u32 %v2945, 7
        %v2947 = vsub.s32 0, %v2946
        %v2948 = vrot.slane %v2736, %v2947
        %v2949 = vlaneseq
        %v2950 = vshrl.u32 %v2949, 7
        %v2951 = vsub.s32 0, %v2950
        %v2952 = vrot.slane %v2739, %v2951
        %v2953 = vsel %vm2912, %v2916, %v2901
        %v2954 = vsel %vm2912, %v2920, %v2902
        %v2955 = vsel %vm2912, %v2924, %v2903
        %v2956 = vsel %vm2912, %v2928, %v2904
        %v2957 = vsel %vm2912, %v2932, %v2905
        %v2958 = vsel %vm2912, %v2936, %v2906
        %v2959 = vsel %vm2912, %v2940, %v2907
        %v2960 = vsel %vm2912, %v2944, %v2908
        %v2961 = vsel %vm2912, %v2948, %v2909
        %v2962 = vsel %vm2912, %v2952, %v2910
        %v2963 = vadd.f32 %v2953, 1e-06
        %v2964 = vadd.f32 %v2954, 1e-06
        %v2965 = vadd.f32 %v2955, 1e-06
        %v2966 = vadd.f32 %v2956, 1e-06
        %v2967 = vadd.f32 %v2957, 1e-06
        %v2968 = vadd.f32 %v2958, 1e-06
        %v2969 = vadd.f32 %v2959, 1e-06
        %v2970 = vadd.f32 %v2960, 1e-06
        %v2971 = vadd.f32 %v2961, 1e-06
        %v2972 = vadd.f32 %v2962, 1e-06
        %v2973 = vrcp.pop %v2963
        %v2974 = vmul.f32 %v2308, %v2973
        %v2975 = vrcp.pop %v2964
        %v2976 = vmul.f32 %v2352, %v2975
        %v2977 = vrcp.pop %v2965
        %v2978 = vmul.f32 %v2396, %v2977
        %v2979 = vrcp.pop %v2966
        %v2980 = vmul.f32 %v2440, %v2979
        %v2981 = vrcp.pop %v2967
        %v2982 = vmul.f32 %v2484, %v2981
        %v2983 = vrcp.pop %v2968
        %v2984 = vmul.f32 %v2528, %v2983
        %v2985 = vrcp.pop %v2969
        %v2986 = vmul.f32 %v2572, %v2985
        %v2987 = vrcp.pop %v2970
        %v2988 = vmul.f32 %v2616, %v2987
        %v2989 = vrcp.pop %v2971
        %v2990 = vmul.f32 %v2660, %v2989
        %v2991 = vrcp.pop %v2972
        %v2992 = vmul.f32 %v2704, %v2991
        %2993 = vst.msk [vmem:[%s236] sm:$0xff] %vm321, %v2974
        %2994 = vst.msk [vmem:[%s236 + $0x8] sm:$0xff] %vm321, %v2976
        %2995 = vst.msk [vmem:[%s236 + $0x10] sm:$0xff] %vm321, %v2978
        %2996 = vst.msk [vmem:[%s236 + $0x18] sm:$0xff] %vm321, %v2980
        %2997 = vst.msk [vmem:[%s236 + $0x20] sm:$0xff] %vm321, %v2982
        %2998 = vst.msk [vmem:[%s236 + $0x28] sm:$0xff] %vm321, %v2984
        %2999 = vst.msk [vmem:[%s236 + $0x30] sm:$0xff] %vm321, %v2986
        %3000 = vst.msk [vmem:[%s236 + $0x38] sm:$0xff] %vm321, %v2988
        %3001 = vst.msk [vmem:[%s236 + $0x40] sm:$0xff] %vm321, %v2990
        %3002 = vst.msk [vmem:[%s236 + $0x48] sm:$0xff] %vm321, %v2992
        %s3003 = smul.u32 10, %s19
        %p3004 = scmp.lt.s32.totalorder %s3003, 19
        %s3005 = scalar_select %p3004, %s3003, 19
        %s3006 = smul.addr %s3005, 2
        %s3007 = smul.addr %s3006, 4
        %s3008 = scalar_lea.vmem %s3, %s3007
        %s3009 = sand.u32 %s131, 1
        %s3010 = scalar_lea.sflag [#allocation3], %s3009
        %s3011 = sand.u32 %s131, 1
        %s3012 = smul.addr %s3011, 80
        %s3013 = scalar_lea.vmem [#allocation2], %s3012
        // Predicated region
        $region33: #{tpu_custom_call.1} parent=31 // pred_check
          %p3014 = pneg %p115
        $region34: #{tpu_custom_call.1} parent=31 // pred_check_branch
          %3016 = sbr.rel (%p3014) target = $region36
        $region35: #{tpu_custom_call.1} parent=31 // pred_region
          %s3017 = smul.u32 10, %s19
        $region36: #{tpu_custom_call.1} parent=31 // pred_fallthru
          _
        // Predicated region
        $region37: #{tpu_custom_call.1} parent=31 // pred_check
          %p3018 = pneg %p141
        $region38: #{tpu_custom_call.1} parent=31 // pred_check_branch
          %3020 = sbr.rel (%p3018) target = $region40
        $region39: #{tpu_custom_call.1} parent=31 // pred_region
          %s3021 = smul.u32 10, %s19
          %s3023 = ssub.s32 1280, 1280
          %3024 = vsyncadd %s3010, %s3023
          %s3025 = smul.addr %s3021, 128
          %s3026 = scalar_lea.hbm %s4, %s3025
          %s3027 = sshll.u32 %s3013, 4
          %s3028 = int_to_ptr.vmem [resolvable:$true] %s3027
          %3033 = dma.vmem_to_hbm [thread:$0]  %s3028, 1280, %s3026, %s3010, 128, 128, 8
        $region40: #{tpu_custom_call.1} parent=31 // pred_fallthru
          _
      $region32: #{tpu_custom_call.1} parent=5 // pred_fallthru
        _
      %p3034 = scmp.le.s32.totalorder 2, %s14
      // Predicated region
      $region41: #{tpu_custom_call.1} parent=5 // pred_check
        %p3035 = pneg %p3034
      $region42: #{tpu_custom_call.1} parent=5 // pred_check_branch
        %3037 = sbr.rel (%p3035) target = $region44
      $region43: #{tpu_custom_call.1} parent=5 // pred_region
        %s3038 = ssub.s32 %s14, 2
        // Predicated region
        $region45: #{tpu_custom_call.1} parent=43 // pred_check
          %p3039 = pneg %p121
        $region46: #{tpu_custom_call.1} parent=43 // pred_check_branch
          %3041 = sbr.rel (%p3039) target = $region48
        $region47: #{tpu_custom_call.1} parent=43 // pred_region
          %s3042 = smul.u32 10, %s20
          %p3043 = scmp.lt.s32.totalorder %s3042, 19
          %s3044 = scalar_select %p3043, %s3042, 19
          %s3045 = smul.addr %s3044, 2
          %s3046 = smul.addr %s3045, 4
          %s3047 = scalar_lea.vmem %s3, %s3046
        $region48: #{tpu_custom_call.1} parent=43 // pred_fallthru
          _
        // Predicated region
        $region49: #{tpu_custom_call.1} parent=43 // pred_check
          %p3048 = pneg %p147
        $region50: #{tpu_custom_call.1} parent=43 // pred_check_branch
          %3050 = sbr.rel (%p3048) target = $region52
        $region51: #{tpu_custom_call.1} parent=43 // pred_region
          %s3051 = sand.u32 %s132, 1
          %s3052 = scalar_lea.sflag [#allocation3], %s3051
          %s3053 = sand.u32 %s132, 1
          %s3054 = smul.addr %s3053, 80
          %s3055 = scalar_lea.vmem [#allocation2], %s3054
          %3056 = dma.done %s3052, 1280
        $region52: #{tpu_custom_call.1} parent=43 // pred_fallthru
          _
      $region44: #{tpu_custom_call.1} parent=5 // pred_fallthru
        _
    $region6: #{tpu_custom_call.1} parent=1 // loop_footer
      %s18 = sadd.s32 1, %s14
    $region7: #{tpu_custom_call.1} parent=1 // loop_footer_branch
      %13 = sbr.rel target = $region3
    $region8: #{tpu_custom_call.1} parent=1 // loop_exit
      _
    %3057 = vsyncpa [#allocation3], 1
    %s3058 = scalar_lea.sflag [#allocation3], 1
    %3059 = vsyncpa %s3058, 1

</llo_original>
